<compile_context>
chip_gen: v7x
topology: tpu7x:2x2x1
jax: 0.10.0
libtpu: 0.0.40
codegen_flags: <defaults>
</compile_context>

<pallas_src>
import functools
import math

import jax
import jax.numpy as jnp
from jax.experimental import pallas as pl
from jax.experimental.pallas import tpu as pltpu

_NEG = -100000.0          # Python float: embedded as a literal, never captured as a traced const.
_LN_EPS = 1e-5
_NUM_EDGE_LABELS = 14


def _row_block(m, target=256):
    """Largest multiple-of-8 divisor of m that is <= min(target, m//2) (>=2 grid steps), else m."""
    if m < 16:
        return m
    cap = min(target, m // 2)
    b = cap - (cap % 8)
    while b >= 8:
        if m % b == 0:
            return b
        b -= 8
    return m


def _vocab_block(v, target=2048):
    """Largest multiple-of-128 divisor of v that is <= target, else v (single full block)."""
    b = min(target, v)
    b -= b % 128
    while b >= 128:
        if v % b == 0:
            return b
        b -= 128
    return v


def _ln(h, g, b, eps):
    mean = jnp.mean(h, axis=-1, keepdims=True)
    hc = h - mean
    var = jnp.mean(hc * hc, axis=-1, keepdims=True)
    return hc * jax.lax.rsqrt(var + eps) * g + b


# ----------------------------- Linear (fused QKV+QE+KE / generic) -----------------------------

def _linear_kernel(x_ref, w_ref, b_ref, o_ref):
    y = jnp.dot(x_ref[...].astype(jnp.bfloat16), w_ref[...],
                preferred_element_type=jnp.float32) + b_ref[...]
    o_ref[...] = y.astype(o_ref.dtype)


def linear(x, w_bf16, b_f32, out_dtype=jnp.float32):
    """y = x @ w + b; weights are pre-cast to bf16 (done once in prepare_params)."""
    M, K = x.shape
    N = w_bf16.shape[1]
    bm = _row_block(M)
    return pl.pallas_call(
        _linear_kernel,
        out_shape=jax.ShapeDtypeStruct((M, N), out_dtype),
        grid=(M // bm,),
        in_specs=[
            pl.BlockSpec((bm, K), lambda i: (i, 0)),
            pl.BlockSpec((K, N), lambda i: (0, 0)),
            pl.BlockSpec((1, N), lambda i: (0, 0)),
        ],
        out_specs=pl.BlockSpec((bm, N), lambda i: (i, 0)),
        compiler_params=pltpu.CompilerParams(dimension_semantics=("parallel",)),
    )(x, w_bf16, b_f32.reshape(1, N))


# ----------------------------- LayerNorm (input norm) -----------------------------

def _layernorm_kernel(x_ref, g_ref, b_ref, o_ref, *, eps):
    o_ref[...] = _ln(x_ref[...].astype(jnp.float32), g_ref[...], b_ref[...], eps
                     ).astype(o_ref.dtype)


def layernorm(x, g, b, eps=_LN_EPS):
    M, D = x.shape
    bm = _row_block(M)
    return pl.pallas_call(
        functools.partial(_layernorm_kernel, eps=eps),
        out_shape=jax.ShapeDtypeStruct((M, D), jnp.float32),
        grid=(M // bm,),
        in_specs=[pl.BlockSpec((bm, D), lambda i: (i, 0)),
                  pl.BlockSpec((1, D), lambda i: (0, 0)),
                  pl.BlockSpec((1, D), lambda i: (0, 0))],
        out_specs=pl.BlockSpec((bm, D), lambda i: (i, 0)),
        compiler_params=pltpu.CompilerParams(dimension_semantics=("parallel",)),
    )(x, g.reshape(1, D), b.reshape(1, D))


# ----------------------------- out-proj + residual + LayerNorm -----------------------------

def _proj_add_ln_kernel(a_ref, x_ref, w_ref, b_ref, g_ref, bb_ref, o_ref, *, eps):
    proj = jnp.dot(a_ref[...].astype(jnp.bfloat16), w_ref[...],
                   preferred_element_type=jnp.float32) + b_ref[...]
    h = x_ref[...] + proj                          # residual stays f32
    o_ref[...] = _ln(h, g_ref[...], bb_ref[...], eps).astype(o_ref.dtype)


def proj_add_layernorm(a, x, w_bf16, b, g, beta, eps=_LN_EPS):
    M, D = x.shape
    bm = _row_block(M)
    return pl.pallas_call(
        functools.partial(_proj_add_ln_kernel, eps=eps),
        out_shape=jax.ShapeDtypeStruct((M, D), jnp.float32),
        grid=(M // bm,),
        in_specs=[pl.BlockSpec((bm, D), lambda i: (i, 0)),
                  pl.BlockSpec((bm, D), lambda i: (i, 0)),
                  pl.BlockSpec((D, D), lambda i: (0, 0)),
                  pl.BlockSpec((1, D), lambda i: (0, 0)),
                  pl.BlockSpec((1, D), lambda i: (0, 0)),
                  pl.BlockSpec((1, D), lambda i: (0, 0))],
        out_specs=pl.BlockSpec((bm, D), lambda i: (i, 0)),
        compiler_params=pltpu.CompilerParams(dimension_semantics=("parallel",)),
    )(a, x, w_bf16, b.reshape(1, D), g.reshape(1, D), beta.reshape(1, D))


# ----------------------------- FFN (f1 + relu + f2) + residual + LayerNorm -----------------------------

def _ffn_add_ln_kernel(x_ref, w1_ref, b1_ref, w2_ref, b2_ref, g_ref, bb_ref, o_ref, *, eps):
    x = x_ref[...]
    h = jnp.dot(x.astype(jnp.bfloat16), w1_ref[...],
                preferred_element_type=jnp.float32) + b1_ref[...]
    h = jnp.maximum(h, 0.0)                         # decoder_activation='relu'
    y = jnp.dot(h.astype(jnp.bfloat16), w2_ref[...],
                preferred_element_type=jnp.float32) + b2_ref[...]
    o_ref[...] = _ln(x + y, g_ref[...], bb_ref[...], eps).astype(o_ref.dtype)


def ffn_add_layernorm(x, w1_bf16, b1, w2_bf16, b2, g, beta, eps=_LN_EPS):
    # TODO(synk): for realistic D, tile F with an "arbitrary" grid axis + f32 accumulator and
    #             single-buffer (pl.Buffered(1)) the constant-index weight blocks (v7x 64 MiB VMEM).
    M, D = x.shape
    F = w1_bf16.shape[1]
    bm = _row_block(M)
    return pl.pallas_call(
        functools.partial(_ffn_add_ln_kernel, eps=eps),
        out_shape=jax.ShapeDtypeStruct((M, D), jnp.float32),
        grid=(M // bm,),
        in_specs=[pl.BlockSpec((bm, D), lambda i: (i, 0)),
                  pl.BlockSpec((D, F), lambda i: (0, 0)),
                  pl.BlockSpec((1, F), lambda i: (0, 0)),
                  pl.BlockSpec((F, D), lambda i: (0, 0)),
                  pl.BlockSpec((1, D), lambda i: (0, 0)),
                  pl.BlockSpec((1, D), lambda i: (0, 0)),
                  pl.BlockSpec((1, D), lambda i: (0, 0))],
        out_specs=pl.BlockSpec((bm, D), lambda i: (i, 0)),
        compiler_params=pltpu.CompilerParams(dimension_semantics=("parallel",)),
    )(x, w1_bf16, b1.reshape(1, F), w2_bf16, b2.reshape(1, D),
      g.reshape(1, D), beta.reshape(1, D))


# ----------------------------- Edge attention (14-label table form) -----------------------------

def _edge_attn_kernel(q_ref, k_ref, v_ref, qe_ref, ke_ref, oh_ref, bias_ref, ev_ref, o_ref):
    # One batch element per grid step.  All score terms already carry the 1/sqrt(Dh) scale
    # (folded into wq for t1/t2, into eq_emb for t3, and into the precomputed t4/mask bias).
    H = q_ref.shape[1]
    Dh = q_ref.shape[3]

    q_h = q_ref[0]                                  # [H, S, Dh] bf16
    k_h = k_ref[0]                                  # [H, S, Dh] bf16
    v_h = v_ref[0]                                  # [H, S, Dh] bf16
    qe = qe_ref[0]                                  # [S, H, 14] bf16  (QE = q . ek_emb^T)
    ke = ke_ref[0]                                  # [S, H, 14] bf16  (KE = k . (eq_emb*scale)^T)
    oh = oh_ref[0]                                  # [S, 14, S] bf16  one-hot(labels[i, j]) in [i,e,j]
    bias = bias_ref[0]                              # [S, S] f32  (t4 term + mask fill)
    evw = ev_ref[...]                               # [14, Dh] bf16

    # t1[h,q,k] = sum_d q.k                 (MXU, batched over heads, canonical pattern)
    t1 = jnp.einsum('hqd,hkd->hqk', q_h, k_h, preferred_element_type=jnp.float32)
    # t2[q,h,k] = QE[q,h,label(q,k)]        (MXU, batched over q; one-hot expansion over 14 labels)
    t2q = jnp.einsum('qhe,qek->qhk', qe, oh, preferred_element_type=jnp.float32)
    # t3[k,h,q] = KE[k,h,label(k,q)]        (MXU, batched over k)
    t3k = jnp.einsum('khe,keq->khq', ke, oh, preferred_element_type=jnp.float32)

    # Relayouts to head-leading [h,q,k]: leading-dim swaps + one minor-dim (XLU) transpose only.
    t2 = jnp.transpose(t2q, (1, 0, 2))                                   # [h,q,k]
    t3 = jnp.transpose(jnp.transpose(t3k, (1, 0, 2)), (0, 2, 1))         # [k,h,q]->[h,k,q]->[h,q,k]

    scores = t1 + t2 + t3 + bias[None, :, :]

    smax = jnp.max(scores, axis=-1, keepdims=True)
    p = jnp.exp(scores - smax)
    attn = p * pl.reciprocal(jnp.sum(p, axis=-1, keepdims=True), approx=True)   # softmax(dim=-1)
    attn16 = attn.astype(jnp.bfloat16)                                   # [H, S, S]
    attn_q16 = jnp.transpose(attn, (1, 0, 2)).astype(jnp.bfloat16)       # [S, H, S]

    # out1[h,q,d] = sum_k attn * v          (MXU, canonical pattern)
    out1 = jnp.einsum('hqk,hkd->hqd', attn16, v_h, preferred_element_type=jnp.float32)
    # label bucket: P[q,h,e] = sum_k attn[q,h,k] * one-hot(labels[q,k])  (MXU, canonical pattern)
    pb = jnp.einsum('qhk,qek->qhe', attn_q16, oh, preferred_element_type=jnp.float32)

    # Per-head tail: out2_h = P_h @ ev_emb; heads merged into a lane-dense [S, D] output block
    # (single dense HBM writeback; only small static lane-offset stores inside VMEM).
    for h in range(H):
        out2_h = jnp.dot(pb[:, h, :].astype(jnp.bfloat16), evw,
                         preferred_element_type=jnp.float32)             # [S, Dh]
        o_ref[0, :, h * Dh:(h + 1) * Dh] = (out1[h] + out2_h).astype(o_ref.dtype)


def edge_attention(q_h, k_h, v_h, qe, ke, oh, bias, ev_emb):
    B, H, S, Dh = q_h.shape
    D = H * Dh
    E = _NUM_EDGE_LABELS
    flops = int(2 * B * H * S * S * (2 * Dh + 3 * E) + 2 * B * S * H * E * Dh)
    trans = int(B * H * S * S)
    bytes_accessed = int(sum(int(t.size) * t.dtype.itemsize
                             for t in (q_h, k_h, v_h, qe, ke, oh, bias, ev_emb)) + B * S * D * 2)
    # TODO(synk): flash-style K-tiling (grid=(B, S//bk), online softmax, pl.when init/finalize) for
    #             realistic S; at these shapes the full [S,S] score block fits VMEM comfortably.
    return pl.pallas_call(
        _edge_attn_kernel,
        out_shape=jax.ShapeDtypeStruct((B, S, D), jnp.bfloat16),
        grid=(B,),
        in_specs=[
            pl.BlockSpec((1, H, S, Dh), lambda b: (b, 0, 0, 0)),
            pl.BlockSpec((1, H, S, Dh), lambda b: (b, 0, 0, 0)),
            pl.BlockSpec((1, H, S, Dh), lambda b: (b, 0, 0, 0)),
            pl.BlockSpec((1, S, H, E), lambda b: (b, 0, 0, 0)),
            pl.BlockSpec((1, S, H, E), lambda b: (b, 0, 0, 0)),
            pl.BlockSpec((1, S, E, S), lambda b: (b, 0, 0, 0)),
            pl.BlockSpec((1, S, S), lambda b: (b, 0, 0)),
            pl.BlockSpec((E, Dh), lambda b: (0, 0)),
        ],
        out_specs=pl.BlockSpec((1, S, D), lambda b: (b, 0, 0)),
        compiler_params=pltpu.CompilerParams(dimension_semantics=("parallel",)),
        cost_estimate=pl.CostEstimate(flops=flops, transcendentals=trans,
                                      bytes_accessed=bytes_accessed),
    )(q_h, k_h, v_h, qe, ke, oh, bias, ev_emb)


# ----------------------------- Vocab head (LN + x @ emb^T + bias + mask), vocab-tiled -----------------------------

def _head_kernel(x_ref, g_ref, b_ref, emb_ref, ob_ref, m_ref, o_ref, *, eps):
    xn = _ln(x_ref[...].astype(jnp.float32), g_ref[...], b_ref[...], eps)
    # Contract against the emb tile on its second axis (no emb.T materialization in HBM).
    y = jnp.einsum('nd,vd->nv', xn.astype(jnp.bfloat16), emb_ref[...],
                   preferred_element_type=jnp.float32) + ob_ref[...]
    o_ref[...] = jnp.where(m_ref[...] == 0, _NEG, y)


def head_vocab(x, g, b, emb_bf16, out_bias, mask_output, eps=_LN_EPS):
    Bz, D = x.shape
    V = emb_bf16.shape[0]
    bn = _vocab_block(V)
    return pl.pallas_call(
        functools.partial(_head_kernel, eps=eps),
        out_shape=jax.ShapeDtypeStruct((Bz, V), jnp.float32),
        grid=(V // bn,),
        in_specs=[pl.BlockSpec((Bz, D), lambda i: (0, 0)),
                  pl.BlockSpec((1, D), lambda i: (0, 0)),
                  pl.BlockSpec((1, D), lambda i: (0, 0)),
                  pl.BlockSpec((bn, D), lambda i: (i, 0)),
                  pl.BlockSpec((1, bn), lambda i: (0, i)),
                  pl.BlockSpec((Bz, bn), lambda i: (0, i))],
        out_specs=pl.BlockSpec((Bz, bn), lambda i: (0, i)),
        compiler_params=pltpu.CompilerParams(dimension_semantics=("parallel",)),
    )(x, g.reshape(1, D), b.reshape(1, D), emb_bf16,
      out_bias.reshape(1, V).astype(jnp.float32), mask_output.astype(jnp.int32))


# ----------------------------- Parameters -----------------------------

def init_params(key, vocab_size, hidden_dim, heads, trans_layers, times):
    D = hidden_dim
    dh = D // heads

    def normal(k, shape):
        return 0.02 * jax.random.normal(k, shape, dtype=jnp.float32)

    keys = jax.random.split(key, 8 + trans_layers)
    params = {
        "node_embedding": normal(keys[0], (vocab_size, D)),   # HyperGraph.node_embedding
        "edge_query_emb": normal(keys[1], (_NUM_EDGE_LABELS, dh)),
        "edge_key_emb": normal(keys[2], (_NUM_EDGE_LABELS, dh)),
        "edge_value_emb": normal(keys[3], (_NUM_EDGE_LABELS, dh)),
        "input_norm_g": jnp.ones((D,), jnp.float32),
        "input_norm_b": jnp.zeros((D,), jnp.float32),
        "output_norm_g": jnp.ones((D,), jnp.float32),
        "output_norm_b": jnp.zeros((D,), jnp.float32),
        "out_lin_w": normal(keys[4], (D, D)),
        "out_lin_b": jnp.zeros((D,), jnp.float32),
        "output_bias": jnp.zeros((vocab_size,), jnp.float32),
        "layers": [],
    }
    for l in range(trans_layers):
        lk = jax.random.split(keys[8 + l], 6)
        params["layers"].append({
            "q_w": normal(lk[0], (D, D)), "q_b": jnp.zeros((D,), jnp.float32),
            "k_w": normal(lk[1], (D, D)), "k_b": jnp.zeros((D,), jnp.float32),
            "v_w": normal(lk[2], (D, D)), "v_b": jnp.zeros((D,), jnp.float32),
            "o_w": normal(lk[3], (D, D)), "o_b": jnp.zeros((D,), jnp.float32),
            "na_g": jnp.ones((D,), jnp.float32), "na_b": jnp.zeros((D,), jnp.float32),
            "f1_w": normal(lk[4], (D, times * D)), "f1_b": jnp.zeros((times * D,), jnp.float32),
            "f2_w": normal(lk[5], (times * D, D)), "f2_b": jnp.zeros((D,), jnp.float32),
            "nf_g": jnp.ones((D,), jnp.float32), "nf_b": jnp.zeros((D,), jnp.float32),
        })
    return params


def prepare_params(params, heads):
    """One-time weight prep (hoisted out of the forward): fused QKV+QE+KE weights, scale folding,
    14x14 t4 table, bf16 casts."""
    D = params["out_lin_w"].shape[0]
    H = heads
    Dh = D // H
    E = _NUM_EDGE_LABELS
    scale = 1.0 / math.sqrt(Dh)

    eq = params["edge_query_emb"]          # [14, Dh]
    ek = params["edge_key_emb"]            # [14, Dh]
    ev = params["edge_value_emb"]          # [14, Dh]
    eq_s = eq * scale                      # scale folded into edge_query (covers t3 and t4)

    prep = {
        "emb": params["node_embedding"],
        "emb_bf16": params["node_embedding"].astype(jnp.bfloat16),
        "t4_table": eq_s @ ek.T,           # [14, 14] f32, t4[q,k] = table[lab[k,q], lab[q,k]]
        "ev_emb": ev.astype(jnp.bfloat16),
        "input_norm_g": params["input_norm_g"], "input_norm_b": params["input_norm_b"],
        "output_norm_g": params["output_norm_g"], "output_norm_b": params["output_norm_b"],
        "out_lin_w": params["out_lin_w"].astype(jnp.bfloat16),
        "out_lin_b": params["out_lin_b"],
        "output_bias": params["output_bias"],
        "layers": [],
    }
    for lp in params["layers"]:
        wq_s = lp["q_w"] * scale           # scale folded into Q projection (covers t1 and t2)
        bq_s = lp["q_b"] * scale
        # QE[s,h,e] = sum_d q_proj[s,h,d] * ek[e,d]  -> extra columns of the fused projection.
        w_qe = jnp.einsum('dhk,ek->dhe', wq_s.reshape(D, H, Dh), ek).reshape(D, H * E)
        b_qe = jnp.einsum('hk,ek->he', bq_s.reshape(H, Dh), ek).reshape(H * E)
        # KE[s,h,e] = sum_d k_proj[s,h,d] * (eq*scale)[e,d]
        w_ke = jnp.einsum('dhk,ek->dhe', lp["k_w"].reshape(D, H, Dh), eq_s).reshape(D, H * E)
        b_ke = jnp.einsum('hk,ek->he', lp["k_b"].reshape(H, Dh), eq_s).reshape(H * E)

        w_all = jnp.concatenate([wq_s, lp["k_w"], lp["v_w"], w_qe, w_ke],
                                axis=1).astype(jnp.bfloat16)             # [D, 3D + 2*H*14]
        b_all = jnp.concatenate([bq_s, lp["k_b"], lp["v_b"], b_qe, b_ke],
                                axis=0).astype(jnp.float32)

        prep["layers"].append({
            "w_all": w_all, "b_all": b_all,
            "o_w": lp["o_w"].astype(jnp.bfloat16), "o_b": lp["o_b"],
            "na_g": lp["na_g"], "na_b": lp["na_b"],
            "f1_w": lp["f1_w"].astype(jnp.bfloat16), "f1_b": lp["f1_b"],
            "f2_w": lp["f2_w"].astype(jnp.bfloat16), "f2_b": lp["f2_b"],
            "nf_g": lp["nf_g"], "nf_b": lp["nf_b"],
        })
    return prep


# ----------------------------- Forward pass -----------------------------

def transformer_forward(prep, input_ids, input_mask, mask_position, mask_output,
                        edge_labels, heads):
    emb = prep["emb"]                              # use_hypergraph=False path
    B, S = input_ids.shape
    V, D = emb.shape
    H = heads
    Dh = D // H
    E = _NUM_EDGE_LABELS
    HE = H * E

    # embedding lookup + input LayerNorm (dropout = identity at inference)
    x = jnp.take(emb, input_ids, axis=0).reshape(B * S, D)
    x = layernorm(x, prep["input_norm_g"], prep["input_norm_b"])

    # Label-derived data: computed ONCE and reused by every layer.
    lab = edge_labels                                                     # [B, S, S] int
    oh_t = (lab[:, :, None, :] ==
            jnp.arange(E, dtype=lab.dtype)[None, None, :, None]).astype(jnp.bfloat16)  # [B,S,14,S]
    lab_t = jnp.swapaxes(lab, 1, 2)
    t4 = prep["t4_table"][lab_t, lab]                                     # [B,S,S] f32, scaled
    # Additive bias: t4 term + mask fill (remove_mask=False).  Masked positions underflow to
    # probability 0 after softmax exactly as with masked_fill (fully-masked rows excluded).
    bias = t4 + jnp.where(input_mask == 0, _NEG, 0.0).astype(jnp.float32)

    for lp in prep["layers"]:
        # One fused projection: [Q*scale | K | V | QE | KE]
        proj = linear(x, lp["w_all"], lp["b_all"], out_dtype=jnp.bfloat16)
        proj = proj.reshape(B, S, 3 * D + 2 * HE)
        q_s = proj[..., 0 * D:1 * D].reshape(B, S, H, Dh)
        k_s = proj[..., 1 * D:2 * D].reshape(B, S, H, Dh)
        v_s = proj[..., 2 * D:3 * D].reshape(B, S, H, Dh)
        qe = proj[..., 3 * D:3 * D + HE].reshape(B, S, H, E)
        ke = proj[..., 3 * D + HE:].reshape(B, S, H, E)
        # TODO(synk): emit head-leading Q/K/V directly from the projection kernel's out_specs.
        q_h = jnp.transpose(q_s, (0, 2, 1, 3))                            # [B, H, S, Dh]
        k_h = jnp.transpose(k_s, (0, 2, 1, 3))
        v_h = jnp.transpose(v_s, (0, 2, 1, 3))

        attn = edge_attention(q_h, k_h, v_h, qe, ke, oh_t, bias, prep["ev_emb"])   # [B,S,D] bf16
        x = proj_add_layernorm(attn.reshape(B * S, D), x,
                               lp["o_w"], lp["o_b"], lp["na_g"], lp["na_b"])
        x = ffn_add_layernorm(x, lp["f1_w"], lp["f1_b"], lp["f2_w"], lp["f2_b"],
                              lp["nf_g"], lp["nf_b"])

    x = x.reshape(B, S, D)
    x_sel = x[jnp.arange(B), mask_position]                  # [B, D] gather (XLA glue)
    xo = linear(x_sel, prep["out_lin_w"], prep["out_lin_b"])
    # TODO(synk): exact erf GELU kept as XLA glue on a [B,D] tensor (no guaranteed erf lowering in Mosaic).
    xo = jax.nn.gelu(xo, approximate=False)
    return head_vocab(xo, prep["output_norm_g"], prep["output_norm_b"],
                      prep["emb_bf16"], prep["output_bias"], mask_output)


# ----------------------------- Main -----------------------------

if __name__ == "__main__":
    B, S = 2, 8
    vocab_size, hidden_dim, trans_heads, trans_layers, times = 16, 32, 4, 2, 2

    key = jax.random.PRNGKey(0)
    kp, k1, k2, k3, k4, k5 = jax.random.split(key, 6)

    params = init_params(kp, vocab_size, hidden_dim, trans_heads, trans_layers, times)
    prep = prepare_params(params, trans_heads)     # one-time weight prep, outside the jitted forward

    input_ids = jax.random.randint(k1, (B, S), 0, vocab_size, dtype=jnp.int32)
    input_mask = (jax.random.uniform(k2, (B, S, S)) > 0.2).astype(jnp.int32)
    # no fully-masked rows (matches how the reference is used; fully-masked rows would give a
    # uniform average after softmax over -100000 scores)
    input_mask = jnp.maximum(input_mask, jnp.eye(S, dtype=jnp.int32)[None])
    mask_position = jax.random.randint(k3, (B,), 0, S, dtype=jnp.int32)
    mask_output = (jax.random.uniform(k4, (B, vocab_size)) > 0.3).astype(jnp.int32)
    edge_labels = jax.random.randint(k5, (B, S, S), 0, _NUM_EDGE_LABELS, dtype=jnp.int32)

    fwd = jax.jit(functools.partial(transformer_forward, heads=trans_heads))
    y = fwd(prep, input_ids, input_mask, mask_position, mask_output, edge_labels)
    jax.block_until_ready(y)
    assert y.shape == (B, vocab_size)
    print("KERNEL_OK")
</pallas_src>

<mosaic_0001>
module attributes {stable_mosaic.version = 11 : i64} {
  func.func @_linear_kernel(%arg0: i32, %arg1: memref<8x32xf32, #tpu.memory_space<vmem>>, %arg2: memref<32x208xbf16, #tpu.memory_space<vmem>>, %arg3: memref<1x208xf32, #tpu.memory_space<vmem>>, %arg4: memref<8x208xbf16, #tpu.memory_space<vmem>>) attributes {dimension_semantics = [#tpu.dimension_semantics<parallel>], iteration_bounds = array<i64: 2>, scalar_prefetch = 0 : i64, scratch_operands = 0 : i64, tpu.core_type = #tpu.core_type<tc>, window_params = [{transform_indices = @transform_0, window_bounds = array<i64: 8, 32>}, {pipeline_mode = #tpu.pipeline_mode<synchronous>, transform_indices = @transform_1, window_bounds = array<i64: 32, 208>}, {pipeline_mode = #tpu.pipeline_mode<synchronous>, transform_indices = @transform_2, window_bounds = array<i64: 1, 208>}, {transform_indices = @transform_3, window_bounds = array<i64: 8, 208>}]} {
    %c0 = arith.constant 0 : index
    %c0_0 = arith.constant 0 : index
    %0 = vector.load %arg1[%c0, %c0_0] : memref<8x32xf32, #tpu.memory_space<vmem>>, vector<8x32xf32>
    %1 = arith.truncf %0 : vector<8x32xf32> to vector<8x32xbf16>
    %c0_1 = arith.constant 0 : index
    %c0_2 = arith.constant 0 : index
    %2 = vector.load %arg2[%c0_1, %c0_2] : memref<32x208xbf16, #tpu.memory_space<vmem>>, vector<32x208xbf16>
    %cst = arith.constant dense<0.000000e+00> : vector<8x208xf32>
    %3 = tpu.matmul %1, %2, %cst {dimension_numbers = #tpu.dot_dimension_numbers<[1], [0], [0], [1], [0, 0, 1, 1], [], []>} : vector<8x32xbf16>, vector<32x208xbf16>, vector<8x208xf32> -> vector<8x208xf32>
    %c0_3 = arith.constant 0 : index
    %c0_4 = arith.constant 0 : index
    %4 = vector.load %arg3[%c0_3, %c0_4] : memref<1x208xf32, #tpu.memory_space<vmem>>, vector<1x208xf32>
    %5 = vector.broadcast %4 : vector<1x208xf32> to vector<8x208xf32>
    %6 = arith.addf %3, %5 : vector<8x208xf32>
    %7 = arith.truncf %6 : vector<8x208xf32> to vector<8x208xbf16>
    %c0_5 = arith.constant 0 : index
    %c0_6 = arith.constant 0 : index
    %8 = vector.load %arg4[%c0_5, %c0_6] : memref<8x208xbf16, #tpu.memory_space<vmem>>, vector<8x208xbf16>
    tpu.vector_store %arg4[%c0_5, %c0_6], %7 {strides = array<i32>} : memref<8x208xbf16, #tpu.memory_space<vmem>>, vector<8x208xbf16>,
    return
  }
  func.func @transform_0(%arg0: i32) -> (i32, i32) {
    %c0_i32 = arith.constant 0 : i32
    %c0_i32_0 = arith.constant 0 : i32
    return %arg0, %c0_i32 : i32, i32
  }
  func.func @transform_1(%arg0: i32) -> (i32, i32) {
    %c0_i32 = arith.constant 0 : i32
    %c0_i32_0 = arith.constant 0 : i32
    %c0_i32_1 = arith.constant 0 : i32
    return %c0_i32, %c0_i32_0 : i32, i32
  }
  func.func @transform_2(%arg0: i32) -> (i32, i32) {
    %c0_i32 = arith.constant 0 : i32
    %c0_i32_0 = arith.constant 0 : i32
    %c0_i32_1 = arith.constant 0 : i32
    return %c0_i32, %c0_i32_0 : i32, i32
  }
  func.func @transform_3(%arg0: i32) -> (i32, i32) {
    %c0_i32 = arith.constant 0 : i32
    %c0_i32_0 = arith.constant 0 : i32
    return %arg0, %c0_i32 : i32, i32
  }
}

module attributes {stable_mosaic.version = 11 : i64} {
  func.func @_layernorm_kernel(%arg0: i32, %arg1: memref<8x32xf32, #tpu.memory_space<vmem>>, %arg2: memref<1x32xf32, #tpu.memory_space<vmem>>, %arg3: memref<1x32xf32, #tpu.memory_space<vmem>>, %arg4: memref<8x32xf32, #tpu.memory_space<vmem>>) attributes {dimension_semantics = [#tpu.dimension_semantics<parallel>], iteration_bounds = array<i64: 2>, scalar_prefetch = 0 : i64, scratch_operands = 0 : i64, tpu.core_type = #tpu.core_type<tc>, window_params = [{transform_indices = @transform_0, window_bounds = array<i64: 8, 32>}, {pipeline_mode = #tpu.pipeline_mode<synchronous>, transform_indices = @transform_1, window_bounds = array<i64: 1, 32>}, {pipeline_mode = #tpu.pipeline_mode<synchronous>, transform_indices = @transform_2, window_bounds = array<i64: 1, 32>}, {transform_indices = @transform_3, window_bounds = array<i64: 8, 32>}]} {
    %c0 = arith.constant 0 : index
    %c0_0 = arith.constant 0 : index
    %0 = vector.load %arg1[%c0, %c0_0] : memref<8x32xf32, #tpu.memory_space<vmem>>, vector<8x32xf32>
    %c0_1 = arith.constant 0 : index
    %c0_2 = arith.constant 0 : index
    %1 = vector.load %arg2[%c0_1, %c0_2] : memref<1x32xf32, #tpu.memory_space<vmem>>, vector<1x32xf32>
    %c0_3 = arith.constant 0 : index
    %c0_4 = arith.constant 0 : index
    %2 = vector.load %arg3[%c0_3, %c0_4] : memref<1x32xf32, #tpu.memory_space<vmem>>, vector<1x32xf32>
    %cst = arith.constant dense<0.000000e+00> : vector<8xf32>
    %3 = vector.multi_reduction <add>, %0, %cst [1] : vector<8x32xf32> to vector<8xf32>
    %4 = vector.shape_cast %3 : vector<8xf32> to vector<8x1xf32>
    %cst_5 = arith.constant 3.200000e+01 : f32
    %5 = vector.broadcast %cst_5 : f32 to vector<8x1xf32>
    %6 = arith.divf %4, %5 : vector<8x1xf32>
    %7 = vector.broadcast %6 : vector<8x1xf32> to vector<8x32xf32>
    %8 = arith.subf %0, %7 : vector<8x32xf32>
    %9 = arith.mulf %8, %8 : vector<8x32xf32>
    %cst_6 = arith.constant dense<0.000000e+00> : vector<8xf32>
    %10 = vector.multi_reduction <add>, %9, %cst_6 [1] : vector<8x32xf32> to vector<8xf32>
    %11 = vector.shape_cast %10 : vector<8xf32> to vector<8x1xf32>
    %cst_7 = arith.constant 3.200000e+01 : f32
    %12 = vector.broadcast %cst_7 : f32 to vector<8x1xf32>
    %13 = arith.divf %11, %12 : vector<8x1xf32>
    %cst_8 = arith.constant 9.99999974E-6 : f32
    %14 = vector.broadcast %cst_8 : f32 to vector<8x1xf32>
    %15 = arith.addf %13, %14 : vector<8x1xf32>
    %16 = math.rsqrt %15 : vector<8x1xf32>
    %17 = vector.broadcast %16 : vector<8x1xf32> to vector<8x32xf32>
    %18 = arith.mulf %8, %17 : vector<8x32xf32>
    %19 = vector.broadcast %1 : vector<1x32xf32> to vector<8x32xf32>
    %20 = arith.mulf %18, %19 : vector<8x32xf32>
    %21 = vector.broadcast %2 : vector<1x32xf32> to vector<8x32xf32>
    %22 = arith.addf %20, %21 : vector<8x32xf32>
    %c0_9 = arith.constant 0 : index
    %c0_10 = arith.constant 0 : index
    %23 = vector.load %arg4[%c0_9, %c0_10] : memref<8x32xf32, #tpu.memory_space<vmem>>, vector<8x32xf32>
    tpu.vector_store %arg4[%c0_9, %c0_10], %22 {strides = array<i32>} : memref<8x32xf32, #tpu.memory_space<vmem>>, vector<8x32xf32>,
    return
  }
  func.func @transform_0(%arg0: i32) -> (i32, i32) {
    %c0_i32 = arith.constant 0 : i32
    %c0_i32_0 = arith.constant 0 : i32
    return %arg0, %c0_i32 : i32, i32
  }
  func.func @transform_1(%arg0: i32) -> (i32, i32) {
    %c0_i32 = arith.constant 0 : i32
    %c0_i32_0 = arith.constant 0 : i32
    %c0_i32_1 = arith.constant 0 : i32
    return %c0_i32, %c0_i32_0 : i32, i32
  }
  func.func @transform_2(%arg0: i32) -> (i32, i32) {
    %c0_i32 = arith.constant 0 : i32
    %c0_i32_0 = arith.constant 0 : i32
    %c0_i32_1 = arith.constant 0 : i32
    return %c0_i32, %c0_i32_0 : i32, i32
  }
  func.func @transform_3(%arg0: i32) -> (i32, i32) {
    %c0_i32 = arith.constant 0 : i32
    %c0_i32_0 = arith.constant 0 : i32
    return %arg0, %c0_i32 : i32, i32
  }
}

module attributes {stable_mosaic.version = 11 : i64} {
  func.func @_edge_attn_kernel(%arg0: i32, %arg1: memref<1x4x8x8xbf16, #tpu.memory_space<vmem>>, %arg2: memref<1x4x8x8xbf16, #tpu.memory_space<vmem>>, %arg3: memref<1x4x8x8xbf16, #tpu.memory_space<vmem>>, %arg4: memref<1x8x4x14xbf16, #tpu.memory_space<vmem>>, %arg5: memref<1x8x4x14xbf16, #tpu.memory_space<vmem>>, %arg6: memref<1x8x14x8xbf16, #tpu.memory_space<vmem>>, %arg7: memref<1x8x8xf32, #tpu.memory_space<vmem>>, %arg8: memref<14x8xbf16, #tpu.memory_space<vmem>>, %arg9: memref<1x8x32xbf16, #tpu.memory_space<vmem>>) attributes {dimension_semantics = [#tpu.dimension_semantics<parallel>], iteration_bounds = array<i64: 2>, scalar_prefetch = 0 : i64, scratch_operands = 0 : i64, tpu.core_type = #tpu.core_type<tc>, window_params = [{transform_indices = @transform_0, window_bounds = array<i64: 1, 4, 8, 8>}, {transform_indices = @transform_1, window_bounds = array<i64: 1, 4, 8, 8>}, {transform_indices = @transform_2, window_bounds = array<i64: 1, 4, 8, 8>}, {transform_indices = @transform_3, window_bounds = array<i64: 1, 8, 4, 14>}, {transform_indices = @transform_4, window_bounds = array<i64: 1, 8, 4, 14>}, {transform_indices = @transform_5, window_bounds = array<i64: 1, 8, 14, 8>}, {transform_indices = @transform_6, window_bounds = array<i64: 1, 8, 8>}, {pipeline_mode = #tpu.pipeline_mode<synchronous>, transform_indices = @transform_7, window_bounds = array<i64: 14, 8>}, {transform_indices = @transform_8, window_bounds = array<i64: 1, 8, 32>}]} {
    %c0 = arith.constant 0 : index
    %c0_0 = arith.constant 0 : index
    %c0_1 = arith.constant 0 : index
    %c0_2 = arith.constant 0 : index
    %0 = vector.load %arg1[%c0, %c0_0, %c0_1, %c0_2] : memref<1x4x8x8xbf16, #tpu.memory_space<vmem>>, vector<1x4x8x8xbf16>
    %1 = vector.shape_cast %0 : vector<1x4x8x8xbf16> to vector<4x8x8xbf16>
    %c0_3 = arith.constant 0 : index
    %c0_4 = arith.constant 0 : index
    %c0_5 = arith.constant 0 : index
    %c0_6 = arith.constant 0 : index
    %2 = vector.load %arg2[%c0_3, %c0_4, %c0_5, %c0_6] : memref<1x4x8x8xbf16, #tpu.memory_space<vmem>>, vector<1x4x8x8xbf16>
    %3 = vector.shape_cast %2 : vector<1x4x8x8xbf16> to vector<4x8x8xbf16>
    %c0_7 = arith.constant 0 : index
    %c0_8 = arith.constant 0 : index
    %c0_9 = arith.constant 0 : index
    %c0_10 = arith.constant 0 : index
    %4 = vector.load %arg3[%c0_7, %c0_8, %c0_9, %c0_10] : memref<1x4x8x8xbf16, #tpu.memory_space<vmem>>, vector<1x4x8x8xbf16>
    %5 = vector.shape_cast %4 : vector<1x4x8x8xbf16> to vector<4x8x8xbf16>
    %c0_11 = arith.constant 0 : index
    %c0_12 = arith.constant 0 : index
    %c0_13 = arith.constant 0 : index
    %c0_14 = arith.constant 0 : index
    %6 = vector.load %arg4[%c0_11, %c0_12, %c0_13, %c0_14] : memref<1x8x4x14xbf16, #tpu.memory_space<vmem>>, vector<1x8x4x14xbf16>
    %7 = vector.shape_cast %6 : vector<1x8x4x14xbf16> to vector<8x4x14xbf16>
    %c0_15 = arith.constant 0 : index
    %c0_16 = arith.constant 0 : index
    %c0_17 = arith.constant 0 : index
    %c0_18 = arith.constant 0 : index
    %8 = vector.load %arg5[%c0_15, %c0_16, %c0_17, %c0_18] : memref<1x8x4x14xbf16, #tpu.memory_space<vmem>>, vector<1x8x4x14xbf16>
    %9 = vector.shape_cast %8 : vector<1x8x4x14xbf16> to vector<8x4x14xbf16>
    %c0_19 = arith.constant 0 : index
    %c0_20 = arith.constant 0 : index
    %c0_21 = arith.constant 0 : index
    %c0_22 = arith.constant 0 : index
    %10 = vector.load %arg6[%c0_19, %c0_20, %c0_21, %c0_22] : memref<1x8x14x8xbf16, #tpu.memory_space<vmem>>, vector<1x8x14x8xbf16>
    %11 = vector.shape_cast %10 : vector<1x8x14x8xbf16> to vector<8x14x8xbf16>
    %c0_23 = arith.constant 0 : index
    %c0_24 = arith.constant 0 : index
    %c0_25 = arith.constant 0 : index
    %12 = vector.load %arg7[%c0_23, %c0_24, %c0_25] : memref<1x8x8xf32, #tpu.memory_space<vmem>>, vector<1x8x8xf32>
    %13 = vector.shape_cast %12 : vector<1x8x8xf32> to vector<8x8xf32>
    %c0_26 = arith.constant 0 : index
    %c0_27 = arith.constant 0 : index
    %14 = vector.load %arg8[%c0_26, %c0_27] : memref<14x8xbf16, #tpu.memory_space<vmem>>, vector<14x8xbf16>
    "tpu.trace_start"() <{level = 10 : i32, message = "hqd,hkd->hqk"}> : () -> ()
    %cst = arith.constant dense<0.000000e+00> : vector<4x8x8xf32>
    %15 = tpu.matmul %1, %3, %cst {dimension_numbers = #tpu.dot_dimension_numbers<[2], [2], [1], [1], [0, 0, 0, 1, 1, 1], [0], [0]>} : vector<4x8x8xbf16>, vector<4x8x8xbf16>, vector<4x8x8xf32> -> vector<4x8x8xf32>
    "tpu.trace_stop"() : () -> ()
    "tpu.trace_start"() <{level = 10 : i32, message = "qhe,qek->qhk"}> : () -> ()
    %cst_28 = arith.constant dense<0.000000e+00> : vector<8x4x8xf32>
    %16 = tpu.matmul %7, %11, %cst_28 {dimension_numbers = #tpu.dot_dimension_numbers<[2], [1], [1], [2], [0, 0, 0, 1, 1, 2], [0], [0]>} : vector<8x4x14xbf16>, vector<8x14x8xbf16>, vector<8x4x8xf32> -> vector<8x4x8xf32>
    "tpu.trace_stop"() : () -> ()
    "tpu.trace_start"() <{level = 10 : i32, message = "khe,keq->khq"}> : () -> ()
    %cst_29 = arith.constant dense<0.000000e+00> : vector<8x4x8xf32>
    %17 = tpu.matmul %9, %11, %cst_29 {dimension_numbers = #tpu.dot_dimension_numbers<[2], [1], [1], [2], [0, 0, 0, 1, 1, 2], [0], [0]>} : vector<8x4x14xbf16>, vector<8x14x8xbf16>, vector<8x4x8xf32> -> vector<8x4x8xf32>
    "tpu.trace_stop"() : () -> ()
    %18 = tpu.transpose %16, [1, 0, 2] : vector<8x4x8xf32> -> vector<4x8x8xf32>
    %19 = tpu.transpose %17, [1, 0, 2] : vector<8x4x8xf32> -> vector<4x8x8xf32>
    %20 = tpu.transpose %19, [0, 2, 1] : vector<4x8x8xf32> -> vector<4x8x8xf32>
    %21 = arith.addf %15, %18 : vector<4x8x8xf32>
    %22 = arith.addf %21, %20 : vector<4x8x8xf32>
    %23 = vector.shape_cast %13 : vector<8x8xf32> to vector<1x8x8xf32>
    %24 = vector.broadcast %23 : vector<1x8x8xf32> to vector<4x8x8xf32>
    %25 = arith.addf %22, %24 : vector<4x8x8xf32>
    %cst_30 = arith.constant dense<0xFF800000> : vector<4x8xf32>
    %26 = vector.multi_reduction <maximumf>, %25, %cst_30 [2] : vector<4x8x8xf32> to vector<4x8xf32>
    %27 = vector.shape_cast %26 : vector<4x8xf32> to vector<4x8x1xf32>
    %28 = vector.broadcast %27 : vector<4x8x1xf32> to vector<4x8x8xf32>
    %29 = arith.subf %25, %28 : vector<4x8x8xf32>
    %30 = math.exp %29 : vector<4x8x8xf32>
    %cst_31 = arith.constant dense<0.000000e+00> : vector<4x8xf32>
    %31 = vector.multi_reduction <add>, %30, %cst_31 [2] : vector<4x8x8xf32> to vector<4x8xf32>
    %32 = vector.shape_cast %31 : vector<4x8xf32> to vector<4x8x1xf32>
    %33 = tpu.reciprocal %32 {approx = true} : vector<4x8x1xf32> -> vector<4x8x1xf32>
    %34 = vector.broadcast %33 : vector<4x8x1xf32> to vector<4x8x8xf32>
    %35 = arith.mulf %30, %34 : vector<4x8x8xf32>
    %36 = arith.truncf %35 : vector<4x8x8xf32> to vector<4x8x8xbf16>
    %37 = tpu.transpose %35, [1, 0, 2] : vector<4x8x8xf32> -> vector<8x4x8xf32>
    %38 = arith.truncf %37 : vector<8x4x8xf32> to vector<8x4x8xbf16>
    "tpu.trace_start"() <{level = 10 : i32, message = "hqk,hkd->hqd"}> : () -> ()
    %cst_32 = arith.constant dense<0.000000e+00> : vector<4x8x8xf32>
    %39 = tpu.matmul %36, %5, %cst_32 {dimension_numbers = #tpu.dot_dimension_numbers<[2], [1], [1], [2], [0, 0, 0, 1, 1, 2], [0], [0]>} : vector<4x8x8xbf16>, vector<4x8x8xbf16>, vector<4x8x8xf32> -> vector<4x8x8xf32>
    "tpu.trace_stop"() : () -> ()
    "tpu.trace_start"() <{level = 10 : i32, message = "qhk,qek->qhe"}> : () -> ()
    %cst_33 = arith.constant dense<0.000000e+00> : vector<8x4x14xf32>
    %40 = tpu.matmul %38, %11, %cst_33 {dimension_numbers = #tpu.dot_dimension_numbers<[2], [2], [1], [1], [0, 0, 0, 1, 1, 1], [0], [0]>} : vector<8x4x8xbf16>, vector<8x14x8xbf16>, vector<8x4x14xf32> -> vector<8x4x14xf32>
    "tpu.trace_stop"() : () -> ()
    %41 = vector.extract_strided_slice %40 {offsets = [0, 0, 0], sizes = [8, 1, 14], strides = [1, 1, 1]} : vector<8x4x14xf32> to vector<8x1x14xf32>
    %42 = vector.shape_cast %41 : vector<8x1x14xf32> to vector<8x14xf32>
    %43 = arith.truncf %42 : vector<8x14xf32> to vector<8x14xbf16>
    %cst_34 = arith.constant dense<0.000000e+00> : vector<8x8xf32>
    %44 = tpu.matmul %43, %14, %cst_34 {dimension_numbers = #tpu.dot_dimension_numbers<[1], [0], [0], [1], [0, 0, 1, 1], [], []>} : vector<8x14xbf16>, vector<14x8xbf16>, vector<8x8xf32> -> vector<8x8xf32>
    %45 = vector.extract_strided_slice %39 {offsets = [0, 0, 0], sizes = [1, 8, 8], strides = [1, 1, 1]} : vector<4x8x8xf32> to vector<1x8x8xf32>
    %46 = vector.shape_cast %45 : vector<1x8x8xf32> to vector<8x8xf32>
    %47 = arith.addf %46, %44 : vector<8x8xf32>
    %48 = arith.truncf %47 : vector<8x8xf32> to vector<8x8xbf16>
    %c0_35 = arith.constant 0 : index
    %c0_36 = arith.constant 0 : index
    %c0_37 = arith.constant 0 : index
    %49 = vector.load %arg9[%c0_35, %c0_36, %c0_37] : memref<1x8x32xbf16, #tpu.memory_space<vmem>>, vector<1x8x8xbf16>
    %50 = vector.shape_cast %49 : vector<1x8x8xbf16> to vector<8x8xbf16>
    %51 = vector.shape_cast %48 : vector<8x8xbf16> to vector<1x8x8xbf16>
    tpu.vector_store %arg9[%c0_35, %c0_36, %c0_37], %51 {strides = array<i32>} : memref<1x8x32xbf16, #tpu.memory_space<vmem>>, vector<1x8x8xbf16>,
    %52 = vector.extract_strided_slice %40 {offsets = [0, 1, 0], sizes = [8, 1, 14], strides = [1, 1, 1]} : vector<8x4x14xf32> to vector<8x1x14xf32>
    %53 = vector.shape_cast %52 : vector<8x1x14xf32> to vector<8x14xf32>
    %54 = arith.truncf %53 : vector<8x14xf32> to vector<8x14xbf16>
    %cst_38 = arith.constant dense<0.000000e+00> : vector<8x8xf32>
    %55 = tpu.matmul %54, %14, %cst_38 {dimension_numbers = #tpu.dot_dimension_numbers<[1], [0], [0], [1], [0, 0, 1, 1], [], []>} : vector<8x14xbf16>, vector<14x8xbf16>, vector<8x8xf32> -> vector<8x8xf32>
    %56 = vector.extract_strided_slice %39 {offsets = [1, 0, 0], sizes = [1, 8, 8], strides = [1, 1, 1]} : vector<4x8x8xf32> to vector<1x8x8xf32>
    %57 = vector.shape_cast %56 : vector<1x8x8xf32> to vector<8x8xf32>
    %58 = arith.addf %57, %55 : vector<8x8xf32>
    %59 = arith.truncf %58 : vector<8x8xf32> to vector<8x8xbf16>
    %c0_39 = arith.constant 0 : index
    %c0_40 = arith.constant 0 : index
    %c8 = arith.constant 8 : index
    %60 = vector.load %arg9[%c0_39, %c0_40, %c8] : memref<1x8x32xbf16, #tpu.memory_space<vmem>>, vector<1x8x8xbf16>
    %61 = vector.shape_cast %60 : vector<1x8x8xbf16> to vector<8x8xbf16>
    %62 = vector.shape_cast %59 : vector<8x8xbf16> to vector<1x8x8xbf16>
    tpu.vector_store %arg9[%c0_39, %c0_40, %c8], %62 {strides = array<i32>} : memref<1x8x32xbf16, #tpu.memory_space<vmem>>, vector<1x8x8xbf16>,
    %63 = vector.extract_strided_slice %40 {offsets = [0, 2, 0], sizes = [8, 1, 14], strides = [1, 1, 1]} : vector<8x4x14xf32> to vector<8x1x14xf32>
    %64 = vector.shape_cast %63 : vector<8x1x14xf32> to vector<8x14xf32>
    %65 = arith.truncf %64 : vector<8x14xf32> to vector<8x14xbf16>
    %cst_41 = arith.constant dense<0.000000e+00> : vector<8x8xf32>
    %66 = tpu.matmul %65, %14, %cst_41 {dimension_numbers = #tpu.dot_dimension_numbers<[1], [0], [0], [1], [0, 0, 1, 1], [], []>} : vector<8x14xbf16>, vector<14x8xbf16>, vector<8x8xf32> -> vector<8x8xf32>
    %67 = vector.extract_strided_slice %39 {offsets = [2, 0, 0], sizes = [1, 8, 8], strides = [1, 1, 1]} : vector<4x8x8xf32> to vector<1x8x8xf32>
    %68 = vector.shape_cast %67 : vector<1x8x8xf32> to vector<8x8xf32>
    %69 = arith.addf %68, %66 : vector<8x8xf32>
    %70 = arith.truncf %69 : vector<8x8xf32> to vector<8x8xbf16>
    %c0_42 = arith.constant 0 : index
    %c0_43 = arith.constant 0 : index
    %c16 = arith.constant 16 : index
    %71 = vector.load %arg9[%c0_42, %c0_43, %c16] : memref<1x8x32xbf16, #tpu.memory_space<vmem>>, vector<1x8x8xbf16>
    %72 = vector.shape_cast %71 : vector<1x8x8xbf16> to vector<8x8xbf16>
    %73 = vector.shape_cast %70 : vector<8x8xbf16> to vector<1x8x8xbf16>
    tpu.vector_store %arg9[%c0_42, %c0_43, %c16], %73 {strides = array<i32>} : memref<1x8x32xbf16, #tpu.memory_space<vmem>>, vector<1x8x8xbf16>,
    %74 = vector.extract_strided_slice %40 {offsets = [0, 3, 0], sizes = [8, 1, 14], strides = [1, 1, 1]} : vector<8x4x14xf32> to vector<8x1x14xf32>
    %75 = vector.shape_cast %74 : vector<8x1x14xf32> to vector<8x14xf32>
    %76 = arith.truncf %75 : vector<8x14xf32> to vector<8x14xbf16>
    %cst_44 = arith.constant dense<0.000000e+00> : vector<8x8xf32>
    %77 = tpu.matmul %76, %14, %cst_44 {dimension_numbers = #tpu.dot_dimension_numbers<[1], [0], [0], [1], [0, 0, 1, 1], [], []>} : vector<8x14xbf16>, vector<14x8xbf16>, vector<8x8xf32> -> vector<8x8xf32>
    %78 = vector.extract_strided_slice %39 {offsets = [3, 0, 0], sizes = [1, 8, 8], strides = [1, 1, 1]} : vector<4x8x8xf32> to vector<1x8x8xf32>
    %79 = vector.shape_cast %78 : vector<1x8x8xf32> to vector<8x8xf32>
    %80 = arith.addf %79, %77 : vector<8x8xf32>
    %81 = arith.truncf %80 : vector<8x8xf32> to vector<8x8xbf16>
    %c0_45 = arith.constant 0 : index
    %c0_46 = arith.constant 0 : index
    %c24 = arith.constant 24 : index
    %82 = vector.load %arg9[%c0_45, %c0_46, %c24] : memref<1x8x32xbf16, #tpu.memory_space<vmem>>, vector<1x8x8xbf16>
    %83 = vector.shape_cast %82 : vector<1x8x8xbf16> to vector<8x8xbf16>
    %84 = vector.shape_cast %81 : vector<8x8xbf16> to vector<1x8x8xbf16>
    tpu.vector_store %arg9[%c0_45, %c0_46, %c24], %84 {strides = array<i32>} : memref<1x8x32xbf16, #tpu.memory_space<vmem>>, vector<1x8x8xbf16>,
    return
  }
  func.func @transform_0(%arg0: i32) -> (i32, i32, i32, i32) {
    %c0_i32 = arith.constant 0 : i32
    %c0_i32_0 = arith.constant 0 : i32
    %c0_i32_1 = arith.constant 0 : i32
    %c0_i32_2 = arith.constant 0 : i32
    return %arg0, %c0_i32, %c0_i32_0, %c0_i32_1 : i32, i32, i32, i32
  }
  func.func @transform_1(%arg0: i32) -> (i32, i32, i32, i32) {
    %c0_i32 = arith.constant 0 : i32
    %c0_i32_0 = arith.constant 0 : i32
    %c0_i32_1 = arith.constant 0 : i32
    %c0_i32_2 = arith.constant 0 : i32
    return %arg0, %c0_i32, %c0_i32_0, %c0_i32_1 : i32, i32, i32, i32
  }
  func.func @transform_2(%arg0: i32) -> (i32, i32, i32, i32) {
    %c0_i32 = arith.constant 0 : i32
    %c0_i32_0 = arith.constant 0 : i32
    %c0_i32_1 = arith.constant 0 : i32
    %c0_i32_2 = arith.constant 0 : i32
    return %arg0, %c0_i32, %c0_i32_0, %c0_i32_1 : i32, i32, i32, i32
  }
  func.func @transform_3(%arg0: i32) -> (i32, i32, i32, i32) {
    %c0_i32 = arith.constant 0 : i32
    %c0_i32_0 = arith.constant 0 : i32
    %c0_i32_1 = arith.constant 0 : i32
    %c0_i32_2 = arith.constant 0 : i32
    return %arg0, %c0_i32, %c0_i32_0, %c0_i32_1 : i32, i32, i32, i32
  }
  func.func @transform_4(%arg0: i32) -> (i32, i32, i32, i32) {
    %c0_i32 = arith.constant 0 : i32
    %c0_i32_0 = arith.constant 0 : i32
    %c0_i32_1 = arith.constant 0 : i32
    %c0_i32_2 = arith.constant 0 : i32
    return %arg0, %c0_i32, %c0_i32_0, %c0_i32_1 : i32, i32, i32, i32
  }
  func.func @transform_5(%arg0: i32) -> (i32, i32, i32, i32) {
    %c0_i32 = arith.constant 0 : i32
    %c0_i32_0 = arith.constant 0 : i32
    %c0_i32_1 = arith.constant 0 : i32
    %c0_i32_2 = arith.constant 0 : i32
    return %arg0, %c0_i32, %c0_i32_0, %c0_i32_1 : i32, i32, i32, i32
  }
  func.func @transform_6(%arg0: i32) -> (i32, i32, i32) {
    %c0_i32 = arith.constant 0 : i32
    %c0_i32_0 = arith.constant 0 : i32
    %c0_i32_1 = arith.constant 0 : i32
    return %arg0, %c0_i32, %c0_i32_0 : i32, i32, i32
  }
  func.func @transform_7(%arg0: i32) -> (i32, i32) {
    %c0_i32 = arith.constant 0 : i32
    %c0_i32_0 = arith.constant 0 : i32
    %c0_i32_1 = arith.constant 0 : i32
    return %c0_i32, %c0_i32_0 : i32, i32
  }
  func.func @transform_8(%arg0: i32) -> (i32, i32, i32) {
    %c0_i32 = arith.constant 0 : i32
    %c0_i32_0 = arith.constant 0 : i32
    %c0_i32_1 = arith.constant 0 : i32
    return %arg0, %c0_i32, %c0_i32_0 : i32, i32, i32
  }
}

module attributes {stable_mosaic.version = 11 : i64} {
  func.func @_proj_add_ln_kernel(%arg0: i32, %arg1: memref<8x32xbf16, #tpu.memory_space<vmem>>, %arg2: memref<8x32xf32, #tpu.memory_space<vmem>>, %arg3: memref<32x32xbf16, #tpu.memory_space<vmem>>, %arg4: memref<1x32xf32, #tpu.memory_space<vmem>>, %arg5: memref<1x32xf32, #tpu.memory_space<vmem>>, %arg6: memref<1x32xf32, #tpu.memory_space<vmem>>, %arg7: memref<8x32xf32, #tpu.memory_space<vmem>>) attributes {dimension_semantics = [#tpu.dimension_semantics<parallel>], iteration_bounds = array<i64: 2>, scalar_prefetch = 0 : i64, scratch_operands = 0 : i64, tpu.core_type = #tpu.core_type<tc>, window_params = [{transform_indices = @transform_0, window_bounds = array<i64: 8, 32>}, {transform_indices = @transform_1, window_bounds = array<i64: 8, 32>}, {pipeline_mode = #tpu.pipeline_mode<synchronous>, transform_indices = @transform_2, window_bounds = array<i64: 32, 32>}, {pipeline_mode = #tpu.pipeline_mode<synchronous>, transform_indices = @transform_3, window_bounds = array<i64: 1, 32>}, {pipeline_mode = #tpu.pipeline_mode<synchronous>, transform_indices = @transform_4, window_bounds = array<i64: 1, 32>}, {pipeline_mode = #tpu.pipeline_mode<synchronous>, transform_indices = @transform_5, window_bounds = array<i64: 1, 32>}, {transform_indices = @transform_6, window_bounds = array<i64: 8, 32>}]} {
    %c0 = arith.constant 0 : index
    %c0_0 = arith.constant 0 : index
    %0 = vector.load %arg1[%c0, %c0_0] : memref<8x32xbf16, #tpu.memory_space<vmem>>, vector<8x32xbf16>
    %c0_1 = arith.constant 0 : index
    %c0_2 = arith.constant 0 : index
    %1 = vector.load %arg3[%c0_1, %c0_2] : memref<32x32xbf16, #tpu.memory_space<vmem>>, vector<32x32xbf16>
    %cst = arith.constant dense<0.000000e+00> : vector<8x32xf32>
    %2 = tpu.matmul %0, %1, %cst {dimension_numbers = #tpu.dot_dimension_numbers<[1], [0], [0], [1], [0, 0, 1, 1], [], []>} : vector<8x32xbf16>, vector<32x32xbf16>, vector<8x32xf32> -> vector<8x32xf32>
    %c0_3 = arith.constant 0 : index
    %c0_4 = arith.constant 0 : index
    %3 = vector.load %arg4[%c0_3, %c0_4] : memref<1x32xf32, #tpu.memory_space<vmem>>, vector<1x32xf32>
    %4 = vector.broadcast %3 : vector<1x32xf32> to vector<8x32xf32>
    %5 = arith.addf %2, %4 : vector<8x32xf32>
    %c0_5 = arith.constant 0 : index
    %c0_6 = arith.constant 0 : index
    %6 = vector.load %arg2[%c0_5, %c0_6] : memref<8x32xf32, #tpu.memory_space<vmem>>, vector<8x32xf32>
    %7 = arith.addf %6, %5 : vector<8x32xf32>
    %c0_7 = arith.constant 0 : index
    %c0_8 = arith.constant 0 : index
    %8 = vector.load %arg5[%c0_7, %c0_8] : memref<1x32xf32, #tpu.memory_space<vmem>>, vector<1x32xf32>
    %c0_9 = arith.constant 0 : index
    %c0_10 = arith.constant 0 : index
    %9 = vector.load %arg6[%c0_9, %c0_10] : memref<1x32xf32, #tpu.memory_space<vmem>>, vector<1x32xf32>
    %cst_11 = arith.constant dense<0.000000e+00> : vector<8xf32>
    %10 = vector.multi_reduction <add>, %7, %cst_11 [1] : vector<8x32xf32> to vector<8xf32>
    %11 = vector.shape_cast %10 : vector<8xf32> to vector<8x1xf32>
    %cst_12 = arith.constant 3.200000e+01 : f32
    %12 = vector.broadcast %cst_12 : f32 to vector<8x1xf32>
    %13 = arith.divf %11, %12 : vector<8x1xf32>
    %14 = vector.broadcast %13 : vector<8x1xf32> to vector<8x32xf32>
    %15 = arith.subf %7, %14 : vector<8x32xf32>
    %16 = arith.mulf %15, %15 : vector<8x32xf32>
    %cst_13 = arith.constant dense<0.000000e+00> : vector<8xf32>
    %17 = vector.multi_reduction <add>, %16, %cst_13 [1] : vector<8x32xf32> to vector<8xf32>
    %18 = vector.shape_cast %17 : vector<8xf32> to vector<8x1xf32>
    %cst_14 = arith.constant 3.200000e+01 : f32
    %19 = vector.broadcast %cst_14 : f32 to vector<8x1xf32>
    %20 = arith.divf %18, %19 : vector<8x1xf32>
    %cst_15 = arith.constant 9.99999974E-6 : f32
    %21 = vector.broadcast %cst_15 : f32 to vector<8x1xf32>
    %22 = arith.addf %20, %21 : vector<8x1xf32>
    %23 = math.rsqrt %22 : vector<8x1xf32>
    %24 = vector.broadcast %23 : vector<8x1xf32> to vector<8x32xf32>
    %25 = arith.mulf %15, %24 : vector<8x32xf32>
    %26 = vector.broadcast %8 : vector<1x32xf32> to vector<8x32xf32>
    %27 = arith.mulf %25, %26 : vector<8x32xf32>
    %28 = vector.broadcast %9 : vector<1x32xf32> to vector<8x32xf32>
    %29 = arith.addf %27, %28 : vector<8x32xf32>
    %c0_16 = arith.constant 0 : index
    %c0_17 = arith.constant 0 : index
    %30 = vector.load %arg7[%c0_16, %c0_17] : memref<8x32xf32, #tpu.memory_space<vmem>>, vector<8x32xf32>
    tpu.vector_store %arg7[%c0_16, %c0_17], %29 {strides = array<i32>} : memref<8x32xf32, #tpu.memory_space<vmem>>, vector<8x32xf32>,
    return
  }
  func.func @transform_0(%arg0: i32) -> (i32, i32) {
    %c0_i32 = arith.constant 0 : i32
    %c0_i32_0 = arith.constant 0 : i32
    return %arg0, %c0_i32 : i32, i32
  }
  func.func @transform_1(%arg0: i32) -> (i32, i32) {
    %c0_i32 = arith.constant 0 : i32
    %c0_i32_0 = arith.constant 0 : i32
    return %arg0, %c0_i32 : i32, i32
  }
  func.func @transform_2(%arg0: i32) -> (i32, i32) {
    %c0_i32 = arith.constant 0 : i32
    %c0_i32_0 = arith.constant 0 : i32
    %c0_i32_1 = arith.constant 0 : i32
    return %c0_i32, %c0_i32_0 : i32, i32
  }
  func.func @transform_3(%arg0: i32) -> (i32, i32) {
    %c0_i32 = arith.constant 0 : i32
    %c0_i32_0 = arith.constant 0 : i32
    %c0_i32_1 = arith.constant 0 : i32
    return %c0_i32, %c0_i32_0 : i32, i32
  }
  func.func @transform_4(%arg0: i32) -> (i32, i32) {
    %c0_i32 = arith.constant 0 : i32
    %c0_i32_0 = arith.constant 0 : i32
    %c0_i32_1 = arith.constant 0 : i32
    return %c0_i32, %c0_i32_0 : i32, i32
  }
  func.func @transform_5(%arg0: i32) -> (i32, i32) {
    %c0_i32 = arith.constant 0 : i32
    %c0_i32_0 = arith.constant 0 : i32
    %c0_i32_1 = arith.constant 0 : i32
    return %c0_i32, %c0_i32_0 : i32, i32
  }
  func.func @transform_6(%arg0: i32) -> (i32, i32) {
    %c0_i32 = arith.constant 0 : i32
    %c0_i32_0 = arith.constant 0 : i32
    return %arg0, %c0_i32 : i32, i32
  }
}

module attributes {stable_mosaic.version = 11 : i64} {
  func.func @_ffn_add_ln_kernel(%arg0: i32, %arg1: memref<8x32xf32, #tpu.memory_space<vmem>>, %arg2: memref<32x64xbf16, #tpu.memory_space<vmem>>, %arg3: memref<1x64xf32, #tpu.memory_space<vmem>>, %arg4: memref<64x32xbf16, #tpu.memory_space<vmem>>, %arg5: memref<1x32xf32, #tpu.memory_space<vmem>>, %arg6: memref<1x32xf32, #tpu.memory_space<vmem>>, %arg7: memref<1x32xf32, #tpu.memory_space<vmem>>, %arg8: memref<8x32xf32, #tpu.memory_space<vmem>>) attributes {dimension_semantics = [#tpu.dimension_semantics<parallel>], iteration_bounds = array<i64: 2>, scalar_prefetch = 0 : i64, scratch_operands = 0 : i64, tpu.core_type = #tpu.core_type<tc>, window_params = [{transform_indices = @transform_0, window_bounds = array<i64: 8, 32>}, {pipeline_mode = #tpu.pipeline_mode<synchronous>, transform_indices = @transform_1, window_bounds = array<i64: 32, 64>}, {pipeline_mode = #tpu.pipeline_mode<synchronous>, transform_indices = @transform_2, window_bounds = array<i64: 1, 64>}, {pipeline_mode = #tpu.pipeline_mode<synchronous>, transform_indices = @transform_3, window_bounds = array<i64: 64, 32>}, {pipeline_mode = #tpu.pipeline_mode<synchronous>, transform_indices = @transform_4, window_bounds = array<i64: 1, 32>}, {pipeline_mode = #tpu.pipeline_mode<synchronous>, transform_indices = @transform_5, window_bounds = array<i64: 1, 32>}, {pipeline_mode = #tpu.pipeline_mode<synchronous>, transform_indices = @transform_6, window_bounds = array<i64: 1, 32>}, {transform_indices = @transform_7, window_bounds = array<i64: 8, 32>}]} {
    %c0 = arith.constant 0 : index
    %c0_0 = arith.constant 0 : index
    %0 = vector.load %arg1[%c0, %c0_0] : memref<8x32xf32, #tpu.memory_space<vmem>>, vector<8x32xf32>
    %1 = arith.truncf %0 : vector<8x32xf32> to vector<8x32xbf16>
    %c0_1 = arith.constant 0 : index
    %c0_2 = arith.constant 0 : index
    %2 = vector.load %arg2[%c0_1, %c0_2] : memref<32x64xbf16, #tpu.memory_space<vmem>>, vector<32x64xbf16>
    %cst = arith.constant dense<0.000000e+00> : vector<8x64xf32>
    %3 = tpu.matmul %1, %2, %cst {dimension_numbers = #tpu.dot_dimension_numbers<[1], [0], [0], [1], [0, 0, 1, 1], [], []>} : vector<8x32xbf16>, vector<32x64xbf16>, vector<8x64xf32> -> vector<8x64xf32>
    %c0_3 = arith.constant 0 : index
    %c0_4 = arith.constant 0 : index
    %4 = vector.load %arg3[%c0_3, %c0_4] : memref<1x64xf32, #tpu.memory_space<vmem>>, vector<1x64xf32>
    %5 = vector.broadcast %4 : vector<1x64xf32> to vector<8x64xf32>
    %6 = arith.addf %3, %5 : vector<8x64xf32>
    %cst_5 = arith.constant 0.000000e+00 : f32
    %7 = vector.broadcast %cst_5 : f32 to vector<8x64xf32>
    %8 = arith.maximumf %6, %7 : vector<8x64xf32>
    %9 = arith.truncf %8 : vector<8x64xf32> to vector<8x64xbf16>
    %c0_6 = arith.constant 0 : index
    %c0_7 = arith.constant 0 : index
    %10 = vector.load %arg4[%c0_6, %c0_7] : memref<64x32xbf16, #tpu.memory_space<vmem>>, vector<64x32xbf16>
    %cst_8 = arith.constant dense<0.000000e+00> : vector<8x32xf32>
    %11 = tpu.matmul %9, %10, %cst_8 {dimension_numbers = #tpu.dot_dimension_numbers<[1], [0], [0], [1], [0, 0, 1, 1], [], []>} : vector<8x64xbf16>, vector<64x32xbf16>, vector<8x32xf32> -> vector<8x32xf32>
    %c0_9 = arith.constant 0 : index
    %c0_10 = arith.constant 0 : index
    %12 = vector.load %arg5[%c0_9, %c0_10] : memref<1x32xf32, #tpu.memory_space<vmem>>, vector<1x32xf32>
    %13 = vector.broadcast %12 : vector<1x32xf32> to vector<8x32xf32>
    %14 = arith.addf %11, %13 : vector<8x32xf32>
    %15 = arith.addf %0, %14 : vector<8x32xf32>
    %c0_11 = arith.constant 0 : index
    %c0_12 = arith.constant 0 : index
    %16 = vector.load %arg6[%c0_11, %c0_12] : memref<1x32xf32, #tpu.memory_space<vmem>>, vector<1x32xf32>
    %c0_13 = arith.constant 0 : index
    %c0_14 = arith.constant 0 : index
    %17 = vector.load %arg7[%c0_13, %c0_14] : memref<1x32xf32, #tpu.memory_space<vmem>>, vector<1x32xf32>
    %cst_15 = arith.constant dense<0.000000e+00> : vector<8xf32>
    %18 = vector.multi_reduction <add>, %15, %cst_15 [1] : vector<8x32xf32> to vector<8xf32>
    %19 = vector.shape_cast %18 : vector<8xf32> to vector<8x1xf32>
    %cst_16 = arith.constant 3.200000e+01 : f32
    %20 = vector.broadcast %cst_16 : f32 to vector<8x1xf32>
    %21 = arith.divf %19, %20 : vector<8x1xf32>
    %22 = vector.broadcast %21 : vector<8x1xf32> to vector<8x32xf32>
    %23 = arith.subf %15, %22 : vector<8x32xf32>
    %24 = arith.mulf %23, %23 : vector<8x32xf32>
    %cst_17 = arith.constant dense<0.000000e+00> : vector<8xf32>
    %25 = vector.multi_reduction <add>, %24, %cst_17 [1] : vector<8x32xf32> to vector<8xf32>
    %26 = vector.shape_cast %25 : vector<8xf32> to vector<8x1xf32>
    %cst_18 = arith.constant 3.200000e+01 : f32
    %27 = vector.broadcast %cst_18 : f32 to vector<8x1xf32>
    %28 = arith.divf %26, %27 : vector<8x1xf32>
    %cst_19 = arith.constant 9.99999974E-6 : f32
    %29 = vector.broadcast %cst_19 : f32 to vector<8x1xf32>
    %30 = arith.addf %28, %29 : vector<8x1xf32>
    %31 = math.rsqrt %30 : vector<8x1xf32>
    %32 = vector.broadcast %31 : vector<8x1xf32> to vector<8x32xf32>
    %33 = arith.mulf %23, %32 : vector<8x32xf32>
    %34 = vector.broadcast %16 : vector<1x32xf32> to vector<8x32xf32>
    %35 = arith.mulf %33, %34 : vector<8x32xf32>
    %36 = vector.broadcast %17 : vector<1x32xf32> to vector<8x32xf32>
    %37 = arith.addf %35, %36 : vector<8x32xf32>
    %c0_20 = arith.constant 0 : index
    %c0_21 = arith.constant 0 : index
    %38 = vector.load %arg8[%c0_20, %c0_21] : memref<8x32xf32, #tpu.memory_space<vmem>>, vector<8x32xf32>
    tpu.vector_store %arg8[%c0_20, %c0_21], %37 {strides = array<i32>} : memref<8x32xf32, #tpu.memory_space<vmem>>, vector<8x32xf32>,
    return
  }
  func.func @transform_0(%arg0: i32) -> (i32, i32) {
    %c0_i32 = arith.constant 0 : i32
    %c0_i32_0 = arith.constant 0 : i32
    return %arg0, %c0_i32 : i32, i32
  }
  func.func @transform_1(%arg0: i32) -> (i32, i32) {
    %c0_i32 = arith.constant 0 : i32
    %c0_i32_0 = arith.constant 0 : i32
    %c0_i32_1 = arith.constant 0 : i32
    return %c0_i32, %c0_i32_0 : i32, i32
  }
  func.func @transform_2(%arg0: i32) -> (i32, i32) {
    %c0_i32 = arith.constant 0 : i32
    %c0_i32_0 = arith.constant 0 : i32
    %c0_i32_1 = arith.constant 0 : i32
    return %c0_i32, %c0_i32_0 : i32, i32
  }
  func.func @transform_3(%arg0: i32) -> (i32, i32) {
    %c0_i32 = arith.constant 0 : i32
    %c0_i32_0 = arith.constant 0 : i32
    %c0_i32_1 = arith.constant 0 : i32
    return %c0_i32, %c0_i32_0 : i32, i32
  }
  func.func @transform_4(%arg0: i32) -> (i32, i32) {
    %c0_i32 = arith.constant 0 : i32
    %c0_i32_0 = arith.constant 0 : i32
    %c0_i32_1 = arith.constant 0 : i32
    return %c0_i32, %c0_i32_0 : i32, i32
  }
  func.func @transform_5(%arg0: i32) -> (i32, i32) {
    %c0_i32 = arith.constant 0 : i32
    %c0_i32_0 = arith.constant 0 : i32
    %c0_i32_1 = arith.constant 0 : i32
    return %c0_i32, %c0_i32_0 : i32, i32
  }
  func.func @transform_6(%arg0: i32) -> (i32, i32) {
    %c0_i32 = arith.constant 0 : i32
    %c0_i32_0 = arith.constant 0 : i32
    %c0_i32_1 = arith.constant 0 : i32
    return %c0_i32, %c0_i32_0 : i32, i32
  }
  func.func @transform_7(%arg0: i32) -> (i32, i32) {
    %c0_i32 = arith.constant 0 : i32
    %c0_i32_0 = arith.constant 0 : i32
    return %arg0, %c0_i32 : i32, i32
  }
}

module attributes {stable_mosaic.version = 11 : i64} {
  func.func @_linear_kernel(%arg0: i32, %arg1: memref<2x32xf32, #tpu.memory_space<vmem>>, %arg2: memref<32x32xbf16, #tpu.memory_space<vmem>>, %arg3: memref<1x32xf32, #tpu.memory_space<vmem>>, %arg4: memref<2x32xf32, #tpu.memory_space<vmem>>) attributes {dimension_semantics = [#tpu.dimension_semantics<parallel>], iteration_bounds = array<i64: 1>, scalar_prefetch = 0 : i64, scratch_operands = 0 : i64, tpu.core_type = #tpu.core_type<tc>, window_params = [{transform_indices = @transform_0, window_bounds = array<i64: 2, 32>}, {pipeline_mode = #tpu.pipeline_mode<synchronous>, transform_indices = @transform_1, window_bounds = array<i64: 32, 32>}, {pipeline_mode = #tpu.pipeline_mode<synchronous>, transform_indices = @transform_2, window_bounds = array<i64: 1, 32>}, {transform_indices = @transform_3, window_bounds = array<i64: 2, 32>}]} {
    %c0 = arith.constant 0 : index
    %c0_0 = arith.constant 0 : index
    %0 = vector.load %arg1[%c0, %c0_0] : memref<2x32xf32, #tpu.memory_space<vmem>>, vector<2x32xf32>
    %1 = arith.truncf %0 : vector<2x32xf32> to vector<2x32xbf16>
    %c0_1 = arith.constant 0 : index
    %c0_2 = arith.constant 0 : index
    %2 = vector.load %arg2[%c0_1, %c0_2] : memref<32x32xbf16, #tpu.memory_space<vmem>>, vector<32x32xbf16>
    %cst = arith.constant dense<0.000000e+00> : vector<2x32xf32>
    %3 = tpu.matmul %1, %2, %cst {dimension_numbers = #tpu.dot_dimension_numbers<[1], [0], [0], [1], [0, 0, 1, 1], [], []>} : vector<2x32xbf16>, vector<32x32xbf16>, vector<2x32xf32> -> vector<2x32xf32>
    %c0_3 = arith.constant 0 : index
    %c0_4 = arith.constant 0 : index
    %4 = vector.load %arg3[%c0_3, %c0_4] : memref<1x32xf32, #tpu.memory_space<vmem>>, vector<1x32xf32>
    %5 = vector.broadcast %4 : vector<1x32xf32> to vector<2x32xf32>
    %6 = arith.addf %3, %5 : vector<2x32xf32>
    %c0_5 = arith.constant 0 : index
    %c0_6 = arith.constant 0 : index
    %7 = vector.load %arg4[%c0_5, %c0_6] : memref<2x32xf32, #tpu.memory_space<vmem>>, vector<2x32xf32>
    tpu.vector_store %arg4[%c0_5, %c0_6], %6 {strides = array<i32>} : memref<2x32xf32, #tpu.memory_space<vmem>>, vector<2x32xf32>,
    return
  }
  func.func @transform_0(%arg0: i32) -> (i32, i32) {
    %c0_i32 = arith.constant 0 : i32
    %c0_i32_0 = arith.constant 0 : i32
    return %arg0, %c0_i32 : i32, i32
  }
  func.func @transform_1(%arg0: i32) -> (i32, i32) {
    %c0_i32 = arith.constant 0 : i32
    %c0_i32_0 = arith.constant 0 : i32
    %c0_i32_1 = arith.constant 0 : i32
    return %c0_i32, %c0_i32_0 : i32, i32
  }
  func.func @transform_2(%arg0: i32) -> (i32, i32) {
    %c0_i32 = arith.constant 0 : i32
    %c0_i32_0 = arith.constant 0 : i32
    %c0_i32_1 = arith.constant 0 : i32
    return %c0_i32, %c0_i32_0 : i32, i32
  }
  func.func @transform_3(%arg0: i32) -> (i32, i32) {
    %c0_i32 = arith.constant 0 : i32
    %c0_i32_0 = arith.constant 0 : i32
    return %arg0, %c0_i32 : i32, i32
  }
}

module attributes {stable_mosaic.version = 11 : i64} {
  func.func @_head_kernel(%arg0: i32, %arg1: memref<2x32xf32, #tpu.memory_space<vmem>>, %arg2: memref<1x32xf32, #tpu.memory_space<vmem>>, %arg3: memref<1x32xf32, #tpu.memory_space<vmem>>, %arg4: memref<16x32xbf16, #tpu.memory_space<vmem>>, %arg5: memref<1x16xf32, #tpu.memory_space<vmem>>, %arg6: memref<2x16xi32, #tpu.memory_space<vmem>>, %arg7: memref<2x16xf32, #tpu.memory_space<vmem>>) attributes {dimension_semantics = [#tpu.dimension_semantics<parallel>], iteration_bounds = array<i64: 1>, scalar_prefetch = 0 : i64, scratch_operands = 0 : i64, tpu.core_type = #tpu.core_type<tc>, window_params = [{pipeline_mode = #tpu.pipeline_mode<synchronous>, transform_indices = @transform_0, window_bounds = array<i64: 2, 32>}, {pipeline_mode = #tpu.pipeline_mode<synchronous>, transform_indices = @transform_1, window_bounds = array<i64: 1, 32>}, {pipeline_mode = #tpu.pipeline_mode<synchronous>, transform_indices = @transform_2, window_bounds = array<i64: 1, 32>}, {transform_indices = @transform_3, window_bounds = array<i64: 16, 32>}, {transform_indices = @transform_4, window_bounds = array<i64: 1, 16>}, {transform_indices = @transform_5, window_bounds = array<i64: 2, 16>}, {transform_indices = @transform_6, window_bounds = array<i64: 2, 16>}]} {
    %c0 = arith.constant 0 : index
    %c0_0 = arith.constant 0 : index
    %0 = vector.load %arg1[%c0, %c0_0] : memref<2x32xf32, #tpu.memory_space<vmem>>, vector<2x32xf32>
    %c0_1 = arith.constant 0 : index
    %c0_2 = arith.constant 0 : index
    %1 = vector.load %arg2[%c0_1, %c0_2] : memref<1x32xf32, #tpu.memory_space<vmem>>, vector<1x32xf32>
    %c0_3 = arith.constant 0 : index
    %c0_4 = arith.constant 0 : index
    %2 = vector.load %arg3[%c0_3, %c0_4] : memref<1x32xf32, #tpu.memory_space<vmem>>, vector<1x32xf32>
    %cst = arith.constant dense<0.000000e+00> : vector<2xf32>
    %3 = vector.multi_reduction <add>, %0, %cst [1] : vector<2x32xf32> to vector<2xf32>
    %4 = vector.shape_cast %3 : vector<2xf32> to vector<2x1xf32>
    %cst_5 = arith.constant 3.200000e+01 : f32
    %5 = vector.broadcast %cst_5 : f32 to vector<2x1xf32>
    %6 = arith.divf %4, %5 : vector<2x1xf32>
    %7 = vector.broadcast %6 : vector<2x1xf32> to vector<2x32xf32>
    %8 = arith.subf %0, %7 : vector<2x32xf32>
    %9 = arith.mulf %8, %8 : vector<2x32xf32>
    %cst_6 = arith.constant dense<0.000000e+00> : vector<2xf32>
    %10 = vector.multi_reduction <add>, %9, %cst_6 [1] : vector<2x32xf32> to vector<2xf32>
    %11 = vector.shape_cast %10 : vector<2xf32> to vector<2x1xf32>
    %cst_7 = arith.constant 3.200000e+01 : f32
    %12 = vector.broadcast %cst_7 : f32 to vector<2x1xf32>
    %13 = arith.divf %11, %12 : vector<2x1xf32>
    %cst_8 = arith.constant 9.99999974E-6 : f32
    %14 = vector.broadcast %cst_8 : f32 to vector<2x1xf32>
    %15 = arith.addf %13, %14 : vector<2x1xf32>
    %16 = math.rsqrt %15 : vector<2x1xf32>
    %17 = vector.broadcast %16 : vector<2x1xf32> to vector<2x32xf32>
    %18 = arith.mulf %8, %17 : vector<2x32xf32>
    %19 = vector.broadcast %1 : vector<1x32xf32> to vector<2x32xf32>
    %20 = arith.mulf %18, %19 : vector<2x32xf32>
    %21 = vector.broadcast %2 : vector<1x32xf32> to vector<2x32xf32>
    %22 = arith.addf %20, %21 : vector<2x32xf32>
    %23 = arith.truncf %22 : vector<2x32xf32> to vector<2x32xbf16>
    %c0_9 = arith.constant 0 : index
    %c0_10 = arith.constant 0 : index
    %24 = vector.load %arg4[%c0_9, %c0_10] : memref<16x32xbf16, #tpu.memory_space<vmem>>, vector<16x32xbf16>
    "tpu.trace_start"() <{level = 10 : i32, message = "nd,vd->nv"}> : () -> ()
    %cst_11 = arith.constant dense<0.000000e+00> : vector<2x16xf32>
    %25 = tpu.matmul %23, %24, %cst_11 {dimension_numbers = #tpu.dot_dimension_numbers<[1], [1], [0], [0], [0, 0, 1, 0], [], []>} : vector<2x32xbf16>, vector<16x32xbf16>, vector<2x16xf32> -> vector<2x16xf32>
    "tpu.trace_stop"() : () -> ()
    %c0_12 = arith.constant 0 : index
    %c0_13 = arith.constant 0 : index
    %26 = vector.load %arg5[%c0_12, %c0_13] : memref<1x16xf32, #tpu.memory_space<vmem>>, vector<1x16xf32>
    %27 = vector.broadcast %26 : vector<1x16xf32> to vector<2x16xf32>
    %28 = arith.addf %25, %27 : vector<2x16xf32>
    %c0_14 = arith.constant 0 : index
    %c0_15 = arith.constant 0 : index
    %29 = vector.load %arg6[%c0_14, %c0_15] : memref<2x16xi32, #tpu.memory_space<vmem>>, vector<2x16xi32>
    %c0_i32 = arith.constant 0 : i32
    %30 = vector.broadcast %c0_i32 : i32 to vector<2x16xi32>
    %31 = arith.cmpi eq, %29, %30 : vector<2x16xi32>
    %cst_16 = arith.constant -1.000000e+05 : f32
    %32 = vector.broadcast %cst_16 : f32 to vector<2x16xf32>
    %33 = arith.select %31, %32, %28 : vector<2x16xi1>, vector<2x16xf32>
    %c0_17 = arith.constant 0 : index
    %c0_18 = arith.constant 0 : index
    %34 = vector.load %arg7[%c0_17, %c0_18] : memref<2x16xf32, #tpu.memory_space<vmem>>, vector<2x16xf32>
    tpu.vector_store %arg7[%c0_17, %c0_18], %33 {strides = array<i32>} : memref<2x16xf32, #tpu.memory_space<vmem>>, vector<2x16xf32>,
    return
  }
  func.func @transform_0(%arg0: i32) -> (i32, i32) {
    %c0_i32 = arith.constant 0 : i32
    %c0_i32_0 = arith.constant 0 : i32
    %c0_i32_1 = arith.constant 0 : i32
    return %c0_i32, %c0_i32_0 : i32, i32
  }
  func.func @transform_1(%arg0: i32) -> (i32, i32) {
    %c0_i32 = arith.constant 0 : i32
    %c0_i32_0 = arith.constant 0 : i32
    %c0_i32_1 = arith.constant 0 : i32
    return %c0_i32, %c0_i32_0 : i32, i32
  }
  func.func @transform_2(%arg0: i32) -> (i32, i32) {
    %c0_i32 = arith.constant 0 : i32
    %c0_i32_0 = arith.constant 0 : i32
    %c0_i32_1 = arith.constant 0 : i32
    return %c0_i32, %c0_i32_0 : i32, i32
  }
  func.func @transform_3(%arg0: i32) -> (i32, i32) {
    %c0_i32 = arith.constant 0 : i32
    %c0_i32_0 = arith.constant 0 : i32
    return %arg0, %c0_i32 : i32, i32
  }
  func.func @transform_4(%arg0: i32) -> (i32, i32) {
    %c0_i32 = arith.constant 0 : i32
    %c0_i32_0 = arith.constant 0 : i32
    return %c0_i32, %arg0 : i32, i32
  }
  func.func @transform_5(%arg0: i32) -> (i32, i32) {
    %c0_i32 = arith.constant 0 : i32
    %c0_i32_0 = arith.constant 0 : i32
    return %c0_i32, %arg0 : i32, i32
  }
  func.func @transform_6(%arg0: i32) -> (i32, i32) {
    %c0_i32 = arith.constant 0 : i32
    %c0_i32_0 = arith.constant 0 : i32
    return %c0_i32, %arg0 : i32, i32
  }
}

</mosaic_0001>

<llo_original>
// kernel: transformer_forward.12
$region0: #{transformer_forward.12}
  #allocation0 [shape = 'u32[]', space=smem, size = 0x4, offset = 0x4, fixed_abs, tag = 'smem constant byte address 0x4 - core index']
  #allocation1 [shape = 'u32[144,128]{1,0:T(1,128)}', space=vmem, size = 0x12000, scoped, tag = 'internal scratch']
  %s0 = inlined_call_operand.vmem [shape: f32[16,32], index: 0, kind: input, shape index: {}]
  %s1 = inlined_call_operand.vmem [shape: bf16[32,208], index: 1, kind: input, shape index: {}]
  %s2 = inlined_call_operand.vmem [shape: f32[1,208], index: 2, kind: input, shape index: {}]
  %s3 = inlined_call_operand.vmem [shape: bf16[16,208], index: 3, kind: output, shape index: {}]
  %s4 = sld [smem:[#allocation0]]
  $region45: #{transformer_forward.12} parent=0
    _
  %s6 = ssub.s32 1, %s4
  %s7 = scalar_select 0, %s6, %s4
  loop: start=0, step=1, limit=4
  $region2: #{transformer_forward.12} parent=0 // loop_pre_header
    _
  $region3: #{transformer_forward.12} parent=0 // loop_header
    %s9 = sphi 0, %s13
    %p10 = scmp.ge.s32.totalorder %s9, 4
    %s19 = sphi 0, %s21
    %s22 = sphi 0, %s19
    %s23 = sphi 0, %s22
    %s39 = sphi 0, %s23
    %s43 = sphi 0, %s43
    %s45 = sphi 0, %s43
    %s46 = sphi 0, %s45
    %s60 = sphi 0, %s46
    %s64 = sphi 0, %s64
    %s66 = sphi 0, %s64
    %s67 = sphi 0, %s66
    %s81 = sphi 0, %s67
    %s87 = sphi 0, %s89
    %s90 = sphi 0, %s87
    %s91 = sphi 0, %s90
    %s107 = sphi 0, %s91
  $region4: #{transformer_forward.12} parent=0 // loop_header_branch
    %12 = sbr.rel (%p10) target = $region8
  $region5: #{transformer_forward.12} parent=0 // loop_body
    %s14 = ssub.s32 %s9, 1
    %s15 = ssub.s32 %s9, 2
    %s16 = sadd.s32 %s9, 1
    %s17 = ssub.s32 %s9, %s16
    %p18 = scmp.eq.s32.totalorder %s17, 0
    %s20 = sadd.s32 %s19, 1
    %s21 = scalar_select %p18, %s19, %s20
    %p24 = pneg %p18
    %p25 = scmp.eq.s32.totalorder %s9, 1
    %p26 = por %p24, %p25
    %p27 = scmp.ne.s32.totalorder %s19, %s22
    %p28 = scmp.eq.s32.totalorder %s9, 0
    %p29 = por %p27, %p28
    %p30 = scmp.ne.s32.totalorder %s19, %s22
    %p31 = scmp.eq.s32.totalorder %s14, 1
    %p32 = por %p30, %p31
    %p33 = scmp.ne.s32.totalorder %s22, %s23
    %p34 = scmp.eq.s32.totalorder %s14, 0
    %p35 = por %p33, %p34
    %p36 = scmp.ne.s32.totalorder %s22, %s23
    %p37 = scmp.eq.s32.totalorder %s15, 1
    %p38 = por %p36, %p37
    %p40 = scmp.ne.s32.totalorder %s23, %s39
    %p41 = scmp.eq.s32.totalorder %s15, 0
    %p42 = por %p40, %p41
    %s44 = sadd.s32 %s43, 1
    %p47 = scmp.eq.s32.totalorder %s9, 1
    %p48 = scmp.ne.s32.totalorder %s43, %s45
    %p49 = scmp.eq.s32.totalorder %s9, 0
    %p50 = por %p48, %p49
    %p51 = scmp.ne.s32.totalorder %s43, %s45
    %p52 = scmp.eq.s32.totalorder %s14, 1
    %p53 = por %p51, %p52
    %p54 = scmp.ne.s32.totalorder %s45, %s46
    %p55 = scmp.eq.s32.totalorder %s14, 0
    %p56 = por %p54, %p55
    %p57 = scmp.ne.s32.totalorder %s45, %s46
    %p58 = scmp.eq.s32.totalorder %s15, 1
    %p59 = por %p57, %p58
    %p61 = scmp.ne.s32.totalorder %s46, %s60
    %p62 = scmp.eq.s32.totalorder %s15, 0
    %p63 = por %p61, %p62
    %s65 = sadd.s32 %s64, 1
    %p68 = scmp.eq.s32.totalorder %s9, 1
    %p69 = scmp.ne.s32.totalorder %s64, %s66
    %p70 = scmp.eq.s32.totalorder %s9, 0
    %p71 = por %p69, %p70
    %p72 = scmp.ne.s32.totalorder %s64, %s66
    %p73 = scmp.eq.s32.totalorder %s14, 1
    %p74 = por %p72, %p73
    %p75 = scmp.ne.s32.totalorder %s66, %s67
    %p76 = scmp.eq.s32.totalorder %s14, 0
    %p77 = por %p75, %p76
    %p78 = scmp.ne.s32.totalorder %s66, %s67
    %p79 = scmp.eq.s32.totalorder %s15, 1
    %p80 = por %p78, %p79
    %p82 = scmp.ne.s32.totalorder %s67, %s81
    %p83 = scmp.eq.s32.totalorder %s15, 0
    %p84 = por %p82, %p83
    %s85 = ssub.s32 %s9, %s16
    %p86 = scmp.eq.s32.totalorder %s85, 0
    %s88 = sadd.s32 %s87, 1
    %s89 = scalar_select %p86, %s87, %s88
    %p92 = pneg %p86
    %p93 = scmp.eq.s32.totalorder %s9, 1
    %p94 = por %p92, %p93
    %p95 = scmp.ne.s32.totalorder %s87, %s90
    %p96 = scmp.eq.s32.totalorder %s9, 0
    %p97 = por %p95, %p96
    %p98 = scmp.ne.s32.totalorder %s87, %s90
    %p99 = scmp.eq.s32.totalorder %s14, 1
    %p100 = por %p98, %p99
    %p101 = scmp.ne.s32.totalorder %s90, %s91
    %p102 = scmp.eq.s32.totalorder %s14, 0
    %p103 = por %p101, %p102
    %p104 = scmp.ne.s32.totalorder %s90, %s91
    %p105 = scmp.eq.s32.totalorder %s15, 1
    %p106 = por %p104, %p105
    %p108 = scmp.ne.s32.totalorder %s91, %s107
    %p109 = scmp.eq.s32.totalorder %s15, 0
    %p110 = por %p108, %p109
    %p111 = scmp.le.s32.totalorder 1, %s9
    %p112 = scmp.lt.s32.totalorder %s9, 3
    %p113 = pnand %p111, %p112
    %p114 = pneg %p113
    // Predicated region
    $region9: #{transformer_forward.12} parent=5 // pred_check
      _
    $region10: #{transformer_forward.12} parent=5 // pred_check_branch
      %116 = sbr.rel (%p113) target = $region12
    $region11: #{transformer_forward.12} parent=5 // pred_region
      %s117 = ssub.s32 %s9, 1
      // Predicated region
      $region13: #{transformer_forward.12} parent=11 // pred_check
        %p118 = pneg %p56
      $region14: #{transformer_forward.12} parent=11 // pred_check_branch
        %120 = sbr.rel (%p118) target = $region16
      $region15: #{transformer_forward.12} parent=11 // pred_region
        _
      $region16: #{transformer_forward.12} parent=11 // pred_fallthru
        _
      // Predicated region
      $region17: #{transformer_forward.12} parent=11 // pred_check
        %p121 = pneg %p77
      $region18: #{transformer_forward.12} parent=11 // pred_check_branch
        %123 = sbr.rel (%p121) target = $region20
      $region19: #{transformer_forward.12} parent=11 // pred_region
        _
      $region20: #{transformer_forward.12} parent=11 // pred_fallthru
        _
    $region12: #{transformer_forward.12} parent=5 // pred_fallthru
      _
    %p124 = scmp.lt.s32.totalorder %s9, 2
    // Predicated region
    $region21: #{transformer_forward.12} parent=5 // pred_check
      %p125 = pneg %p124
    $region22: #{transformer_forward.12} parent=5 // pred_check_branch
      %127 = sbr.rel (%p125) target = $region24
    $region23: #{transformer_forward.12} parent=5 // pred_region
      // Predicated region
      $region25: #{transformer_forward.12} parent=23 // pred_check
        %p128 = pneg %p29
      $region26: #{transformer_forward.12} parent=23 // pred_check_branch
        %130 = sbr.rel (%p128) target = $region28
      $region27: #{transformer_forward.12} parent=23 // pred_region
        %p131 = scmp.lt.s32.totalorder %s9, 1
        %s132 = scalar_select %p131, %s9, 1
        %s133 = smul.addr %s132, 8
        %s134 = scalar_lea.vmem %s0, %s133
      $region28: #{transformer_forward.12} parent=23 // pred_fallthru
        _
    $region24: #{transformer_forward.12} parent=5 // pred_fallthru
      _
    %p135 = scmp.le.s32.totalorder 1, %s9
    %p136 = scmp.lt.s32.totalorder %s9, 3
    %p137 = pnand %p135, %p136
    %p138 = pneg %p137
    // Predicated region
    $region29: #{transformer_forward.12} parent=5 // pred_check
      _
    $region30: #{transformer_forward.12} parent=5 // pred_check_branch
      %140 = sbr.rel (%p137) target = $region32
    $region31: #{transformer_forward.12} parent=5 // pred_region
      %s141 = ssub.s32 %s9, 1
      %p142 = scmp.lt.s32.totalorder %s14, 1
      %s143 = scalar_select %p142, %s14, 1
      %s144 = smul.addr %s143, 8
      %s145 = scalar_lea.vmem %s0, %s144
      %p146 = pneg %p35
      %p147 = pneg %p32
      %p148 = pneg %p56
      %p149 = pneg %p53
      %p150 = pneg %p77
      %p151 = pneg %p74
      %p152 = pneg %p103
      %p153 = pneg %p100
      %p154 = scmp.lt.s32.totalorder %s14, 1
      %s155 = scalar_select %p154, %s14, 1
      %s156 = smul.addr %s155, 2
      %s157 = smul.addr %s156, 4
      %s158 = scalar_lea.vmem %s3, %s157
      %p159 = scmp.lt.s32.totalorder %s14, 1
      %s160 = scalar_select %p159, %s14, 1
      %s161 = smul.addr %s160, 8
      %s162 = scalar_lea.vmem %s0, %s161
      %p163 = scmp.lt.s32.totalorder %s14, 1
      %s164 = scalar_select %p163, %s14, 1
      %s165 = smul.addr %s164, 2
      %s166 = smul.addr %s165, 4
      %s167 = scalar_lea.vmem %s3, %s166
      %v169 = vld [vmem:[%s162] sm:$0xff]
      %v170 = vpack.c.bf16 %v169, %v169
      %v171 = vld [vmem:[%s1] sm:$0xff]
      %v172 = vld [vmem:[%s1 + $0x8] sm:$0xff]
      %v173 = vld [vmem:[%s1 + $0x10] sm:$0xff]
      %v174 = vld [vmem:[%s1 + $0x18] sm:$0xff]
      %v175 = vld [vmem:[%s2] sm:$0x3]
      %v177 = vlaneseq
      %v178 = vshrl.u32 %v177, 7
      %v179 = vsub.s32 0, %v178
      %v180 = vrot.slane %v175, %v179
      %v181 = vlaneseq
      %v182 = vshrl.u32 %v181, 7
      %v183 = vsub.s32 1, %v182
      %v184 = vrot.slane %v175, %v183
      %v191 = vunpack.c.l.b16 %v171
      %v192 = vunpack.c.h.b16 %v171
      %v193 = vunpack.c.l.b16 %v172
      %v194 = vunpack.c.h.b16 %v172
      %v195 = vunpack.c.l.b16 %v173
      %v196 = vunpack.c.h.b16 %v173
      %v197 = vunpack.c.l.b16 %v174
      %v198 = vunpack.c.h.b16 %v174
      %v199 = vpack.c.b16 %v193, %v191
      %v200 = vpack.c.b16 %v194, %v192
      %v201 = vpack.c.b16 %v197, %v195
      %v202 = vpack.c.b16 %v198, %v196
      %vm207 = vcmask 261120
      %v209 = vsel %vm207, %v170, 0
      %211 = vmatprep.subr.bf16.mxu0 %v200
      %212 = vmatpush1.bf16.msra.mxu0 %v199
      %213 = vmatprep.subr.bf16.mxu0 %v202
      %214 = vmatpush1.bf16.msra.mxu0 %v201
      %215 = vmatprep.subr.bf16.mxu0 0
      %216 = vmatpush1.bf16.msra.mxu0 0
      %217 = vmatprep.subr.bf16.mxu0 0
      %218 = vmatpush1.bf16.msra.mxu0 0
      %219 = vmatprep.subr.bf16.mxu0 0
      %220 = vmatpush1.bf16.msra.mxu0 0
      %221 = vmatprep.subr.bf16.mxu0 0
      %222 = vmatpush1.bf16.msra.mxu0 0
      %223 = vmatprep.subr.bf16.mxu0 0
      %224 = vmatpush1.bf16.msra.mxu0 0
      %225 = vmatprep.subr.bf16.mxu0 0
      %226 = vmatpush1.bf16.msra.mxu0 0
      %227 = vmatprep.subr.bf16.mxu0 0
      %228 = vmatpush1.bf16.msra.mxu0 0
      %229 = vmatprep.subr.bf16.mxu0 0
      %230 = vmatpush1.bf16.msra.mxu0 0
      %231 = vmatprep.subr.bf16.mxu0 0
      %232 = vmatpush1.bf16.msra.mxu0 0
      %233 = vmatprep.subr.bf16.mxu0 0
      %234 = vmatpush1.bf16.msra.mxu0 0
      %235 = vmatprep.subr.bf16.mxu0 0
      %236 = vmatpush1.bf16.msra.mxu0 0
      %237 = vmatprep.subr.bf16.mxu0 0
      %238 = vmatpush1.bf16.msra.mxu0 0
      %239 = vmatprep.subr.bf16.mxu0 0
      %240 = vmatpush1.bf16.msra.mxu0 0
      %241 = vmatprep.subr.bf16.mxu0 0
      %242 = vmatpush1.bf16.msra.mxu0 0
      %243 = vmatprep.mubr.bf16.mxu0 0
      %244 = vmatmul.mubr.bf16.gmra.mrb[0].mxu0 %v209
      %v245 = vpop.f32.mrb[0].mxu0
      %v246 = vadd.f32 %v180, %v245
      %v247 = vpop.f32.mrb[0].mxu0
      %v248 = vadd.f32 %v184, %v247
      %v249 = vpop.f32.mrb[0].mxu0
      %v250 = vpop.f32.mrb[0].mxu0
      %251 = vdwg.mxu0
      %v252 = vpack.c.bf16 %v246, %v246
      %v253 = vpack.c.bf16 %v248, %v248
      %v256 = vunpack.c.l.b16 %v252
      %v257 = vunpack.c.l.b16 %v253
      %v258 = vpack.c.b16 %v257, %v256
      %vm260 = vcmask 1043456
      %vm261 = vcmask 654340
      %vm262 = vmor %vm261, %vm260
      %263 = vst.msk [vmem:[%s167] sm:$0xff] %vm262, %v258
      %p264 = scmp.lt.s32.totalorder %s14, 1
      %s265 = scalar_select %p264, %s14, 1
      %s266 = smul.addr %s265, 2
      %s267 = smul.addr %s266, 4
      %s268 = scalar_lea.vmem %s3, %s267
      // Predicated region
      $region33: #{transformer_forward.12} parent=31 // pred_check
        %p269 = pneg %p100
      $region34: #{transformer_forward.12} parent=31 // pred_check_branch
        %271 = sbr.rel (%p269) target = $region36
      $region35: #{transformer_forward.12} parent=31 // pred_region
        _
      $region36: #{transformer_forward.12} parent=31 // pred_fallthru
        _
    $region32: #{transformer_forward.12} parent=5 // pred_fallthru
      _
    %p272 = scmp.le.s32.totalorder 2, %s9
    // Predicated region
    $region37: #{transformer_forward.12} parent=5 // pred_check
      %p273 = pneg %p272
    $region38: #{transformer_forward.12} parent=5 // pred_check_branch
      %275 = sbr.rel (%p273) target = $region40
    $region39: #{transformer_forward.12} parent=5 // pred_region
      %s276 = ssub.s32 %s9, 2
      // Predicated region
      $region41: #{transformer_forward.12} parent=39 // pred_check
        %p277 = pneg %p106
      $region42: #{transformer_forward.12} parent=39 // pred_check_branch
        %279 = sbr.rel (%p277) target = $region44
      $region43: #{transformer_forward.12} parent=39 // pred_region
        %p280 = scmp.lt.s32.totalorder %s15, 1
        %s281 = scalar_select %p280, %s15, 1
        %s282 = smul.addr %s281, 2
        %s283 = smul.addr %s282, 4
        %s284 = scalar_lea.vmem %s3, %s283
      $region44: #{transformer_forward.12} parent=39 // pred_fallthru
        _
    $region40: #{transformer_forward.12} parent=5 // pred_fallthru
      _
  $region6: #{transformer_forward.12} parent=0 // loop_footer
    %s13 = sadd.s32 1, %s9
  $region7: #{transformer_forward.12} parent=0 // loop_footer_branch
    %8 = sbr.rel target = $region3
  $region8: #{transformer_forward.12} parent=0 // loop_exit
    _

// kernel: transformer_forward.11
$region0: #{transformer_forward.11}
  #allocation0 [shape = 'u32[]', space=smem, size = 0x4, offset = 0x4, fixed_abs, tag = 'smem constant byte address 0x4 - core index']
  #allocation1 [shape = 'u32[144,128]{1,0:T(1,128)}', space=vmem, size = 0x12000, scoped, tag = 'internal scratch']
  %s0 = inlined_call_operand.vmem [shape: f32[16,32], index: 0, kind: input, shape index: {}]
  %s1 = inlined_call_operand.vmem [shape: f32[1,32], index: 1, kind: input, shape index: {}]
  %s2 = inlined_call_operand.vmem [shape: f32[1,32], index: 2, kind: input, shape index: {}]
  %s3 = inlined_call_operand.vmem [shape: f32[16,32], index: 3, kind: output, shape index: {}]
  %s4 = sld [smem:[#allocation0]]
  $region45: #{transformer_forward.11} parent=0
    _
  %s6 = ssub.s32 1, %s4
  %s7 = scalar_select 0, %s6, %s4
  loop: start=0, step=1, limit=4
  $region2: #{transformer_forward.11} parent=0 // loop_pre_header
    _
  $region3: #{transformer_forward.11} parent=0 // loop_header
    %s9 = sphi 0, %s13
    %p10 = scmp.ge.s32.totalorder %s9, 4
    %s19 = sphi 0, %s21
    %s22 = sphi 0, %s19
    %s23 = sphi 0, %s22
    %s39 = sphi 0, %s23
    %s43 = sphi 0, %s43
    %s45 = sphi 0, %s43
    %s46 = sphi 0, %s45
    %s60 = sphi 0, %s46
    %s64 = sphi 0, %s64
    %s66 = sphi 0, %s64
    %s67 = sphi 0, %s66
    %s81 = sphi 0, %s67
    %s87 = sphi 0, %s89
    %s90 = sphi 0, %s87
    %s91 = sphi 0, %s90
    %s107 = sphi 0, %s91
  $region4: #{transformer_forward.11} parent=0 // loop_header_branch
    %12 = sbr.rel (%p10) target = $region8
  $region5: #{transformer_forward.11} parent=0 // loop_body
    %s14 = ssub.s32 %s9, 1
    %s15 = ssub.s32 %s9, 2
    %s16 = sadd.s32 %s9, 1
    %s17 = ssub.s32 %s9, %s16
    %p18 = scmp.eq.s32.totalorder %s17, 0
    %s20 = sadd.s32 %s19, 1
    %s21 = scalar_select %p18, %s19, %s20
    %p24 = pneg %p18
    %p25 = scmp.eq.s32.totalorder %s9, 1
    %p26 = por %p24, %p25
    %p27 = scmp.ne.s32.totalorder %s19, %s22
    %p28 = scmp.eq.s32.totalorder %s9, 0
    %p29 = por %p27, %p28
    %p30 = scmp.ne.s32.totalorder %s19, %s22
    %p31 = scmp.eq.s32.totalorder %s14, 1
    %p32 = por %p30, %p31
    %p33 = scmp.ne.s32.totalorder %s22, %s23
    %p34 = scmp.eq.s32.totalorder %s14, 0
    %p35 = por %p33, %p34
    %p36 = scmp.ne.s32.totalorder %s22, %s23
    %p37 = scmp.eq.s32.totalorder %s15, 1
    %p38 = por %p36, %p37
    %p40 = scmp.ne.s32.totalorder %s23, %s39
    %p41 = scmp.eq.s32.totalorder %s15, 0
    %p42 = por %p40, %p41
    %s44 = sadd.s32 %s43, 1
    %p47 = scmp.eq.s32.totalorder %s9, 1
    %p48 = scmp.ne.s32.totalorder %s43, %s45
    %p49 = scmp.eq.s32.totalorder %s9, 0
    %p50 = por %p48, %p49
    %p51 = scmp.ne.s32.totalorder %s43, %s45
    %p52 = scmp.eq.s32.totalorder %s14, 1
    %p53 = por %p51, %p52
    %p54 = scmp.ne.s32.totalorder %s45, %s46
    %p55 = scmp.eq.s32.totalorder %s14, 0
    %p56 = por %p54, %p55
    %p57 = scmp.ne.s32.totalorder %s45, %s46
    %p58 = scmp.eq.s32.totalorder %s15, 1
    %p59 = por %p57, %p58
    %p61 = scmp.ne.s32.totalorder %s46, %s60
    %p62 = scmp.eq.s32.totalorder %s15, 0
    %p63 = por %p61, %p62
    %s65 = sadd.s32 %s64, 1
    %p68 = scmp.eq.s32.totalorder %s9, 1
    %p69 = scmp.ne.s32.totalorder %s64, %s66
    %p70 = scmp.eq.s32.totalorder %s9, 0
    %p71 = por %p69, %p70
    %p72 = scmp.ne.s32.totalorder %s64, %s66
    %p73 = scmp.eq.s32.totalorder %s14, 1
    %p74 = por %p72, %p73
    %p75 = scmp.ne.s32.totalorder %s66, %s67
    %p76 = scmp.eq.s32.totalorder %s14, 0
    %p77 = por %p75, %p76
    %p78 = scmp.ne.s32.totalorder %s66, %s67
    %p79 = scmp.eq.s32.totalorder %s15, 1
    %p80 = por %p78, %p79
    %p82 = scmp.ne.s32.totalorder %s67, %s81
    %p83 = scmp.eq.s32.totalorder %s15, 0
    %p84 = por %p82, %p83
    %s85 = ssub.s32 %s9, %s16
    %p86 = scmp.eq.s32.totalorder %s85, 0
    %s88 = sadd.s32 %s87, 1
    %s89 = scalar_select %p86, %s87, %s88
    %p92 = pneg %p86
    %p93 = scmp.eq.s32.totalorder %s9, 1
    %p94 = por %p92, %p93
    %p95 = scmp.ne.s32.totalorder %s87, %s90
    %p96 = scmp.eq.s32.totalorder %s9, 0
    %p97 = por %p95, %p96
    %p98 = scmp.ne.s32.totalorder %s87, %s90
    %p99 = scmp.eq.s32.totalorder %s14, 1
    %p100 = por %p98, %p99
    %p101 = scmp.ne.s32.totalorder %s90, %s91
    %p102 = scmp.eq.s32.totalorder %s14, 0
    %p103 = por %p101, %p102
    %p104 = scmp.ne.s32.totalorder %s90, %s91
    %p105 = scmp.eq.s32.totalorder %s15, 1
    %p106 = por %p104, %p105
    %p108 = scmp.ne.s32.totalorder %s91, %s107
    %p109 = scmp.eq.s32.totalorder %s15, 0
    %p110 = por %p108, %p109
    %p111 = scmp.le.s32.totalorder 1, %s9
    %p112 = scmp.lt.s32.totalorder %s9, 3
    %p113 = pnand %p111, %p112
    %p114 = pneg %p113
    // Predicated region
    $region9: #{transformer_forward.11} parent=5 // pred_check
      _
    $region10: #{transformer_forward.11} parent=5 // pred_check_branch
      %116 = sbr.rel (%p113) target = $region12
    $region11: #{transformer_forward.11} parent=5 // pred_region
      %s117 = ssub.s32 %s9, 1
      // Predicated region
      $region13: #{transformer_forward.11} parent=11 // pred_check
        %p118 = pneg %p56
      $region14: #{transformer_forward.11} parent=11 // pred_check_branch
        %120 = sbr.rel (%p118) target = $region16
      $region15: #{transformer_forward.11} parent=11 // pred_region
        _
      $region16: #{transformer_forward.11} parent=11 // pred_fallthru
        _
      // Predicated region
      $region17: #{transformer_forward.11} parent=11 // pred_check
        %p121 = pneg %p77
      $region18: #{transformer_forward.11} parent=11 // pred_check_branch
        %123 = sbr.rel (%p121) target = $region20
      $region19: #{transformer_forward.11} parent=11 // pred_region
        _
      $region20: #{transformer_forward.11} parent=11 // pred_fallthru
        _
    $region12: #{transformer_forward.11} parent=5 // pred_fallthru
      _
    %p124 = scmp.lt.s32.totalorder %s9, 2
    // Predicated region
    $region21: #{transformer_forward.11} parent=5 // pred_check
      %p125 = pneg %p124
    $region22: #{transformer_forward.11} parent=5 // pred_check_branch
      %127 = sbr.rel (%p125) target = $region24
    $region23: #{transformer_forward.11} parent=5 // pred_region
      // Predicated region
      $region25: #{transformer_forward.11} parent=23 // pred_check
        %p128 = pneg %p29
      $region26: #{transformer_forward.11} parent=23 // pred_check_branch
        %130 = sbr.rel (%p128) target = $region28
      $region27: #{transformer_forward.11} parent=23 // pred_region
        %p131 = scmp.lt.s32.totalorder %s9, 1
        %s132 = scalar_select %p131, %s9, 1
        %s133 = smul.addr %s132, 8
        %s134 = scalar_lea.vmem %s0, %s133
      $region28: #{transformer_forward.11} parent=23 // pred_fallthru
        _
    $region24: #{transformer_forward.11} parent=5 // pred_fallthru
      _
    %p135 = scmp.le.s32.totalorder 1, %s9
    %p136 = scmp.lt.s32.totalorder %s9, 3
    %p137 = pnand %p135, %p136
    %p138 = pneg %p137
    // Predicated region
    $region29: #{transformer_forward.11} parent=5 // pred_check
      _
    $region30: #{transformer_forward.11} parent=5 // pred_check_branch
      %140 = sbr.rel (%p137) target = $region32
    $region31: #{transformer_forward.11} parent=5 // pred_region
      %s141 = ssub.s32 %s9, 1
      %p142 = scmp.lt.s32.totalorder %s14, 1
      %s143 = scalar_select %p142, %s14, 1
      %s144 = smul.addr %s143, 8
      %s145 = scalar_lea.vmem %s0, %s144
      %p146 = pneg %p35
      %p147 = pneg %p32
      %p148 = pneg %p56
      %p149 = pneg %p53
      %p150 = pneg %p77
      %p151 = pneg %p74
      %p152 = pneg %p103
      %p153 = pneg %p100
      %p154 = scmp.lt.s32.totalorder %s14, 1
      %s155 = scalar_select %p154, %s14, 1
      %s156 = smul.addr %s155, 8
      %s157 = scalar_lea.vmem %s3, %s156
      %p158 = scmp.lt.s32.totalorder %s14, 1
      %s159 = scalar_select %p158, %s14, 1
      %s160 = smul.addr %s159, 8
      %s161 = scalar_lea.vmem %s0, %s160
      %p162 = scmp.lt.s32.totalorder %s14, 1
      %s163 = scalar_select %p162, %s14, 1
      %s164 = smul.addr %s163, 8
      %s165 = scalar_lea.vmem %s3, %s164
      %v166 = vld [vmem:[%s161] sm:$0xff]
      %v167 = vld [vmem:[%s1] sm:$0x1]
      %v168 = vld [vmem:[%s2] sm:$0x1]
      %vm169 = vcmask 261120
      %v170 = vsel %vm169, %v166, 0.0
      %171 = vadd.xlane.f32.xlu0 %v170
      %v172 = vpop.xlane.xlu0 %171
      %v173 = vrcp.pop 32.0
      %v174 = vmul.f32 %v172, %v173
      %v175 = vsub.f32 %v166, %v174
      %v176 = vmul.f32 %v175, %v175
      %v177 = vsel %vm169, %v176, 0.0
      %178 = vadd.xlane.f32.xlu0 %v177
      %v179 = vpop.xlane.xlu0 %178
      %v180 = vmul.f32 %v179, %v173
      %v181 = vadd.f32 %v180, 1e-05
      %v182 = vrsqrt.pop %v181
      %v183 = vmul.f32 %v175, %v182
      %v185 = vlaneseq
      %v186 = vshrl.u32 %v185, 7
      %v187 = vsub.s32 0, %v186
      %v188 = vrot.slane %v167, %v187
      %v190 = vmul.f32 %v183, %v188
      %v192 = vlaneseq
      %v193 = vshrl.u32 %v192, 7
      %v194 = vsub.s32 0, %v193
      %v195 = vrot.slane %v168, %v194
      %v197 = vadd.f32 %v190, %v195
      %198 = vst.msk [vmem:[%s165] sm:$0xff] %vm169, %v197
      %p199 = scmp.lt.s32.totalorder %s14, 1
      %s200 = scalar_select %p199, %s14, 1
      %s201 = smul.addr %s200, 8
      %s202 = scalar_lea.vmem %s3, %s201
      // Predicated region
      $region33: #{transformer_forward.11} parent=31 // pred_check
        %p203 = pneg %p100
      $region34: #{transformer_forward.11} parent=31 // pred_check_branch
        %205 = sbr.rel (%p203) target = $region36
      $region35: #{transformer_forward.11} parent=31 // pred_region
        _
      $region36: #{transformer_forward.11} parent=31 // pred_fallthru
        _
    $region32: #{transformer_forward.11} parent=5 // pred_fallthru
      _
    %p206 = scmp.le.s32.totalorder 2, %s9
    // Predicated region
    $region37: #{transformer_forward.11} parent=5 // pred_check
      %p207 = pneg %p206
    $region38: #{transformer_forward.11} parent=5 // pred_check_branch
      %209 = sbr.rel (%p207) target = $region40
    $region39: #{transformer_forward.11} parent=5 // pred_region
      %s210 = ssub.s32 %s9, 2
      // Predicated region
      $region41: #{transformer_forward.11} parent=39 // pred_check
        %p211 = pneg %p106
      $region42: #{transformer_forward.11} parent=39 // pred_check_branch
        %213 = sbr.rel (%p211) target = $region44
      $region43: #{transformer_forward.11} parent=39 // pred_region
        %p214 = scmp.lt.s32.totalorder %s15, 1
        %s215 = scalar_select %p214, %s15, 1
        %s216 = smul.addr %s215, 8
        %s217 = scalar_lea.vmem %s3, %s216
      $region44: #{transformer_forward.11} parent=39 // pred_fallthru
        _
    $region40: #{transformer_forward.11} parent=5 // pred_fallthru
      _
  $region6: #{transformer_forward.11} parent=0 // loop_footer
    %s13 = sadd.s32 1, %s9
  $region7: #{transformer_forward.11} parent=0 // loop_footer_branch
    %8 = sbr.rel target = $region3
  $region8: #{transformer_forward.11} parent=0 // loop_exit
    _

// kernel: transformer_forward.14
$region0: #{transformer_forward.14}
  #allocation0 [shape = 'u32[]', space=smem, size = 0x4, offset = 0x4, fixed_abs, tag = 'smem constant byte address 0x4 - core index']
  #allocation1 [shape = 'u32[144,128]{1,0:T(1,128)}', space=vmem, size = 0x12000, scoped, tag = 'internal scratch']
  %s0 = inlined_call_operand.vmem [shape: bf16[16,32], index: 0, kind: input, shape index: {}]
  %s1 = inlined_call_operand.vmem [shape: f32[16,32], index: 1, kind: input, shape index: {}]
  %s2 = inlined_call_operand.vmem [shape: bf16[32,32], index: 2, kind: input, shape index: {}]
  %s3 = inlined_call_operand.vmem [shape: f32[1,32], index: 3, kind: input, shape index: {}]
  %s4 = inlined_call_operand.vmem [shape: f32[1,32], index: 4, kind: input, shape index: {}]
  %s5 = inlined_call_operand.vmem [shape: f32[1,32], index: 5, kind: input, shape index: {}]
  %s6 = inlined_call_operand.vmem [shape: f32[16,32], index: 6, kind: output, shape index: {}]
  %s7 = sld [smem:[#allocation0]]
  $region57: #{transformer_forward.14} parent=0
    _
  %s9 = ssub.s32 1, %s7
  %s10 = scalar_select 0, %s9, %s7
  loop: start=0, step=1, limit=4
  $region2: #{transformer_forward.14} parent=0 // loop_pre_header
    _
  $region3: #{transformer_forward.14} parent=0 // loop_header
    %s12 = sphi 0, %s16
    %p13 = scmp.ge.s32.totalorder %s12, 4
    %s22 = sphi 0, %s24
    %s25 = sphi 0, %s22
    %s26 = sphi 0, %s25
    %s42 = sphi 0, %s26
    %s48 = sphi 0, %s50
    %s51 = sphi 0, %s48
    %s52 = sphi 0, %s51
    %s68 = sphi 0, %s52
    %s72 = sphi 0, %s72
    %s74 = sphi 0, %s72
    %s75 = sphi 0, %s74
    %s89 = sphi 0, %s75
    %s93 = sphi 0, %s93
    %s95 = sphi 0, %s93
    %s96 = sphi 0, %s95
    %s110 = sphi 0, %s96
    %s114 = sphi 0, %s114
    %s116 = sphi 0, %s114
    %s117 = sphi 0, %s116
    %s131 = sphi 0, %s117
    %s135 = sphi 0, %s135
    %s137 = sphi 0, %s135
    %s138 = sphi 0, %s137
    %s152 = sphi 0, %s138
    %s158 = sphi 0, %s160
    %s161 = sphi 0, %s158
    %s162 = sphi 0, %s161
    %s178 = sphi 0, %s162
  $region4: #{transformer_forward.14} parent=0 // loop_header_branch
    %15 = sbr.rel (%p13) target = $region8
  $region5: #{transformer_forward.14} parent=0 // loop_body
    %s17 = ssub.s32 %s12, 1
    %s18 = ssub.s32 %s12, 2
    %s19 = sadd.s32 %s12, 1
    %s20 = ssub.s32 %s12, %s19
    %p21 = scmp.eq.s32.totalorder %s20, 0
    %s23 = sadd.s32 %s22, 1
    %s24 = scalar_select %p21, %s22, %s23
    %p27 = pneg %p21
    %p28 = scmp.eq.s32.totalorder %s12, 1
    %p29 = por %p27, %p28
    %p30 = scmp.ne.s32.totalorder %s22, %s25
    %p31 = scmp.eq.s32.totalorder %s12, 0
    %p32 = por %p30, %p31
    %p33 = scmp.ne.s32.totalorder %s22, %s25
    %p34 = scmp.eq.s32.totalorder %s17, 1
    %p35 = por %p33, %p34
    %p36 = scmp.ne.s32.totalorder %s25, %s26
    %p37 = scmp.eq.s32.totalorder %s17, 0
    %p38 = por %p36, %p37
    %p39 = scmp.ne.s32.totalorder %s25, %s26
    %p40 = scmp.eq.s32.totalorder %s18, 1
    %p41 = por %p39, %p40
    %p43 = scmp.ne.s32.totalorder %s26, %s42
    %p44 = scmp.eq.s32.totalorder %s18, 0
    %p45 = por %p43, %p44
    %s46 = ssub.s32 %s12, %s19
    %p47 = scmp.eq.s32.totalorder %s46, 0
    %s49 = sadd.s32 %s48, 1
    %s50 = scalar_select %p47, %s48, %s49
    %p53 = pneg %p47
    %p54 = scmp.eq.s32.totalorder %s12, 1
    %p55 = por %p53, %p54
    %p56 = scmp.ne.s32.totalorder %s48, %s51
    %p57 = scmp.eq.s32.totalorder %s12, 0
    %p58 = por %p56, %p57
    %p59 = scmp.ne.s32.totalorder %s48, %s51
    %p60 = scmp.eq.s32.totalorder %s17, 1
    %p61 = por %p59, %p60
    %p62 = scmp.ne.s32.totalorder %s51, %s52
    %p63 = scmp.eq.s32.totalorder %s17, 0
    %p64 = por %p62, %p63
    %p65 = scmp.ne.s32.totalorder %s51, %s52
    %p66 = scmp.eq.s32.totalorder %s18, 1
    %p67 = por %p65, %p66
    %p69 = scmp.ne.s32.totalorder %s52, %s68
    %p70 = scmp.eq.s32.totalorder %s18, 0
    %p71 = por %p69, %p70
    %s73 = sadd.s32 %s72, 1
    %p76 = scmp.eq.s32.totalorder %s12, 1
    %p77 = scmp.ne.s32.totalorder %s72, %s74
    %p78 = scmp.eq.s32.totalorder %s12, 0
    %p79 = por %p77, %p78
    %p80 = scmp.ne.s32.totalorder %s72, %s74
    %p81 = scmp.eq.s32.totalorder %s17, 1
    %p82 = por %p80, %p81
    %p83 = scmp.ne.s32.totalorder %s74, %s75
    %p84 = scmp.eq.s32.totalorder %s17, 0
    %p85 = por %p83, %p84
    %p86 = scmp.ne.s32.totalorder %s74, %s75
    %p87 = scmp.eq.s32.totalorder %s18, 1
    %p88 = por %p86, %p87
    %p90 = scmp.ne.s32.totalorder %s75, %s89
    %p91 = scmp.eq.s32.totalorder %s18, 0
    %p92 = por %p90, %p91
    %s94 = sadd.s32 %s93, 1
    %p97 = scmp.eq.s32.totalorder %s12, 1
    %p98 = scmp.ne.s32.totalorder %s93, %s95
    %p99 = scmp.eq.s32.totalorder %s12, 0
    %p100 = por %p98, %p99
    %p101 = scmp.ne.s32.totalorder %s93, %s95
    %p102 = scmp.eq.s32.totalorder %s17, 1
    %p103 = por %p101, %p102
    %p104 = scmp.ne.s32.totalorder %s95, %s96
    %p105 = scmp.eq.s32.totalorder %s17, 0
    %p106 = por %p104, %p105
    %p107 = scmp.ne.s32.totalorder %s95, %s96
    %p108 = scmp.eq.s32.totalorder %s18, 1
    %p109 = por %p107, %p108
    %p111 = scmp.ne.s32.totalorder %s96, %s110
    %p112 = scmp.eq.s32.totalorder %s18, 0
    %p113 = por %p111, %p112
    %s115 = sadd.s32 %s114, 1
    %p118 = scmp.eq.s32.totalorder %s12, 1
    %p119 = scmp.ne.s32.totalorder %s114, %s116
    %p120 = scmp.eq.s32.totalorder %s12, 0
    %p121 = por %p119, %p120
    %p122 = scmp.ne.s32.totalorder %s114, %s116
    %p123 = scmp.eq.s32.totalorder %s17, 1
    %p124 = por %p122, %p123
    %p125 = scmp.ne.s32.totalorder %s116, %s117
    %p126 = scmp.eq.s32.totalorder %s17, 0
    %p127 = por %p125, %p126
    %p128 = scmp.ne.s32.totalorder %s116, %s117
    %p129 = scmp.eq.s32.totalorder %s18, 1
    %p130 = por %p128, %p129
    %p132 = scmp.ne.s32.totalorder %s117, %s131
    %p133 = scmp.eq.s32.totalorder %s18, 0
    %p134 = por %p132, %p133
    %s136 = sadd.s32 %s135, 1
    %p139 = scmp.eq.s32.totalorder %s12, 1
    %p140 = scmp.ne.s32.totalorder %s135, %s137
    %p141 = scmp.eq.s32.totalorder %s12, 0
    %p142 = por %p140, %p141
    %p143 = scmp.ne.s32.totalorder %s135, %s137
    %p144 = scmp.eq.s32.totalorder %s17, 1
    %p145 = por %p143, %p144
    %p146 = scmp.ne.s32.totalorder %s137, %s138
    %p147 = scmp.eq.s32.totalorder %s17, 0
    %p148 = por %p146, %p147
    %p149 = scmp.ne.s32.totalorder %s137, %s138
    %p150 = scmp.eq.s32.totalorder %s18, 1
    %p151 = por %p149, %p150
    %p153 = scmp.ne.s32.totalorder %s138, %s152
    %p154 = scmp.eq.s32.totalorder %s18, 0
    %p155 = por %p153, %p154
    %s156 = ssub.s32 %s12, %s19
    %p157 = scmp.eq.s32.totalorder %s156, 0
    %s159 = sadd.s32 %s158, 1
    %s160 = scalar_select %p157, %s158, %s159
    %p163 = pneg %p157
    %p164 = scmp.eq.s32.totalorder %s12, 1
    %p165 = por %p163, %p164
    %p166 = scmp.ne.s32.totalorder %s158, %s161
    %p167 = scmp.eq.s32.totalorder %s12, 0
    %p168 = por %p166, %p167
    %p169 = scmp.ne.s32.totalorder %s158, %s161
    %p170 = scmp.eq.s32.totalorder %s17, 1
    %p171 = por %p169, %p170
    %p172 = scmp.ne.s32.totalorder %s161, %s162
    %p173 = scmp.eq.s32.totalorder %s17, 0
    %p174 = por %p172, %p173
    %p175 = scmp.ne.s32.totalorder %s161, %s162
    %p176 = scmp.eq.s32.totalorder %s18, 1
    %p177 = por %p175, %p176
    %p179 = scmp.ne.s32.totalorder %s162, %s178
    %p180 = scmp.eq.s32.totalorder %s18, 0
    %p181 = por %p179, %p180
    %p182 = scmp.le.s32.totalorder 1, %s12
    %p183 = scmp.lt.s32.totalorder %s12, 3
    %p184 = pnand %p182, %p183
    %p185 = pneg %p184
    // Predicated region
    $region9: #{transformer_forward.14} parent=5 // pred_check
      _
    $region10: #{transformer_forward.14} parent=5 // pred_check_branch
      %187 = sbr.rel (%p184) target = $region12
    $region11: #{transformer_forward.14} parent=5 // pred_region
      %s188 = ssub.s32 %s12, 1
      // Predicated region
      $region13: #{transformer_forward.14} parent=11 // pred_check
        %p189 = pneg %p85
      $region14: #{transformer_forward.14} parent=11 // pred_check_branch
        %191 = sbr.rel (%p189) target = $region16
      $region15: #{transformer_forward.14} parent=11 // pred_region
        _
      $region16: #{transformer_forward.14} parent=11 // pred_fallthru
        _
      // Predicated region
      $region17: #{transformer_forward.14} parent=11 // pred_check
        %p192 = pneg %p106
      $region18: #{transformer_forward.14} parent=11 // pred_check_branch
        %194 = sbr.rel (%p192) target = $region20
      $region19: #{transformer_forward.14} parent=11 // pred_region
        _
      $region20: #{transformer_forward.14} parent=11 // pred_fallthru
        _
      // Predicated region
      $region21: #{transformer_forward.14} parent=11 // pred_check
        %p195 = pneg %p127
      $region22: #{transformer_forward.14} parent=11 // pred_check_branch
        %197 = sbr.rel (%p195) target = $region24
      $region23: #{transformer_forward.14} parent=11 // pred_region
        _
      $region24: #{transformer_forward.14} parent=11 // pred_fallthru
        _
      // Predicated region
      $region25: #{transformer_forward.14} parent=11 // pred_check
        %p198 = pneg %p148
      $region26: #{transformer_forward.14} parent=11 // pred_check_branch
        %200 = sbr.rel (%p198) target = $region28
      $region27: #{transformer_forward.14} parent=11 // pred_region
        _
      $region28: #{transformer_forward.14} parent=11 // pred_fallthru
        _
    $region12: #{transformer_forward.14} parent=5 // pred_fallthru
      _
    %p201 = scmp.lt.s32.totalorder %s12, 2
    // Predicated region
    $region29: #{transformer_forward.14} parent=5 // pred_check
      %p202 = pneg %p201
    $region30: #{transformer_forward.14} parent=5 // pred_check_branch
      %204 = sbr.rel (%p202) target = $region32
    $region31: #{transformer_forward.14} parent=5 // pred_region
      // Predicated region
      $region33: #{transformer_forward.14} parent=31 // pred_check
        %p205 = pneg %p32
      $region34: #{transformer_forward.14} parent=31 // pred_check_branch
        %207 = sbr.rel (%p205) target = $region36
      $region35: #{transformer_forward.14} parent=31 // pred_region
        %p208 = scmp.lt.s32.totalorder %s12, 1
        %s209 = scalar_select %p208, %s12, 1
        %s210 = smul.addr %s209, 4
        %s211 = scalar_lea.vmem %s0, %s210
      $region36: #{transformer_forward.14} parent=31 // pred_fallthru
        _
      // Predicated region
      $region37: #{transformer_forward.14} parent=31 // pred_check
        %p212 = pneg %p58
      $region38: #{transformer_forward.14} parent=31 // pred_check_branch
        %214 = sbr.rel (%p212) target = $region40
      $region39: #{transformer_forward.14} parent=31 // pred_region
        %p215 = scmp.lt.s32.totalorder %s12, 1
        %s216 = scalar_select %p215, %s12, 1
        %s217 = smul.addr %s216, 8
        %s218 = scalar_lea.vmem %s1, %s217
      $region40: #{transformer_forward.14} parent=31 // pred_fallthru
        _
    $region32: #{transformer_forward.14} parent=5 // pred_fallthru
      _
    %p219 = scmp.le.s32.totalorder 1, %s12
    %p220 = scmp.lt.s32.totalorder %s12, 3
    %p221 = pnand %p219, %p220
    %p222 = pneg %p221
    // Predicated region
    $region41: #{transformer_forward.14} parent=5 // pred_check
      _
    $region42: #{transformer_forward.14} parent=5 // pred_check_branch
      %224 = sbr.rel (%p221) target = $region44
    $region43: #{transformer_forward.14} parent=5 // pred_region
      %s225 = ssub.s32 %s12, 1
      %p226 = scmp.lt.s32.totalorder %s17, 1
      %s227 = scalar_select %p226, %s17, 1
      %s228 = smul.addr %s227, 4
      %s229 = scalar_lea.vmem %s0, %s228
      %p230 = pneg %p38
      %p231 = pneg %p35
      %p232 = scmp.lt.s32.totalorder %s17, 1
      %s233 = scalar_select %p232, %s17, 1
      %s234 = smul.addr %s233, 8
      %s235 = scalar_lea.vmem %s1, %s234
      %p236 = pneg %p64
      %p237 = pneg %p61
      %p238 = pneg %p85
      %p239 = pneg %p82
      %p240 = pneg %p106
      %p241 = pneg %p103
      %p242 = pneg %p127
      %p243 = pneg %p124
      %p244 = pneg %p148
      %p245 = pneg %p145
      %p246 = pneg %p174
      %p247 = pneg %p171
      %p248 = scmp.lt.s32.totalorder %s17, 1
      %s249 = scalar_select %p248, %s17, 1
      %s250 = smul.addr %s249, 8
      %s251 = scalar_lea.vmem %s6, %s250
      %p252 = scmp.lt.s32.totalorder %s17, 1
      %s253 = scalar_select %p252, %s17, 1
      %s254 = smul.addr %s253, 4
      %s255 = scalar_lea.vmem %s0, %s254
      %p256 = scmp.lt.s32.totalorder %s17, 1
      %s257 = scalar_select %p256, %s17, 1
      %s258 = smul.addr %s257, 8
      %s259 = scalar_lea.vmem %s1, %s258
      %p260 = scmp.lt.s32.totalorder %s17, 1
      %s261 = scalar_select %p260, %s17, 1
      %s262 = smul.addr %s261, 8
      %s263 = scalar_lea.vmem %s6, %s262
      %v265 = vld [vmem:[%s255] sm:$0xf]
      %v266 = vld [vmem:[%s2] sm:$0xf]
      %v267 = vld [vmem:[%s2 + $0x4] sm:$0xf]
      %v268 = vld [vmem:[%s2 + $0x8] sm:$0xf]
      %v269 = vld [vmem:[%s2 + $0xc] sm:$0xf]
      %v270 = vld [vmem:[%s3] sm:$0x1]
      %v272 = vlaneseq
      %v273 = vshrl.u32 %v272, 7
      %v274 = vsub.s32 0, %v273
      %v275 = vrot.slane %v270, %v274
      %v281 = vunpack.c.l.b16 %v266
      %v282 = vunpack.c.l.b16 %v267
      %v283 = vunpack.c.l.b16 %v268
      %v284 = vunpack.c.l.b16 %v269
      %v285 = vpack.c.b16 %v282, %v281
      %v286 = vpack.c.b16 %v284, %v283
      %vm289 = vcmask 261120
      %v291 = vsel %vm289, %v265, 0
      %293 = vmatprep.subr.bf16.mxu0 0
      %294 = vmatpush1.bf16.msra.mxu0 %v285
      %295 = vmatprep.subr.bf16.mxu0 0
      %296 = vmatpush1.bf16.msra.mxu0 %v286
      %297 = vmatprep.subr.bf16.mxu0 0
      %298 = vmatpush1.bf16.msra.mxu0 0
      %299 = vmatprep.subr.bf16.mxu0 0
      %300 = vmatpush1.bf16.msra.mxu0 0
      %301 = vmatprep.subr.bf16.mxu0 0
      %302 = vmatpush1.bf16.msra.mxu0 0
      %303 = vmatprep.subr.bf16.mxu0 0
      %304 = vmatpush1.bf16.msra.mxu0 0
      %305 = vmatprep.subr.bf16.mxu0 0
      %306 = vmatpush1.bf16.msra.mxu0 0
      %307 = vmatprep.subr.bf16.mxu0 0
      %308 = vmatpush1.bf16.msra.mxu0 0
      %309 = vmatprep.subr.bf16.mxu0 0
      %310 = vmatpush1.bf16.msra.mxu0 0
      %311 = vmatprep.subr.bf16.mxu0 0
      %312 = vmatpush1.bf16.msra.mxu0 0
      %313 = vmatprep.subr.bf16.mxu0 0
      %314 = vmatpush1.bf16.msra.mxu0 0
      %315 = vmatprep.subr.bf16.mxu0 0
      %316 = vmatpush1.bf16.msra.mxu0 0
      %317 = vmatprep.subr.bf16.mxu0 0
      %318 = vmatpush1.bf16.msra.mxu0 0
      %319 = vmatprep.subr.bf16.mxu0 0
      %320 = vmatpush1.bf16.msra.mxu0 0
      %321 = vmatprep.subr.bf16.mxu0 0
      %322 = vmatpush1.bf16.msra.mxu0 0
      %323 = vmatprep.subr.bf16.mxu0 0
      %324 = vmatpush1.bf16.msra.mxu0 0
      %325 = vmatprep.mubr.bf16.mxu0 0
      %326 = vmatmul.mubr.bf16.gmra.mrb[0].mxu0 %v291
      %v327 = vpop.f32.mrb[0].mxu0
      %v328 = vadd.f32 %v275, %v327
      %v329 = vpop.f32.mrb[0].mxu0
      %v330 = vpop.f32.mrb[0].mxu0
      %v331 = vpop.f32.mrb[0].mxu0
      %332 = vdwg.mxu0
      %v333 = vld [vmem:[%s259] sm:$0xff]
      %v334 = vadd.f32 %v333, %v328
      %v335 = vld [vmem:[%s4] sm:$0x1]
      %v336 = vld [vmem:[%s5] sm:$0x1]
      %v337 = vsel %vm289, %v334, 0.0
      %338 = vadd.xlane.f32.xlu0 %v337
      %v339 = vpop.xlane.xlu0 %338
      %v340 = vrcp.pop 32.0
      %v341 = vmul.f32 %v339, %v340
      %v342 = vsub.f32 %v334, %v341
      %v343 = vmul.f32 %v342, %v342
      %v344 = vsel %vm289, %v343, 0.0
      %345 = vadd.xlane.f32.xlu0 %v344
      %v346 = vpop.xlane.xlu0 %345
      %v347 = vmul.f32 %v346, %v340
      %v348 = vadd.f32 %v347, 1e-05
      %v349 = vrsqrt.pop %v348
      %v350 = vmul.f32 %v342, %v349
      %v352 = vlaneseq
      %v353 = vshrl.u32 %v352, 7
      %v354 = vsub.s32 0, %v353
      %v355 = vrot.slane %v335, %v354
      %v357 = vmul.f32 %v350, %v355
      %v359 = vlaneseq
      %v360 = vshrl.u32 %v359, 7
      %v361 = vsub.s32 0, %v360
      %v362 = vrot.slane %v336, %v361
      %v364 = vadd.f32 %v357, %v362
      %365 = vst.msk [vmem:[%s263] sm:$0xff] %vm289, %v364
      %p366 = scmp.lt.s32.totalorder %s17, 1
      %s367 = scalar_select %p366, %s17, 1
      %s368 = smul.addr %s367, 8
      %s369 = scalar_lea.vmem %s6, %s368
      // Predicated region
      $region45: #{transformer_forward.14} parent=43 // pred_check
        %p370 = pneg %p171
      $region46: #{transformer_forward.14} parent=43 // pred_check_branch
        %372 = sbr.rel (%p370) target = $region48
      $region47: #{transformer_forward.14} parent=43 // pred_region
        _
      $region48: #{transformer_forward.14} parent=43 // pred_fallthru
        _
    $region44: #{transformer_forward.14} parent=5 // pred_fallthru
      _
    %p373 = scmp.le.s32.totalorder 2, %s12
    // Predicated region
    $region49: #{transformer_forward.14} parent=5 // pred_check
      %p374 = pneg %p373
    $region50: #{transformer_forward.14} parent=5 // pred_check_branch
      %376 = sbr.rel (%p374) target = $region52
    $region51: #{transformer_forward.14} parent=5 // pred_region
      %s377 = ssub.s32 %s12, 2
      // Predicated region
      $region53: #{transformer_forward.14} parent=51 // pred_check
        %p378 = pneg %p177
      $region54: #{transformer_forward.14} parent=51 // pred_check_branch
        %380 = sbr.rel (%p378) target = $region56
      $region55: #{transformer_forward.14} parent=51 // pred_region
        %p381 = scmp.lt.s32.totalorder %s18, 1
        %s382 = scalar_select %p381, %s18, 1
        %s383 = smul.addr %s382, 8
        %s384 = scalar_lea.vmem %s6, %s383
      $region56: #{transformer_forward.14} parent=51 // pred_fallthru
        _
    $region52: #{transformer_forward.14} parent=5 // pred_fallthru
      _
  $region6: #{transformer_forward.14} parent=0 // loop_footer
    %s16 = sadd.s32 1, %s12
  $region7: #{transformer_forward.14} parent=0 // loop_footer_branch
    %11 = sbr.rel target = $region3
  $region8: #{transformer_forward.14} parent=0 // loop_exit
    _

// kernel: transformer_forward.15
$region0: #{transformer_forward.15}
  #allocation0 [shape = 'u32[]', space=smem, size = 0x4, offset = 0x4, fixed_abs, tag = 'smem constant byte address 0x4 - core index']
  #allocation1 [shape = 'u32[144,128]{1,0:T(1,128)}', space=vmem, size = 0x12000, scoped, tag = 'internal scratch']
  %s0 = inlined_call_operand.vmem [shape: f32[16,32], index: 0, kind: input, shape index: {}]
  %s1 = inlined_call_operand.vmem [shape: bf16[32,64], index: 1, kind: input, shape index: {}]
  %s2 = inlined_call_operand.vmem [shape: f32[1,64], index: 2, kind: input, shape index: {}]
  %s3 = inlined_call_operand.vmem [shape: bf16[64,32], index: 3, kind: input, shape index: {}]
  %s4 = inlined_call_operand.vmem [shape: f32[1,32], index: 4, kind: input, shape index: {}]
  %s5 = inlined_call_operand.vmem [shape: f32[1,32], index: 5, kind: input, shape index: {}]
  %s6 = inlined_call_operand.vmem [shape: f32[1,32], index: 6, kind: input, shape index: {}]
  %s7 = inlined_call_operand.vmem [shape: f32[16,32], index: 7, kind: output, shape index: {}]
  %s8 = sld [smem:[#allocation0]]
  $region61: #{transformer_forward.15} parent=0
    _
  %s10 = ssub.s32 1, %s8
  %s11 = scalar_select 0, %s10, %s8
  loop: start=0, step=1, limit=4
  $region2: #{transformer_forward.15} parent=0 // loop_pre_header
    _
  $region3: #{transformer_forward.15} parent=0 // loop_header
    %s13 = sphi 0, %s17
    %p14 = scmp.ge.s32.totalorder %s13, 4
    %s23 = sphi 0, %s25
    %s26 = sphi 0, %s23
    %s27 = sphi 0, %s26
    %s43 = sphi 0, %s27
    %s47 = sphi 0, %s47
    %s49 = sphi 0, %s47
    %s50 = sphi 0, %s49
    %s64 = sphi 0, %s50
    %s68 = sphi 0, %s68
    %s70 = sphi 0, %s68
    %s71 = sphi 0, %s70
    %s85 = sphi 0, %s71
    %s89 = sphi 0, %s89
    %s91 = sphi 0, %s89
    %s92 = sphi 0, %s91
    %s106 = sphi 0, %s92
    %s110 = sphi 0, %s110
    %s112 = sphi 0, %s110
    %s113 = sphi 0, %s112
    %s127 = sphi 0, %s113
    %s131 = sphi 0, %s131
    %s133 = sphi 0, %s131
    %s134 = sphi 0, %s133
    %s148 = sphi 0, %s134
    %s152 = sphi 0, %s152
    %s154 = sphi 0, %s152
    %s155 = sphi 0, %s154
    %s169 = sphi 0, %s155
    %s175 = sphi 0, %s177
    %s178 = sphi 0, %s175
    %s179 = sphi 0, %s178
    %s195 = sphi 0, %s179
  $region4: #{transformer_forward.15} parent=0 // loop_header_branch
    %16 = sbr.rel (%p14) target = $region8
  $region5: #{transformer_forward.15} parent=0 // loop_body
    %s18 = ssub.s32 %s13, 1
    %s19 = ssub.s32 %s13, 2
    %s20 = sadd.s32 %s13, 1
    %s21 = ssub.s32 %s13, %s20
    %p22 = scmp.eq.s32.totalorder %s21, 0
    %s24 = sadd.s32 %s23, 1
    %s25 = scalar_select %p22, %s23, %s24
    %p28 = pneg %p22
    %p29 = scmp.eq.s32.totalorder %s13, 1
    %p30 = por %p28, %p29
    %p31 = scmp.ne.s32.totalorder %s23, %s26
    %p32 = scmp.eq.s32.totalorder %s13, 0
    %p33 = por %p31, %p32
    %p34 = scmp.ne.s32.totalorder %s23, %s26
    %p35 = scmp.eq.s32.totalorder %s18, 1
    %p36 = por %p34, %p35
    %p37 = scmp.ne.s32.totalorder %s26, %s27
    %p38 = scmp.eq.s32.totalorder %s18, 0
    %p39 = por %p37, %p38
    %p40 = scmp.ne.s32.totalorder %s26, %s27
    %p41 = scmp.eq.s32.totalorder %s19, 1
    %p42 = por %p40, %p41
    %p44 = scmp.ne.s32.totalorder %s27, %s43
    %p45 = scmp.eq.s32.totalorder %s19, 0
    %p46 = por %p44, %p45
    %s48 = sadd.s32 %s47, 1
    %p51 = scmp.eq.s32.totalorder %s13, 1
    %p52 = scmp.ne.s32.totalorder %s47, %s49
    %p53 = scmp.eq.s32.totalorder %s13, 0
    %p54 = por %p52, %p53
    %p55 = scmp.ne.s32.totalorder %s47, %s49
    %p56 = scmp.eq.s32.totalorder %s18, 1
    %p57 = por %p55, %p56
    %p58 = scmp.ne.s32.totalorder %s49, %s50
    %p59 = scmp.eq.s32.totalorder %s18, 0
    %p60 = por %p58, %p59
    %p61 = scmp.ne.s32.totalorder %s49, %s50
    %p62 = scmp.eq.s32.totalorder %s19, 1
    %p63 = por %p61, %p62
    %p65 = scmp.ne.s32.totalorder %s50, %s64
    %p66 = scmp.eq.s32.totalorder %s19, 0
    %p67 = por %p65, %p66
    %s69 = sadd.s32 %s68, 1
    %p72 = scmp.eq.s32.totalorder %s13, 1
    %p73 = scmp.ne.s32.totalorder %s68, %s70
    %p74 = scmp.eq.s32.totalorder %s13, 0
    %p75 = por %p73, %p74
    %p76 = scmp.ne.s32.totalorder %s68, %s70
    %p77 = scmp.eq.s32.totalorder %s18, 1
    %p78 = por %p76, %p77
    %p79 = scmp.ne.s32.totalorder %s70, %s71
    %p80 = scmp.eq.s32.totalorder %s18, 0
    %p81 = por %p79, %p80
    %p82 = scmp.ne.s32.totalorder %s70, %s71
    %p83 = scmp.eq.s32.totalorder %s19, 1
    %p84 = por %p82, %p83
    %p86 = scmp.ne.s32.totalorder %s71, %s85
    %p87 = scmp.eq.s32.totalorder %s19, 0
    %p88 = por %p86, %p87
    %s90 = sadd.s32 %s89, 1
    %p93 = scmp.eq.s32.totalorder %s13, 1
    %p94 = scmp.ne.s32.totalorder %s89, %s91
    %p95 = scmp.eq.s32.totalorder %s13, 0
    %p96 = por %p94, %p95
    %p97 = scmp.ne.s32.totalorder %s89, %s91
    %p98 = scmp.eq.s32.totalorder %s18, 1
    %p99 = por %p97, %p98
    %p100 = scmp.ne.s32.totalorder %s91, %s92
    %p101 = scmp.eq.s32.totalorder %s18, 0
    %p102 = por %p100, %p101
    %p103 = scmp.ne.s32.totalorder %s91, %s92
    %p104 = scmp.eq.s32.totalorder %s19, 1
    %p105 = por %p103, %p104
    %p107 = scmp.ne.s32.totalorder %s92, %s106
    %p108 = scmp.eq.s32.totalorder %s19, 0
    %p109 = por %p107, %p108
    %s111 = sadd.s32 %s110, 1
    %p114 = scmp.eq.s32.totalorder %s13, 1
    %p115 = scmp.ne.s32.totalorder %s110, %s112
    %p116 = scmp.eq.s32.totalorder %s13, 0
    %p117 = por %p115, %p116
    %p118 = scmp.ne.s32.totalorder %s110, %s112
    %p119 = scmp.eq.s32.totalorder %s18, 1
    %p120 = por %p118, %p119
    %p121 = scmp.ne.s32.totalorder %s112, %s113
    %p122 = scmp.eq.s32.totalorder %s18, 0
    %p123 = por %p121, %p122
    %p124 = scmp.ne.s32.totalorder %s112, %s113
    %p125 = scmp.eq.s32.totalorder %s19, 1
    %p126 = por %p124, %p125
    %p128 = scmp.ne.s32.totalorder %s113, %s127
    %p129 = scmp.eq.s32.totalorder %s19, 0
    %p130 = por %p128, %p129
    %s132 = sadd.s32 %s131, 1
    %p135 = scmp.eq.s32.totalorder %s13, 1
    %p136 = scmp.ne.s32.totalorder %s131, %s133
    %p137 = scmp.eq.s32.totalorder %s13, 0
    %p138 = por %p136, %p137
    %p139 = scmp.ne.s32.totalorder %s131, %s133
    %p140 = scmp.eq.s32.totalorder %s18, 1
    %p141 = por %p139, %p140
    %p142 = scmp.ne.s32.totalorder %s133, %s134
    %p143 = scmp.eq.s32.totalorder %s18, 0
    %p144 = por %p142, %p143
    %p145 = scmp.ne.s32.totalorder %s133, %s134
    %p146 = scmp.eq.s32.totalorder %s19, 1
    %p147 = por %p145, %p146
    %p149 = scmp.ne.s32.totalorder %s134, %s148
    %p150 = scmp.eq.s32.totalorder %s19, 0
    %p151 = por %p149, %p150
    %s153 = sadd.s32 %s152, 1
    %p156 = scmp.eq.s32.totalorder %s13, 1
    %p157 = scmp.ne.s32.totalorder %s152, %s154
    %p158 = scmp.eq.s32.totalorder %s13, 0
    %p159 = por %p157, %p158
    %p160 = scmp.ne.s32.totalorder %s152, %s154
    %p161 = scmp.eq.s32.totalorder %s18, 1
    %p162 = por %p160, %p161
    %p163 = scmp.ne.s32.totalorder %s154, %s155
    %p164 = scmp.eq.s32.totalorder %s18, 0
    %p165 = por %p163, %p164
    %p166 = scmp.ne.s32.totalorder %s154, %s155
    %p167 = scmp.eq.s32.totalorder %s19, 1
    %p168 = por %p166, %p167
    %p170 = scmp.ne.s32.totalorder %s155, %s169
    %p171 = scmp.eq.s32.totalorder %s19, 0
    %p172 = por %p170, %p171
    %s173 = ssub.s32 %s13, %s20
    %p174 = scmp.eq.s32.totalorder %s173, 0
    %s176 = sadd.s32 %s175, 1
    %s177 = scalar_select %p174, %s175, %s176
    %p180 = pneg %p174
    %p181 = scmp.eq.s32.totalorder %s13, 1
    %p182 = por %p180, %p181
    %p183 = scmp.ne.s32.totalorder %s175, %s178
    %p184 = scmp.eq.s32.totalorder %s13, 0
    %p185 = por %p183, %p184
    %p186 = scmp.ne.s32.totalorder %s175, %s178
    %p187 = scmp.eq.s32.totalorder %s18, 1
    %p188 = por %p186, %p187
    %p189 = scmp.ne.s32.totalorder %s178, %s179
    %p190 = scmp.eq.s32.totalorder %s18, 0
    %p191 = por %p189, %p190
    %p192 = scmp.ne.s32.totalorder %s178, %s179
    %p193 = scmp.eq.s32.totalorder %s19, 1
    %p194 = por %p192, %p193
    %p196 = scmp.ne.s32.totalorder %s179, %s195
    %p197 = scmp.eq.s32.totalorder %s19, 0
    %p198 = por %p196, %p197
    %p199 = scmp.le.s32.totalorder 1, %s13
    %p200 = scmp.lt.s32.totalorder %s13, 3
    %p201 = pnand %p199, %p200
    %p202 = pneg %p201
    // Predicated region
    $region9: #{transformer_forward.15} parent=5 // pred_check
      _
    $region10: #{transformer_forward.15} parent=5 // pred_check_branch
      %204 = sbr.rel (%p201) target = $region12
    $region11: #{transformer_forward.15} parent=5 // pred_region
      %s205 = ssub.s32 %s13, 1
      // Predicated region
      $region13: #{transformer_forward.15} parent=11 // pred_check
        %p206 = pneg %p60
      $region14: #{transformer_forward.15} parent=11 // pred_check_branch
        %208 = sbr.rel (%p206) target = $region16
      $region15: #{transformer_forward.15} parent=11 // pred_region
        _
      $region16: #{transformer_forward.15} parent=11 // pred_fallthru
        _
      // Predicated region
      $region17: #{transformer_forward.15} parent=11 // pred_check
        %p209 = pneg %p81
      $region18: #{transformer_forward.15} parent=11 // pred_check_branch
        %211 = sbr.rel (%p209) target = $region20
      $region19: #{transformer_forward.15} parent=11 // pred_region
        _
      $region20: #{transformer_forward.15} parent=11 // pred_fallthru
        _
      // Predicated region
      $region21: #{transformer_forward.15} parent=11 // pred_check
        %p212 = pneg %p102
      $region22: #{transformer_forward.15} parent=11 // pred_check_branch
        %214 = sbr.rel (%p212) target = $region24
      $region23: #{transformer_forward.15} parent=11 // pred_region
        _
      $region24: #{transformer_forward.15} parent=11 // pred_fallthru
        _
      // Predicated region
      $region25: #{transformer_forward.15} parent=11 // pred_check
        %p215 = pneg %p123
      $region26: #{transformer_forward.15} parent=11 // pred_check_branch
        %217 = sbr.rel (%p215) target = $region28
      $region27: #{transformer_forward.15} parent=11 // pred_region
        _
      $region28: #{transformer_forward.15} parent=11 // pred_fallthru
        _
      // Predicated region
      $region29: #{transformer_forward.15} parent=11 // pred_check
        %p218 = pneg %p144
      $region30: #{transformer_forward.15} parent=11 // pred_check_branch
        %220 = sbr.rel (%p218) target = $region32
      $region31: #{transformer_forward.15} parent=11 // pred_region
        _
      $region32: #{transformer_forward.15} parent=11 // pred_fallthru
        _
      // Predicated region
      $region33: #{transformer_forward.15} parent=11 // pred_check
        %p221 = pneg %p165
      $region34: #{transformer_forward.15} parent=11 // pred_check_branch
        %223 = sbr.rel (%p221) target = $region36
      $region35: #{transformer_forward.15} parent=11 // pred_region
        _
      $region36: #{transformer_forward.15} parent=11 // pred_fallthru
        _
    $region12: #{transformer_forward.15} parent=5 // pred_fallthru
      _
    %p224 = scmp.lt.s32.totalorder %s13, 2
    // Predicated region
    $region37: #{transformer_forward.15} parent=5 // pred_check
      %p225 = pneg %p224
    $region38: #{transformer_forward.15} parent=5 // pred_check_branch
      %227 = sbr.rel (%p225) target = $region40
    $region39: #{transformer_forward.15} parent=5 // pred_region
      // Predicated region
      $region41: #{transformer_forward.15} parent=39 // pred_check
        %p228 = pneg %p33
      $region42: #{transformer_forward.15} parent=39 // pred_check_branch
        %230 = sbr.rel (%p228) target = $region44
      $region43: #{transformer_forward.15} parent=39 // pred_region
        %p231 = scmp.lt.s32.totalorder %s13, 1
        %s232 = scalar_select %p231, %s13, 1
        %s233 = smul.addr %s232, 8
        %s234 = scalar_lea.vmem %s0, %s233
      $region44: #{transformer_forward.15} parent=39 // pred_fallthru
        _
    $region40: #{transformer_forward.15} parent=5 // pred_fallthru
      _
    %p235 = scmp.le.s32.totalorder 1, %s13
    %p236 = scmp.lt.s32.totalorder %s13, 3
    %p237 = pnand %p235, %p236
    %p238 = pneg %p237
    // Predicated region
    $region45: #{transformer_forward.15} parent=5 // pred_check
      _
    $region46: #{transformer_forward.15} parent=5 // pred_check_branch
      %240 = sbr.rel (%p237) target = $region48
    $region47: #{transformer_forward.15} parent=5 // pred_region
      %s241 = ssub.s32 %s13, 1
      %p242 = scmp.lt.s32.totalorder %s18, 1
      %s243 = scalar_select %p242, %s18, 1
      %s244 = smul.addr %s243, 8
      %s245 = scalar_lea.vmem %s0, %s244
      %p246 = pneg %p39
      %p247 = pneg %p36
      %p248 = pneg %p60
      %p249 = pneg %p57
      %p250 = pneg %p81
      %p251 = pneg %p78
      %p252 = pneg %p102
      %p253 = pneg %p99
      %p254 = pneg %p123
      %p255 = pneg %p120
      %p256 = pneg %p144
      %p257 = pneg %p141
      %p258 = pneg %p165
      %p259 = pneg %p162
      %p260 = pneg %p191
      %p261 = pneg %p188
      %p262 = scmp.lt.s32.totalorder %s18, 1
      %s263 = scalar_select %p262, %s18, 1
      %s264 = smul.addr %s263, 8
      %s265 = scalar_lea.vmem %s7, %s264
      %p266 = scmp.lt.s32.totalorder %s18, 1
      %s267 = scalar_select %p266, %s18, 1
      %s268 = smul.addr %s267, 8
      %s269 = scalar_lea.vmem %s0, %s268
      %p270 = scmp.lt.s32.totalorder %s18, 1
      %s271 = scalar_select %p270, %s18, 1
      %s272 = smul.addr %s271, 8
      %s273 = scalar_lea.vmem %s7, %s272
      %v275 = vld [vmem:[%s269] sm:$0xff]
      %v276 = vpack.c.bf16 %v275, %v275
      %v277 = vld [vmem:[%s1] sm:$0xf]
      %v278 = vld [vmem:[%s1 + $0x4] sm:$0xf]
      %v279 = vld [vmem:[%s1 + $0x8] sm:$0xf]
      %v280 = vld [vmem:[%s1 + $0xc] sm:$0xf]
      %v281 = vld [vmem:[%s2] sm:$0x1]
      %v283 = vlaneseq
      %v284 = vshrl.u32 %v283, 7
      %v285 = vsub.s32 0, %v284
      %v286 = vrot.slane %v281, %v285
      %v292 = vunpack.c.l.b16 %v277
      %v293 = vunpack.c.l.b16 %v278
      %v294 = vunpack.c.l.b16 %v279
      %v295 = vunpack.c.l.b16 %v280
      %v296 = vpack.c.b16 %v293, %v292
      %v297 = vpack.c.b16 %v295, %v294
      %vm300 = vcmask 261120
      %v302 = vsel %vm300, %v276, 0
      %304 = vmatprep.subr.bf16.mxu0 0
      %305 = vmatpush1.bf16.msra.mxu0 %v296
      %306 = vmatprep.subr.bf16.mxu0 0
      %307 = vmatpush1.bf16.msra.mxu0 %v297
      %308 = vmatprep.subr.bf16.mxu0 0
      %309 = vmatpush1.bf16.msra.mxu0 0
      %310 = vmatprep.subr.bf16.mxu0 0
      %311 = vmatpush1.bf16.msra.mxu0 0
      %312 = vmatprep.subr.bf16.mxu0 0
      %313 = vmatpush1.bf16.msra.mxu0 0
      %314 = vmatprep.subr.bf16.mxu0 0
      %315 = vmatpush1.bf16.msra.mxu0 0
      %316 = vmatprep.subr.bf16.mxu0 0
      %317 = vmatpush1.bf16.msra.mxu0 0
      %318 = vmatprep.subr.bf16.mxu0 0
      %319 = vmatpush1.bf16.msra.mxu0 0
      %320 = vmatprep.subr.bf16.mxu0 0
      %321 = vmatpush1.bf16.msra.mxu0 0
      %322 = vmatprep.subr.bf16.mxu0 0
      %323 = vmatpush1.bf16.msra.mxu0 0
      %324 = vmatprep.subr.bf16.mxu0 0
      %325 = vmatpush1.bf16.msra.mxu0 0
      %326 = vmatprep.subr.bf16.mxu0 0
      %327 = vmatpush1.bf16.msra.mxu0 0
      %328 = vmatprep.subr.bf16.mxu0 0
      %329 = vmatpush1.bf16.msra.mxu0 0
      %330 = vmatprep.subr.bf16.mxu0 0
      %331 = vmatpush1.bf16.msra.mxu0 0
      %332 = vmatprep.subr.bf16.mxu0 0
      %333 = vmatpush1.bf16.msra.mxu0 0
      %334 = vmatprep.subr.bf16.mxu0 0
      %335 = vmatpush1.bf16.msra.mxu0 0
      %336 = vmatprep.mubr.bf16.mxu0 0
      %337 = vmatmul.mubr.bf16.gmra.mrb[0].mxu0 %v302
      %v338 = vpop.f32.mrb[0].mxu0
      %v339 = vadd.f32 %v286, %v338
      %v340 = vpop.f32.mrb[0].mxu0
      %v341 = vpop.f32.mrb[0].mxu0
      %v342 = vpop.f32.mrb[0].mxu0
      %343 = vdwg.mxu0
      %v344 = vmax.f32 %v339, 0.0
      %v345 = vpack.c.bf16 %v344, %v344
      %v346 = vld [vmem:[%s3] sm:$0xf]
      %v347 = vld [vmem:[%s3 + $0x4] sm:$0xf]
      %v348 = vld [vmem:[%s3 + $0x8] sm:$0xf]
      %v349 = vld [vmem:[%s3 + $0xc] sm:$0xf]
      %v350 = vld [vmem:[%s3 + $0x10] sm:$0xf]
      %v351 = vld [vmem:[%s3 + $0x14] sm:$0xf]
      %v352 = vld [vmem:[%s3 + $0x18] sm:$0xf]
      %v353 = vld [vmem:[%s3 + $0x1c] sm:$0xf]
      %v354 = vld [vmem:[%s4] sm:$0x1]
      %v356 = vlaneseq
      %v357 = vshrl.u32 %v356, 7
      %v358 = vsub.s32 0, %v357
      %v359 = vrot.slane %v354, %v358
      %v369 = vunpack.c.l.b16 %v346
      %v370 = vunpack.c.l.b16 %v347
      %v371 = vunpack.c.l.b16 %v348
      %v372 = vunpack.c.l.b16 %v349
      %v373 = vunpack.c.l.b16 %v350
      %v374 = vunpack.c.l.b16 %v351
      %v375 = vunpack.c.l.b16 %v352
      %v376 = vunpack.c.l.b16 %v353
      %v377 = vpack.c.b16 %v370, %v369
      %v378 = vpack.c.b16 %v372, %v371
      %v379 = vpack.c.b16 %v374, %v373
      %v380 = vpack.c.b16 %v376, %v375
      %vm385 = vcmask 523264
      %v387 = vsel %vm385, %v345, 0
      %389 = vmatprep.subr.bf16.mxu0 0
      %390 = vmatpush1.bf16.msra.mxu0 %v377
      %391 = vmatprep.subr.bf16.mxu0 0
      %392 = vmatpush1.bf16.msra.mxu0 %v378
      %393 = vmatprep.subr.bf16.mxu0 0
      %394 = vmatpush1.bf16.msra.mxu0 %v379
      %395 = vmatprep.subr.bf16.mxu0 0
      %396 = vmatpush1.bf16.msra.mxu0 %v380
      %397 = vmatprep.subr.bf16.mxu0 0
      %398 = vmatpush1.bf16.msra.mxu0 0
      %399 = vmatprep.subr.bf16.mxu0 0
      %400 = vmatpush1.bf16.msra.mxu0 0
      %401 = vmatprep.subr.bf16.mxu0 0
      %402 = vmatpush1.bf16.msra.mxu0 0
      %403 = vmatprep.subr.bf16.mxu0 0
      %404 = vmatpush1.bf16.msra.mxu0 0
      %405 = vmatprep.subr.bf16.mxu0 0
      %406 = vmatpush1.bf16.msra.mxu0 0
      %407 = vmatprep.subr.bf16.mxu0 0
      %408 = vmatpush1.bf16.msra.mxu0 0
      %409 = vmatprep.subr.bf16.mxu0 0
      %410 = vmatpush1.bf16.msra.mxu0 0
      %411 = vmatprep.subr.bf16.mxu0 0
      %412 = vmatpush1.bf16.msra.mxu0 0
      %413 = vmatprep.subr.bf16.mxu0 0
      %414 = vmatpush1.bf16.msra.mxu0 0
      %415 = vmatprep.subr.bf16.mxu0 0
      %416 = vmatpush1.bf16.msra.mxu0 0
      %417 = vmatprep.subr.bf16.mxu0 0
      %418 = vmatpush1.bf16.msra.mxu0 0
      %419 = vmatprep.subr.bf16.mxu0 0
      %420 = vmatpush1.bf16.msra.mxu0 0
      %421 = vmatprep.mubr.bf16.mxu0 0
      %422 = vmatmul.mubr.bf16.gmra.mrb[0].mxu0 %v387
      %v423 = vpop.f32.mrb[0].mxu0
      %v424 = vadd.f32 %v359, %v423
      %v425 = vpop.f32.mrb[0].mxu0
      %v426 = vpop.f32.mrb[0].mxu0
      %v427 = vpop.f32.mrb[0].mxu0
      %428 = vdwg.mxu0
      %v429 = vadd.f32 %v275, %v424
      %v430 = vld [vmem:[%s5] sm:$0x1]
      %v431 = vld [vmem:[%s6] sm:$0x1]
      %v432 = vsel %vm300, %v429, 0.0
      %433 = vadd.xlane.f32.xlu0 %v432
      %v434 = vpop.xlane.xlu0 %433
      %v435 = vrcp.pop 32.0
      %v436 = vmul.f32 %v434, %v435
      %v437 = vsub.f32 %v429, %v436
      %v438 = vmul.f32 %v437, %v437
      %v439 = vsel %vm300, %v438, 0.0
      %440 = vadd.xlane.f32.xlu0 %v439
      %v441 = vpop.xlane.xlu0 %440
      %v442 = vmul.f32 %v441, %v435
      %v443 = vadd.f32 %v442, 1e-05
      %v444 = vrsqrt.pop %v443
      %v445 = vmul.f32 %v437, %v444
      %v447 = vlaneseq
      %v448 = vshrl.u32 %v447, 7
      %v449 = vsub.s32 0, %v448
      %v450 = vrot.slane %v430, %v449
      %v452 = vmul.f32 %v445, %v450
      %v454 = vlaneseq
      %v455 = vshrl.u32 %v454, 7
      %v456 = vsub.s32 0, %v455
      %v457 = vrot.slane %v431, %v456
      %v459 = vadd.f32 %v452, %v457
      %460 = vst.msk [vmem:[%s273] sm:$0xff] %vm300, %v459
      %p461 = scmp.lt.s32.totalorder %s18, 1
      %s462 = scalar_select %p461, %s18, 1
      %s463 = smul.addr %s462, 8
      %s464 = scalar_lea.vmem %s7, %s463
      // Predicated region
      $region49: #{transformer_forward.15} parent=47 // pred_check
        %p465 = pneg %p188
      $region50: #{transformer_forward.15} parent=47 // pred_check_branch
        %467 = sbr.rel (%p465) target = $region52
      $region51: #{transformer_forward.15} parent=47 // pred_region
        _
      $region52: #{transformer_forward.15} parent=47 // pred_fallthru
        _
    $region48: #{transformer_forward.15} parent=5 // pred_fallthru
      _
    %p468 = scmp.le.s32.totalorder 2, %s13
    // Predicated region
    $region53: #{transformer_forward.15} parent=5 // pred_check
      %p469 = pneg %p468
    $region54: #{transformer_forward.15} parent=5 // pred_check_branch
      %471 = sbr.rel (%p469) target = $region56
    $region55: #{transformer_forward.15} parent=5 // pred_region
      %s472 = ssub.s32 %s13, 2
      // Predicated region
      $region57: #{transformer_forward.15} parent=55 // pred_check
        %p473 = pneg %p194
      $region58: #{transformer_forward.15} parent=55 // pred_check_branch
        %475 = sbr.rel (%p473) target = $region60
      $region59: #{transformer_forward.15} parent=55 // pred_region
        %p476 = scmp.lt.s32.totalorder %s19, 1
        %s477 = scalar_select %p476, %s19, 1
        %s478 = smul.addr %s477, 8
        %s479 = scalar_lea.vmem %s7, %s478
      $region60: #{transformer_forward.15} parent=55 // pred_fallthru
        _
    $region56: #{transformer_forward.15} parent=5 // pred_fallthru
      _
  $region6: #{transformer_forward.15} parent=0 // loop_footer
    %s17 = sadd.s32 1, %s13
  $region7: #{transformer_forward.15} parent=0 // loop_footer_branch
    %12 = sbr.rel target = $region3
  $region8: #{transformer_forward.15} parent=0 // loop_exit
    _

// kernel: transformer_forward.20
$region0: #{transformer_forward.20}
  #allocation0 [shape = 'u32[]', space=smem, size = 0x4, offset = 0x4, fixed_abs, tag = 'smem constant byte address 0x4 - core index']
  #allocation1 [shape = 'u32[144,128]{1,0:T(1,128)}', space=vmem, size = 0x12000, scoped, tag = 'internal scratch']
  %s0 = inlined_call_operand.vmem [shape: f32[2,32], index: 0, kind: input, shape index: {}]
  %s1 = inlined_call_operand.vmem [shape: bf16[32,32], index: 1, kind: input, shape index: {}]
  %s2 = inlined_call_operand.vmem [shape: f32[1,32], index: 2, kind: input, shape index: {}]
  %s3 = inlined_call_operand.vmem [shape: f32[2,32], index: 3, kind: output, shape index: {}]
  %s4 = sld [smem:[#allocation0]]
  $region22: #{transformer_forward.20} parent=0
    _
  %s6 = ssub.s32 1, %s4
  %s7 = scalar_select 0, %s6, %s4
  // Predicated region
  $region2: #{transformer_forward.20} parent=0 // pred_check
    _
  $region3: #{transformer_forward.20} parent=0 // pred_check_branch
    %9 = sbr.rel (0) target = $region5
  $region4: #{transformer_forward.20} parent=0 // pred_region
    _
  $region5: #{transformer_forward.20} parent=0 // pred_fallthru
    _
  // Predicated region
  $region6: #{transformer_forward.20} parent=0 // pred_check
    _
  $region7: #{transformer_forward.20} parent=0 // pred_check_branch
    %11 = sbr.rel (0) target = $region9
  $region8: #{transformer_forward.20} parent=0 // pred_region
    _
  $region9: #{transformer_forward.20} parent=0 // pred_fallthru
    _
  // Predicated region
  $region10: #{transformer_forward.20} parent=0 // pred_check
    _
  $region11: #{transformer_forward.20} parent=0 // pred_check_branch
    %13 = sbr.rel (0) target = $region13
  $region12: #{transformer_forward.20} parent=0 // pred_region
    _
  $region13: #{transformer_forward.20} parent=0 // pred_fallthru
    _
  %v15 = vld [vmem:[%s0] sm:$0x3]
  %v16 = vpack.c.bf16 %v15, %v15
  %v17 = vld [vmem:[%s1] sm:$0xf]
  %v18 = vld [vmem:[%s1 + $0x4] sm:$0xf]
  %v19 = vld [vmem:[%s1 + $0x8] sm:$0xf]
  %v20 = vld [vmem:[%s1 + $0xc] sm:$0xf]
  %v21 = vld [vmem:[%s2] sm:$0x1]
  %v23 = vlaneseq
  %v24 = vshrl.u32 %v23, 7
  %v25 = vsub.s32 0, %v24
  %v26 = vrot.slane %v21, %v25
  %v32 = vunpack.c.l.b16 %v17
  %v33 = vunpack.c.l.b16 %v18
  %v34 = vunpack.c.l.b16 %v19
  %v35 = vunpack.c.l.b16 %v20
  %v36 = vpack.c.b16 %v33, %v32
  %v37 = vpack.c.b16 %v35, %v34
  %vm40 = vcmask 261120
  %v42 = vsel %vm40, %v16, 0
  %44 = vmatprep.subr.bf16.mxu0 0
  %45 = vmatpush1.bf16.msra.mxu0 %v36
  %46 = vmatprep.subr.bf16.mxu0 0
  %47 = vmatpush1.bf16.msra.mxu0 %v37
  %48 = vmatprep.subr.bf16.mxu0 0
  %49 = vmatpush1.bf16.msra.mxu0 0
  %50 = vmatprep.subr.bf16.mxu0 0
  %51 = vmatpush1.bf16.msra.mxu0 0
  %52 = vmatprep.subr.bf16.mxu0 0
  %53 = vmatpush1.bf16.msra.mxu0 0
  %54 = vmatprep.subr.bf16.mxu0 0
  %55 = vmatpush1.bf16.msra.mxu0 0
  %56 = vmatprep.subr.bf16.mxu0 0
  %57 = vmatpush1.bf16.msra.mxu0 0
  %58 = vmatprep.subr.bf16.mxu0 0
  %59 = vmatpush1.bf16.msra.mxu0 0
  %60 = vmatprep.subr.bf16.mxu0 0
  %61 = vmatpush1.bf16.msra.mxu0 0
  %62 = vmatprep.subr.bf16.mxu0 0
  %63 = vmatpush1.bf16.msra.mxu0 0
  %64 = vmatprep.subr.bf16.mxu0 0
  %65 = vmatpush1.bf16.msra.mxu0 0
  %66 = vmatprep.subr.bf16.mxu0 0
  %67 = vmatpush1.bf16.msra.mxu0 0
  %68 = vmatprep.subr.bf16.mxu0 0
  %69 = vmatpush1.bf16.msra.mxu0 0
  %70 = vmatprep.subr.bf16.mxu0 0
  %71 = vmatpush1.bf16.msra.mxu0 0
  %72 = vmatprep.subr.bf16.mxu0 0
  %73 = vmatpush1.bf16.msra.mxu0 0
  %74 = vmatprep.subr.bf16.mxu0 0
  %75 = vmatpush1.bf16.msra.mxu0 0
  %76 = vmatprep.mubr.bf16.mxu0 0
  %77 = vmatmul.mubr.bf16.gmra.mrb[0].mxu0 %v42
  %v78 = vpop.f32.mrb[0].mxu0
  %v79 = vadd.f32 %v26, %v78
  %v80 = vpop.f32.mrb[0].mxu0
  %v81 = vpop.f32.mrb[0].mxu0
  %v82 = vpop.f32.mrb[0].mxu0
  %83 = vdwg.mxu0
  %vm84 = vcmask 254976
  %85 = vst.msk [vmem:[%s3] sm:$0x3] %vm84, %v79
  // Predicated region
  $region14: #{transformer_forward.20} parent=0 // pred_check
    _
  $region15: #{transformer_forward.20} parent=0 // pred_check_branch
    %87 = sbr.rel (0) target = $region17
  $region16: #{transformer_forward.20} parent=0 // pred_region
    _
  $region17: #{transformer_forward.20} parent=0 // pred_fallthru
    _
  // Predicated region
  $region18: #{transformer_forward.20} parent=0 // pred_check
    _
  $region19: #{transformer_forward.20} parent=0 // pred_check_branch
    %89 = sbr.rel (0) target = $region21
  $region20: #{transformer_forward.20} parent=0 // pred_region
    _
  $region21: #{transformer_forward.20} parent=0 // pred_fallthru
    _

// kernel: transformer_forward.21
$region0: #{transformer_forward.21}
  #allocation0 [shape = 'u32[]', space=smem, size = 0x4, offset = 0x4, fixed_abs, tag = 'smem constant byte address 0x4 - core index']
  #allocation1 [shape = 'u32[144,128]{1,0:T(1,128)}', space=vmem, size = 0x12000, scoped, tag = 'internal scratch']
  %s0 = inlined_call_operand.vmem [shape: f32[2,32], index: 0, kind: input, shape index: {}]
  %s1 = inlined_call_operand.vmem [shape: f32[1,32], index: 1, kind: input, shape index: {}]
  %s2 = inlined_call_operand.vmem [shape: f32[1,32], index: 2, kind: input, shape index: {}]
  %s3 = inlined_call_operand.vmem [shape: bf16[16,32], index: 3, kind: input, shape index: {}]
  %s4 = inlined_call_operand.vmem [shape: f32[1,16], index: 4, kind: input, shape index: {}]
  %s5 = inlined_call_operand.vmem [shape: s32[2,16], index: 5, kind: input, shape index: {}]
  %s6 = inlined_call_operand.hbm [shape: f32[2,16], index: 6, kind: output, shape index: {}]
  %s7 = sld [smem:[#allocation0]]
  $region34: #{transformer_forward.21} parent=0
    _
  %s9 = ssub.s32 1, %s7
  %s10 = scalar_select 0, %s9, %s7
  $region1: #{transformer_forward.21} parent=0
    #allocation2 [shape = 'u8[1024]{0}', space=vmem, size = 0x400, scoped, tag = 'output window, operand 0, single buffered']
    #allocation3 [shape = 's32[1]{0}', space=sflag, size = 0x4, scoped, tag = 'scoped memory for transformer_forward.21']
    %11 = vsyncpa [#allocation3], 0
    // Predicated region
    $region2: #{transformer_forward.21} parent=1 // pred_check
      _
    $region3: #{transformer_forward.21} parent=1 // pred_check_branch
      %13 = sbr.rel (0) target = $region5
    $region4: #{transformer_forward.21} parent=1 // pred_region
      _
    $region5: #{transformer_forward.21} parent=1 // pred_fallthru
      _
    // Predicated region
    $region6: #{transformer_forward.21} parent=1 // pred_check
      _
    $region7: #{transformer_forward.21} parent=1 // pred_check_branch
      %15 = sbr.rel (0) target = $region9
    $region8: #{transformer_forward.21} parent=1 // pred_region
      _
    $region9: #{transformer_forward.21} parent=1 // pred_fallthru
      _
    // Predicated region
    $region10: #{transformer_forward.21} parent=1 // pred_check
      _
    $region11: #{transformer_forward.21} parent=1 // pred_check_branch
      %17 = sbr.rel (0) target = $region13
    $region12: #{transformer_forward.21} parent=1 // pred_region
      _
    $region13: #{transformer_forward.21} parent=1 // pred_fallthru
      _
    // Predicated region
    $region14: #{transformer_forward.21} parent=1 // pred_check
      _
    $region15: #{transformer_forward.21} parent=1 // pred_check_branch
      %19 = sbr.rel (0) target = $region17
    $region16: #{transformer_forward.21} parent=1 // pred_region
      _
    $region17: #{transformer_forward.21} parent=1 // pred_fallthru
      _
    // Predicated region
    $region18: #{transformer_forward.21} parent=1 // pred_check
      _
    $region19: #{transformer_forward.21} parent=1 // pred_check_branch
      %21 = sbr.rel (0) target = $region21
    $region20: #{transformer_forward.21} parent=1 // pred_region
      _
    $region21: #{transformer_forward.21} parent=1 // pred_fallthru
      _
    // Predicated region
    $region22: #{transformer_forward.21} parent=1 // pred_check
      _
    $region23: #{transformer_forward.21} parent=1 // pred_check_branch
      %23 = sbr.rel (0) target = $region25
    $region24: #{transformer_forward.21} parent=1 // pred_region
      _
    $region25: #{transformer_forward.21} parent=1 // pred_fallthru
      _
    %v25 = vld [vmem:[%s0] sm:$0x3]
    %v26 = vld [vmem:[%s1] sm:$0x1]
    %v27 = vld [vmem:[%s2] sm:$0x1]
    %vm28 = vcmask 254976
    %v29 = vsel %vm28, %v25, 0.0
    %30 = vadd.xlane.f32.xlu0 %v29
    %v31 = vpop.xlane.xlu0 %30
    %v32 = vrcp.pop 32.0
    %v33 = vmul.f32 %v31, %v32
    %v34 = vsub.f32 %v25, %v33
    %v35 = vmul.f32 %v34, %v34
    %v36 = vsel %vm28, %v35, 0.0
    %37 = vadd.xlane.f32.xlu0 %v36
    %v38 = vpop.xlane.xlu0 %37
    %v39 = vmul.f32 %v38, %v32
    %v40 = vadd.f32 %v39, 1e-05
    %v41 = vrsqrt.pop %v40
    %v42 = vmul.f32 %v34, %v41
    %v44 = vlaneseq
    %v45 = vshrl.u32 %v44, 7
    %v46 = vsub.s32 0, %v45
    %v47 = vrot.slane %v26, %v46
    %v49 = vmul.f32 %v42, %v47
    %v51 = vlaneseq
    %v52 = vshrl.u32 %v51, 7
    %v53 = vsub.s32 0, %v52
    %v54 = vrot.slane %v27, %v53
    %v56 = vadd.f32 %v49, %v54
    %v57 = vpack.c.bf16 %v56, %v56
    %v58 = vld [vmem:[%s3] sm:$0xf]
    %v59 = vld [vmem:[%s3 + $0x4] sm:$0xf]
    %v60 = vld [vmem:[%s4] sm:$0x1]
    %v62 = vlaneseq
    %v63 = vshrl.u32 %v62, 7
    %v64 = vsub.s32 0, %v63
    %v65 = vrot.slane %v60, %v64
    %v69 = vunpack.c.l.b16 %v58
    %v70 = vunpack.c.l.b16 %v59
    %v71 = vpack.c.b16 %v70, %v69
    %vm72 = vcmask 261120
    %v74 = vsel %vm72, %v57, 0
    %v77 = vsel %vm72, %v71, 0
    %79 = vmatprep.subr.bf16.mxu0 0
    %80 = vmatpush1.bf16.xpose.msra.mxu0 %v77
    %81 = vmatprep.subr.bf16.mxu0 0
    %82 = vmatpush1.bf16.xpose.msra.mxu0 0
    %83 = vmatprep.subr.bf16.mxu0 0
    %84 = vmatpush1.bf16.xpose.msra.mxu0 0
    %85 = vmatprep.subr.bf16.mxu0 0
    %86 = vmatpush1.bf16.xpose.msra.mxu0 0
    %87 = vmatprep.subr.bf16.mxu0 0
    %88 = vmatpush1.bf16.xpose.msra.mxu0 0
    %89 = vmatprep.subr.bf16.mxu0 0
    %90 = vmatpush1.bf16.xpose.msra.mxu0 0
    %91 = vmatprep.subr.bf16.mxu0 0
    %92 = vmatpush1.bf16.xpose.msra.mxu0 0
    %93 = vmatprep.subr.bf16.mxu0 0
    %94 = vmatpush1.bf16.xpose.msra.mxu0 0
    %95 = vmatprep.subr.bf16.mxu0 0
    %96 = vmatpush1.bf16.xpose.msra.mxu0 0
    %97 = vmatprep.subr.bf16.mxu0 0
    %98 = vmatpush1.bf16.xpose.msra.mxu0 0
    %99 = vmatprep.subr.bf16.mxu0 0
    %100 = vmatpush1.bf16.xpose.msra.mxu0 0
    %101 = vmatprep.subr.bf16.mxu0 0
    %102 = vmatpush1.bf16.xpose.msra.mxu0 0
    %103 = vmatprep.subr.bf16.mxu0 0
    %104 = vmatpush1.bf16.xpose.msra.mxu0 0
    %105 = vmatprep.subr.bf16.mxu0 0
    %106 = vmatpush1.bf16.xpose.msra.mxu0 0
    %107 = vmatprep.subr.bf16.mxu0 0
    %108 = vmatpush1.bf16.xpose.msra.mxu0 0
    %109 = vmatprep.subr.bf16.mxu0 0
    %110 = vmatpush1.bf16.xpose.msra.mxu0 0
    %111 = vmatprep.mubr.bf16.mxu0 0
    %112 = vmatmul.mubr.bf16.gmra.mrb[0].mxu0 %v74
    %v113 = vpop.f32.mrb[0].mxu0
    %v114 = vadd.f32 %v65, %v113
    %v115 = vpop.f32.mrb[0].mxu0
    %v116 = vpop.f32.mrb[0].mxu0
    %v117 = vpop.f32.mrb[0].mxu0
    %118 = vdwg.mxu0
    %v119 = vld [vmem:[%s5] sm:$0x3]
    %vm120 = vcmp.eq.s32.totalorder %v119, 0
    %v121 = vsel %vm120, -100000.0, %v114
    %vm122 = vcmask 123904
    %123 = vst.msk [vmem:[#allocation2] sm:$0x3] %vm122, %v121
    // Predicated region
    $region26: #{transformer_forward.21} parent=1 // pred_check
      _
    $region27: #{transformer_forward.21} parent=1 // pred_check_branch
      %125 = sbr.rel (0) target = $region29
    $region28: #{transformer_forward.21} parent=1 // pred_region
      %s127 = ssub.s32 32, 32
      %128 = vsyncadd [#allocation3], %s127
      %s130 = sshll.u32 [#allocation2], 4
      %s131 = int_to_ptr.vmem [resolvable:$true] %s130
      %133 = dma.vmem_to_hbm [thread:$0]  %s131, 32, %s6, [#allocation3]
    $region29: #{transformer_forward.21} parent=1 // pred_fallthru
      _
    // Predicated region
    $region30: #{transformer_forward.21} parent=1 // pred_check
      _
    $region31: #{transformer_forward.21} parent=1 // pred_check_branch
      %135 = sbr.rel (0) target = $region33
    $region32: #{transformer_forward.21} parent=1 // pred_region
      %136 = dma.done [#allocation3], 32
    $region33: #{transformer_forward.21} parent=1 // pred_fallthru
      _
    %137 = vsyncpa [#allocation3], 1

// kernel: transformer_forward.13
$region0: #{transformer_forward.13}
  #allocation0 [shape = 'u32[]', space=smem, size = 0x4, offset = 0x4, fixed_abs, tag = 'smem constant byte address 0x4 - core index']
  #allocation1 [shape = 'u32[144,128]{1,0:T(1,128)}', space=vmem, size = 0x12000, scoped, tag = 'internal scratch']
  %s0 = inlined_call_operand.vmem [shape: bf16[2,4,8,8], index: 0, kind: input, shape index: {}]
  %s1 = inlined_call_operand.vmem [shape: bf16[2,4,8,8], index: 1, kind: input, shape index: {}]
  %s2 = inlined_call_operand.vmem [shape: bf16[2,4,8,8], index: 2, kind: input, shape index: {}]
  %s3 = inlined_call_operand.vmem [shape: bf16[2,8,4,14], index: 3, kind: input, shape index: {}]
  %s4 = inlined_call_operand.vmem [shape: bf16[2,8,4,14], index: 4, kind: input, shape index: {}]
  %s5 = inlined_call_operand.vmem [shape: bf16[2,8,14,8], index: 5, kind: input, shape index: {}]
  %s6 = inlined_call_operand.vmem [shape: f32[2,8,8], index: 6, kind: input, shape index: {}]
  %s7 = inlined_call_operand.vmem [shape: bf16[14,8], index: 7, kind: input, shape index: {}]
  %s8 = inlined_call_operand.vmem [shape: bf16[2,8,32], index: 8, kind: output, shape index: {}]
  %s9 = sld [smem:[#allocation0]]
  $region65: #{transformer_forward.13} parent=0
    _
  %s11 = ssub.s32 1, %s9
  %s12 = scalar_select 0, %s11, %s9
  loop: start=0, step=1, limit=4
  $region2: #{transformer_forward.13} parent=0 // loop_pre_header
    _
  $region3: #{transformer_forward.13} parent=0 // loop_header
    %s14 = sphi 0, %s18
    %p15 = scmp.ge.s32.totalorder %s14, 4
    %s24 = sphi 0, %s26
    %s27 = sphi 0, %s24
    %s28 = sphi 0, %s27
    %s44 = sphi 0, %s28
    %s50 = sphi 0, %s52
    %s53 = sphi 0, %s50
    %s54 = sphi 0, %s53
    %s70 = sphi 0, %s54
    %s76 = sphi 0, %s78
    %s79 = sphi 0, %s76
    %s80 = sphi 0, %s79
    %s96 = sphi 0, %s80
    %s102 = sphi 0, %s104
    %s105 = sphi 0, %s102
    %s106 = sphi 0, %s105
    %s122 = sphi 0, %s106
    %s128 = sphi 0, %s130
    %s131 = sphi 0, %s128
    %s132 = sphi 0, %s131
    %s148 = sphi 0, %s132
    %s154 = sphi 0, %s156
    %s157 = sphi 0, %s154
    %s158 = sphi 0, %s157
    %s174 = sphi 0, %s158
    %s180 = sphi 0, %s182
    %s183 = sphi 0, %s180
    %s184 = sphi 0, %s183
    %s200 = sphi 0, %s184
    %s204 = sphi 0, %s204
    %s206 = sphi 0, %s204
    %s207 = sphi 0, %s206
    %s221 = sphi 0, %s207
    %s227 = sphi 0, %s229
    %s230 = sphi 0, %s227
    %s231 = sphi 0, %s230
    %s247 = sphi 0, %s231
  $region4: #{transformer_forward.13} parent=0 // loop_header_branch
    %17 = sbr.rel (%p15) target = $region8
  $region5: #{transformer_forward.13} parent=0 // loop_body
    %s19 = ssub.s32 %s14, 1
    %s20 = ssub.s32 %s14, 2
    %s21 = sadd.s32 %s14, 1
    %s22 = ssub.s32 %s14, %s21
    %p23 = scmp.eq.s32.totalorder %s22, 0
    %s25 = sadd.s32 %s24, 1
    %s26 = scalar_select %p23, %s24, %s25
    %p29 = pneg %p23
    %p30 = scmp.eq.s32.totalorder %s14, 1
    %p31 = por %p29, %p30
    %p32 = scmp.ne.s32.totalorder %s24, %s27
    %p33 = scmp.eq.s32.totalorder %s14, 0
    %p34 = por %p32, %p33
    %p35 = scmp.ne.s32.totalorder %s24, %s27
    %p36 = scmp.eq.s32.totalorder %s19, 1
    %p37 = por %p35, %p36
    %p38 = scmp.ne.s32.totalorder %s27, %s28
    %p39 = scmp.eq.s32.totalorder %s19, 0
    %p40 = por %p38, %p39
    %p41 = scmp.ne.s32.totalorder %s27, %s28
    %p42 = scmp.eq.s32.totalorder %s20, 1
    %p43 = por %p41, %p42
    %p45 = scmp.ne.s32.totalorder %s28, %s44
    %p46 = scmp.eq.s32.totalorder %s20, 0
    %p47 = por %p45, %p46
    %s48 = ssub.s32 %s14, %s21
    %p49 = scmp.eq.s32.totalorder %s48, 0
    %s51 = sadd.s32 %s50, 1
    %s52 = scalar_select %p49, %s50, %s51
    %p55 = pneg %p49
    %p56 = scmp.eq.s32.totalorder %s14, 1
    %p57 = por %p55, %p56
    %p58 = scmp.ne.s32.totalorder %s50, %s53
    %p59 = scmp.eq.s32.totalorder %s14, 0
    %p60 = por %p58, %p59
    %p61 = scmp.ne.s32.totalorder %s50, %s53
    %p62 = scmp.eq.s32.totalorder %s19, 1
    %p63 = por %p61, %p62
    %p64 = scmp.ne.s32.totalorder %s53, %s54
    %p65 = scmp.eq.s32.totalorder %s19, 0
    %p66 = por %p64, %p65
    %p67 = scmp.ne.s32.totalorder %s53, %s54
    %p68 = scmp.eq.s32.totalorder %s20, 1
    %p69 = por %p67, %p68
    %p71 = scmp.ne.s32.totalorder %s54, %s70
    %p72 = scmp.eq.s32.totalorder %s20, 0
    %p73 = por %p71, %p72
    %s74 = ssub.s32 %s14, %s21
    %p75 = scmp.eq.s32.totalorder %s74, 0
    %s77 = sadd.s32 %s76, 1
    %s78 = scalar_select %p75, %s76, %s77
    %p81 = pneg %p75
    %p82 = scmp.eq.s32.totalorder %s14, 1
    %p83 = por %p81, %p82
    %p84 = scmp.ne.s32.totalorder %s76, %s79
    %p85 = scmp.eq.s32.totalorder %s14, 0
    %p86 = por %p84, %p85
    %p87 = scmp.ne.s32.totalorder %s76, %s79
    %p88 = scmp.eq.s32.totalorder %s19, 1
    %p89 = por %p87, %p88
    %p90 = scmp.ne.s32.totalorder %s79, %s80
    %p91 = scmp.eq.s32.totalorder %s19, 0
    %p92 = por %p90, %p91
    %p93 = scmp.ne.s32.totalorder %s79, %s80
    %p94 = scmp.eq.s32.totalorder %s20, 1
    %p95 = por %p93, %p94
    %p97 = scmp.ne.s32.totalorder %s80, %s96
    %p98 = scmp.eq.s32.totalorder %s20, 0
    %p99 = por %p97, %p98
    %s100 = ssub.s32 %s14, %s21
    %p101 = scmp.eq.s32.totalorder %s100, 0
    %s103 = sadd.s32 %s102, 1
    %s104 = scalar_select %p101, %s102, %s103
    %p107 = pneg %p101
    %p108 = scmp.eq.s32.totalorder %s14, 1
    %p109 = por %p107, %p108
    %p110 = scmp.ne.s32.totalorder %s102, %s105
    %p111 = scmp.eq.s32.totalorder %s14, 0
    %p112 = por %p110, %p111
    %p113 = scmp.ne.s32.totalorder %s102, %s105
    %p114 = scmp.eq.s32.totalorder %s19, 1
    %p115 = por %p113, %p114
    %p116 = scmp.ne.s32.totalorder %s105, %s106
    %p117 = scmp.eq.s32.totalorder %s19, 0
    %p118 = por %p116, %p117
    %p119 = scmp.ne.s32.totalorder %s105, %s106
    %p120 = scmp.eq.s32.totalorder %s20, 1
    %p121 = por %p119, %p120
    %p123 = scmp.ne.s32.totalorder %s106, %s122
    %p124 = scmp.eq.s32.totalorder %s20, 0
    %p125 = por %p123, %p124
    %s126 = ssub.s32 %s14, %s21
    %p127 = scmp.eq.s32.totalorder %s126, 0
    %s129 = sadd.s32 %s128, 1
    %s130 = scalar_select %p127, %s128, %s129
    %p133 = pneg %p127
    %p134 = scmp.eq.s32.totalorder %s14, 1
    %p135 = por %p133, %p134
    %p136 = scmp.ne.s32.totalorder %s128, %s131
    %p137 = scmp.eq.s32.totalorder %s14, 0
    %p138 = por %p136, %p137
    %p139 = scmp.ne.s32.totalorder %s128, %s131
    %p140 = scmp.eq.s32.totalorder %s19, 1
    %p141 = por %p139, %p140
    %p142 = scmp.ne.s32.totalorder %s131, %s132
    %p143 = scmp.eq.s32.totalorder %s19, 0
    %p144 = por %p142, %p143
    %p145 = scmp.ne.s32.totalorder %s131, %s132
    %p146 = scmp.eq.s32.totalorder %s20, 1
    %p147 = por %p145, %p146
    %p149 = scmp.ne.s32.totalorder %s132, %s148
    %p150 = scmp.eq.s32.totalorder %s20, 0
    %p151 = por %p149, %p150
    %s152 = ssub.s32 %s14, %s21
    %p153 = scmp.eq.s32.totalorder %s152, 0
    %s155 = sadd.s32 %s154, 1
    %s156 = scalar_select %p153, %s154, %s155
    %p159 = pneg %p153
    %p160 = scmp.eq.s32.totalorder %s14, 1
    %p161 = por %p159, %p160
    %p162 = scmp.ne.s32.totalorder %s154, %s157
    %p163 = scmp.eq.s32.totalorder %s14, 0
    %p164 = por %p162, %p163
    %p165 = scmp.ne.s32.totalorder %s154, %s157
    %p166 = scmp.eq.s32.totalorder %s19, 1
    %p167 = por %p165, %p166
    %p168 = scmp.ne.s32.totalorder %s157, %s158
    %p169 = scmp.eq.s32.totalorder %s19, 0
    %p170 = por %p168, %p169
    %p171 = scmp.ne.s32.totalorder %s157, %s158
    %p172 = scmp.eq.s32.totalorder %s20, 1
    %p173 = por %p171, %p172
    %p175 = scmp.ne.s32.totalorder %s158, %s174
    %p176 = scmp.eq.s32.totalorder %s20, 0
    %p177 = por %p175, %p176
    %s178 = ssub.s32 %s14, %s21
    %p179 = scmp.eq.s32.totalorder %s178, 0
    %s181 = sadd.s32 %s180, 1
    %s182 = scalar_select %p179, %s180, %s181
    %p185 = pneg %p179
    %p186 = scmp.eq.s32.totalorder %s14, 1
    %p187 = por %p185, %p186
    %p188 = scmp.ne.s32.totalorder %s180, %s183
    %p189 = scmp.eq.s32.totalorder %s14, 0
    %p190 = por %p188, %p189
    %p191 = scmp.ne.s32.totalorder %s180, %s183
    %p192 = scmp.eq.s32.totalorder %s19, 1
    %p193 = por %p191, %p192
    %p194 = scmp.ne.s32.totalorder %s183, %s184
    %p195 = scmp.eq.s32.totalorder %s19, 0
    %p196 = por %p194, %p195
    %p197 = scmp.ne.s32.totalorder %s183, %s184
    %p198 = scmp.eq.s32.totalorder %s20, 1
    %p199 = por %p197, %p198
    %p201 = scmp.ne.s32.totalorder %s184, %s200
    %p202 = scmp.eq.s32.totalorder %s20, 0
    %p203 = por %p201, %p202
    %s205 = sadd.s32 %s204, 1
    %p208 = scmp.eq.s32.totalorder %s14, 1
    %p209 = scmp.ne.s32.totalorder %s204, %s206
    %p210 = scmp.eq.s32.totalorder %s14, 0
    %p211 = por %p209, %p210
    %p212 = scmp.ne.s32.totalorder %s204, %s206
    %p213 = scmp.eq.s32.totalorder %s19, 1
    %p214 = por %p212, %p213
    %p215 = scmp.ne.s32.totalorder %s206, %s207
    %p216 = scmp.eq.s32.totalorder %s19, 0
    %p217 = por %p215, %p216
    %p218 = scmp.ne.s32.totalorder %s206, %s207
    %p219 = scmp.eq.s32.totalorder %s20, 1
    %p220 = por %p218, %p219
    %p222 = scmp.ne.s32.totalorder %s207, %s221
    %p223 = scmp.eq.s32.totalorder %s20, 0
    %p224 = por %p222, %p223
    %s225 = ssub.s32 %s14, %s21
    %p226 = scmp.eq.s32.totalorder %s225, 0
    %s228 = sadd.s32 %s227, 1
    %s229 = scalar_select %p226, %s227, %s228
    %p232 = pneg %p226
    %p233 = scmp.eq.s32.totalorder %s14, 1
    %p234 = por %p232, %p233
    %p235 = scmp.ne.s32.totalorder %s227, %s230
    %p236 = scmp.eq.s32.totalorder %s14, 0
    %p237 = por %p235, %p236
    %p238 = scmp.ne.s32.totalorder %s227, %s230
    %p239 = scmp.eq.s32.totalorder %s19, 1
    %p240 = por %p238, %p239
    %p241 = scmp.ne.s32.totalorder %s230, %s231
    %p242 = scmp.eq.s32.totalorder %s19, 0
    %p243 = por %p241, %p242
    %p244 = scmp.ne.s32.totalorder %s230, %s231
    %p245 = scmp.eq.s32.totalorder %s20, 1
    %p246 = por %p244, %p245
    %p248 = scmp.ne.s32.totalorder %s231, %s247
    %p249 = scmp.eq.s32.totalorder %s20, 0
    %p250 = por %p248, %p249
    %p251 = scmp.le.s32.totalorder 1, %s14
    %p252 = scmp.lt.s32.totalorder %s14, 3
    %p253 = pnand %p251, %p252
    %p254 = pneg %p253
    // Predicated region
    $region9: #{transformer_forward.13} parent=5 // pred_check
      _
    $region10: #{transformer_forward.13} parent=5 // pred_check_branch
      %256 = sbr.rel (%p253) target = $region12
    $region11: #{transformer_forward.13} parent=5 // pred_region
      %s257 = ssub.s32 %s14, 1
      // Predicated region
      $region13: #{transformer_forward.13} parent=11 // pred_check
        %p258 = pneg %p217
      $region14: #{transformer_forward.13} parent=11 // pred_check_branch
        %260 = sbr.rel (%p258) target = $region16
      $region15: #{transformer_forward.13} parent=11 // pred_region
        _
      $region16: #{transformer_forward.13} parent=11 // pred_fallthru
        _
    $region12: #{transformer_forward.13} parent=5 // pred_fallthru
      _
    %p261 = scmp.lt.s32.totalorder %s14, 2
    // Predicated region
    $region17: #{transformer_forward.13} parent=5 // pred_check
      %p262 = pneg %p261
    $region18: #{transformer_forward.13} parent=5 // pred_check_branch
      %264 = sbr.rel (%p262) target = $region20
    $region19: #{transformer_forward.13} parent=5 // pred_region
      // Predicated region
      $region21: #{transformer_forward.13} parent=19 // pred_check
        %p265 = pneg %p34
      $region22: #{transformer_forward.13} parent=19 // pred_check_branch
        %267 = sbr.rel (%p265) target = $region24
      $region23: #{transformer_forward.13} parent=19 // pred_region
        %p268 = scmp.lt.s32.totalorder %s14, 1
        %s269 = scalar_select %p268, %s14, 1
        %s270 = smul.addr %s269, 4
        %s271 = smul.addr %s270, 4
        %s272 = scalar_lea.vmem %s0, %s271
      $region24: #{transformer_forward.13} parent=19 // pred_fallthru
        _
      // Predicated region
      $region25: #{transformer_forward.13} parent=19 // pred_check
        %p273 = pneg %p60
      $region26: #{transformer_forward.13} parent=19 // pred_check_branch
        %275 = sbr.rel (%p273) target = $region28
      $region27: #{transformer_forward.13} parent=19 // pred_region
        %p276 = scmp.lt.s32.totalorder %s14, 1
        %s277 = scalar_select %p276, %s14, 1
        %s278 = smul.addr %s277, 4
        %s279 = smul.addr %s278, 4
        %s280 = scalar_lea.vmem %s1, %s279
      $region28: #{transformer_forward.13} parent=19 // pred_fallthru
        _
      // Predicated region
      $region29: #{transformer_forward.13} parent=19 // pred_check
        %p281 = pneg %p86
      $region30: #{transformer_forward.13} parent=19 // pred_check_branch
        %283 = sbr.rel (%p281) target = $region32
      $region31: #{transformer_forward.13} parent=19 // pred_region
        %p284 = scmp.lt.s32.totalorder %s14, 1
        %s285 = scalar_select %p284, %s14, 1
        %s286 = smul.addr %s285, 4
        %s287 = smul.addr %s286, 4
        %s288 = scalar_lea.vmem %s2, %s287
      $region32: #{transformer_forward.13} parent=19 // pred_fallthru
        _
      // Predicated region
      $region33: #{transformer_forward.13} parent=19 // pred_check
        %p289 = pneg %p112
      $region34: #{transformer_forward.13} parent=19 // pred_check_branch
        %291 = sbr.rel (%p289) target = $region36
      $region35: #{transformer_forward.13} parent=19 // pred_region
        %p292 = scmp.lt.s32.totalorder %s14, 1
        %s293 = scalar_select %p292, %s14, 1
        %s294 = smul.addr %s293, 8
        %s295 = smul.addr %s294, 2
        %s296 = scalar_lea.vmem %s3, %s295
      $region36: #{transformer_forward.13} parent=19 // pred_fallthru
        _
      // Predicated region
      $region37: #{transformer_forward.13} parent=19 // pred_check
        %p297 = pneg %p138
      $region38: #{transformer_forward.13} parent=19 // pred_check_branch
        %299 = sbr.rel (%p297) target = $region40
      $region39: #{transformer_forward.13} parent=19 // pred_region
        %p300 = scmp.lt.s32.totalorder %s14, 1
        %s301 = scalar_select %p300, %s14, 1
        %s302 = smul.addr %s301, 8
        %s303 = smul.addr %s302, 2
        %s304 = scalar_lea.vmem %s4, %s303
      $region40: #{transformer_forward.13} parent=19 // pred_fallthru
        _
      // Predicated region
      $region41: #{transformer_forward.13} parent=19 // pred_check
        %p305 = pneg %p164
      $region42: #{transformer_forward.13} parent=19 // pred_check_branch
        %307 = sbr.rel (%p305) target = $region44
      $region43: #{transformer_forward.13} parent=19 // pred_region
        %p308 = scmp.lt.s32.totalorder %s14, 1
        %s309 = scalar_select %p308, %s14, 1
        %s310 = smul.addr %s309, 16
        %s311 = smul.addr %s310, 4
        %s312 = scalar_lea.vmem %s5, %s311
      $region44: #{transformer_forward.13} parent=19 // pred_fallthru
        _
      // Predicated region
      $region45: #{transformer_forward.13} parent=19 // pred_check
        %p313 = pneg %p190
      $region46: #{transformer_forward.13} parent=19 // pred_check_branch
        %315 = sbr.rel (%p313) target = $region48
      $region47: #{transformer_forward.13} parent=19 // pred_region
        %p316 = scmp.lt.s32.totalorder %s14, 1
        %s317 = scalar_select %p316, %s14, 1
        %s318 = smul.addr %s317, 8
        %s319 = scalar_lea.vmem %s6, %s318
      $region48: #{transformer_forward.13} parent=19 // pred_fallthru
        _
    $region20: #{transformer_forward.13} parent=5 // pred_fallthru
      _
    %p320 = scmp.le.s32.totalorder 1, %s14
    %p321 = scmp.lt.s32.totalorder %s14, 3
    %p322 = pnand %p320, %p321
    %p323 = pneg %p322
    // Predicated region
    $region49: #{transformer_forward.13} parent=5 // pred_check
      _
    $region50: #{transformer_forward.13} parent=5 // pred_check_branch
      %325 = sbr.rel (%p322) target = $region52
    $region51: #{transformer_forward.13} parent=5 // pred_region
      %s326 = ssub.s32 %s14, 1
      %p327 = scmp.lt.s32.totalorder %s19, 1
      %s328 = scalar_select %p327, %s19, 1
      %s329 = smul.addr %s328, 4
      %s330 = smul.addr %s329, 4
      %s331 = scalar_lea.vmem %s0, %s330
      %p332 = pneg %p40
      %p333 = pneg %p37
      %p334 = scmp.lt.s32.totalorder %s19, 1
      %s335 = scalar_select %p334, %s19, 1
      %s336 = smul.addr %s335, 4
      %s337 = smul.addr %s336, 4
      %s338 = scalar_lea.vmem %s1, %s337
      %p339 = pneg %p66
      %p340 = pneg %p63
      %p341 = scmp.lt.s32.totalorder %s19, 1
      %s342 = scalar_select %p341, %s19, 1
      %s343 = smul.addr %s342, 4
      %s344 = smul.addr %s343, 4
      %s345 = scalar_lea.vmem %s2, %s344
      %p346 = pneg %p92
      %p347 = pneg %p89
      %p348 = scmp.lt.s32.totalorder %s19, 1
      %s349 = scalar_select %p348, %s19, 1
      %s350 = smul.addr %s349, 8
      %s351 = smul.addr %s350, 2
      %s352 = scalar_lea.vmem %s3, %s351
      %p353 = pneg %p118
      %p354 = pneg %p115
      %p355 = scmp.lt.s32.totalorder %s19, 1
      %s356 = scalar_select %p355, %s19, 1
      %s357 = smul.addr %s356, 8
      %s358 = smul.addr %s357, 2
      %s359 = scalar_lea.vmem %s4, %s358
      %p360 = pneg %p144
      %p361 = pneg %p141
      %p362 = scmp.lt.s32.totalorder %s19, 1
      %s363 = scalar_select %p362, %s19, 1
      %s364 = smul.addr %s363, 16
      %s365 = smul.addr %s364, 4
      %s366 = scalar_lea.vmem %s5, %s365
      %p367 = pneg %p170
      %p368 = pneg %p167
      %p369 = scmp.lt.s32.totalorder %s19, 1
      %s370 = scalar_select %p369, %s19, 1
      %s371 = smul.addr %s370, 8
      %s372 = scalar_lea.vmem %s6, %s371
      %p373 = pneg %p196
      %p374 = pneg %p193
      %p375 = pneg %p217
      %p376 = pneg %p214
      %p377 = pneg %p243
      %p378 = pneg %p240
      %p379 = scmp.lt.s32.totalorder %s19, 1
      %s380 = scalar_select %p379, %s19, 1
      %s381 = smul.addr %s380, 4
      %s382 = scalar_lea.vmem %s8, %s381
      %p383 = scmp.lt.s32.totalorder %s19, 1
      %s384 = scalar_select %p383, %s19, 1
      %s385 = smul.addr %s384, 4
      %s386 = smul.addr %s385, 4
      %s387 = scalar_lea.vmem %s0, %s386
      %p388 = scmp.lt.s32.totalorder %s19, 1
      %s389 = scalar_select %p388, %s19, 1
      %s390 = smul.addr %s389, 4
      %s391 = smul.addr %s390, 4
      %s392 = scalar_lea.vmem %s1, %s391
      %p393 = scmp.lt.s32.totalorder %s19, 1
      %s394 = scalar_select %p393, %s19, 1
      %s395 = smul.addr %s394, 4
      %s396 = smul.addr %s395, 4
      %s397 = scalar_lea.vmem %s2, %s396
      %p398 = scmp.lt.s32.totalorder %s19, 1
      %s399 = scalar_select %p398, %s19, 1
      %s400 = smul.addr %s399, 8
      %s401 = smul.addr %s400, 2
      %s402 = scalar_lea.vmem %s3, %s401
      %p403 = scmp.lt.s32.totalorder %s19, 1
      %s404 = scalar_select %p403, %s19, 1
      %s405 = smul.addr %s404, 8
      %s406 = smul.addr %s405, 2
      %s407 = scalar_lea.vmem %s4, %s406
      %p408 = scmp.lt.s32.totalorder %s19, 1
      %s409 = scalar_select %p408, %s19, 1
      %s410 = smul.addr %s409, 16
      %s411 = smul.addr %s410, 4
      %s412 = scalar_lea.vmem %s5, %s411
      %p413 = scmp.lt.s32.totalorder %s19, 1
      %s414 = scalar_select %p413, %s19, 1
      %s415 = smul.addr %s414, 8
      %s416 = scalar_lea.vmem %s6, %s415
      %p417 = scmp.lt.s32.totalorder %s19, 1
      %s418 = scalar_select %p417, %s19, 1
      %s419 = smul.addr %s418, 4
      %s420 = scalar_lea.vmem %s8, %s419
      %v422 = vld [vmem:[%s387] sm:$0xf]
      %v423 = vld [vmem:[%s387 + $0x4] sm:$0xf]
      %v424 = vld [vmem:[%s387 + $0x8] sm:$0xf]
      %v425 = vld [vmem:[%s387 + $0xc] sm:$0xf]
      %v426 = vld [vmem:[%s392] sm:$0xf]
      %v427 = vld [vmem:[%s392 + $0x4] sm:$0xf]
      %v428 = vld [vmem:[%s392 + $0x8] sm:$0xf]
      %v429 = vld [vmem:[%s392 + $0xc] sm:$0xf]
      %v430 = vld [vmem:[%s397] sm:$0xf]
      %v431 = vld [vmem:[%s397 + $0x4] sm:$0xf]
      %v432 = vld [vmem:[%s397 + $0x8] sm:$0xf]
      %v433 = vld [vmem:[%s397 + $0xc] sm:$0xf]
      %v434 = vld [vmem:[%s402] sm:$0x3]
      %v435 = vld [vmem:[%s402 + $0x2] sm:$0x3]
      %v436 = vld [vmem:[%s402 + $0x4] sm:$0x3]
      %v437 = vld [vmem:[%s402 + $0x6] sm:$0x3]
      %v438 = vld [vmem:[%s402 + $0x8] sm:$0x3]
      %v439 = vld [vmem:[%s402 + $0xa] sm:$0x3]
      %v440 = vld [vmem:[%s402 + $0xc] sm:$0x3]
      %v441 = vld [vmem:[%s402 + $0xe] sm:$0x3]
      %v442 = vld [vmem:[%s407] sm:$0x3]
      %v443 = vld [vmem:[%s407 + $0x2] sm:$0x3]
      %v444 = vld [vmem:[%s407 + $0x4] sm:$0x3]
      %v445 = vld [vmem:[%s407 + $0x6] sm:$0x3]
      %v446 = vld [vmem:[%s407 + $0x8] sm:$0x3]
      %v447 = vld [vmem:[%s407 + $0xa] sm:$0x3]
      %v448 = vld [vmem:[%s407 + $0xc] sm:$0x3]
      %v449 = vld [vmem:[%s407 + $0xe] sm:$0x3]
      %v450 = vld [vmem:[%s412] sm:$0xf]
      %v451 = vld [vmem:[%s412 + $0x4] sm:$0x7]
      %v452 = vld [vmem:[%s412 + $0x8] sm:$0xf]
      %v453 = vld [vmem:[%s412 + $0xc] sm:$0x7]
      %v454 = vld [vmem:[%s412 + $0x10] sm:$0xf]
      %v455 = vld [vmem:[%s412 + $0x14] sm:$0x7]
      %v456 = vld [vmem:[%s412 + $0x18] sm:$0xf]
      %v457 = vld [vmem:[%s412 + $0x1c] sm:$0x7]
      %v458 = vld [vmem:[%s412 + $0x20] sm:$0xf]
      %v459 = vld [vmem:[%s412 + $0x24] sm:$0x7]
      %v460 = vld [vmem:[%s412 + $0x28] sm:$0xf]
      %v461 = vld [vmem:[%s412 + $0x2c] sm:$0x7]
      %v462 = vld [vmem:[%s412 + $0x30] sm:$0xf]
      %v463 = vld [vmem:[%s412 + $0x34] sm:$0x7]
      %v464 = vld [vmem:[%s412 + $0x38] sm:$0xf]
      %v465 = vld [vmem:[%s412 + $0x3c] sm:$0x7]
      %v466 = vld [vmem:[%s416] sm:$0xff]
      %v467 = vld [vmem:[%s7] sm:$0xf]
      %v468 = vld [vmem:[%s7 + $0x4] sm:$0x7]
      %v471 = vunpack.c.l.b16 %v450
      %v472 = vunpack.c.l.b16 %v451
      %v473 = vpack.c.b16 %v472, %v471
      %vm474 = vcmask 113664
      %v476 = vsel %vm474, %v434, 0
      %vm478 = vcmask 1046528
      %v480 = vsel %vm478, %v473, 0
      %482 = vmatprep.subr.bf16.mxu0 0
      %483 = vmatpush1.bf16.msra.mxu0 %v480
      %484 = vmatprep.subr.bf16.mxu0 0
      %485 = vmatpush1.bf16.msra.mxu0 0
      %486 = vmatprep.subr.bf16.mxu0 0
      %487 = vmatpush1.bf16.msra.mxu0 0
      %488 = vmatprep.subr.bf16.mxu0 0
      %489 = vmatpush1.bf16.msra.mxu0 0
      %490 = vmatprep.subr.bf16.mxu0 0
      %491 = vmatpush1.bf16.msra.mxu0 0
      %492 = vmatprep.subr.bf16.mxu0 0
      %493 = vmatpush1.bf16.msra.mxu0 0
      %494 = vmatprep.subr.bf16.mxu0 0
      %495 = vmatpush1.bf16.msra.mxu0 0
      %496 = vmatprep.subr.bf16.mxu0 0
      %497 = vmatpush1.bf16.msra.mxu0 0
      %498 = vmatprep.subr.bf16.mxu0 0
      %499 = vmatpush1.bf16.msra.mxu0 0
      %500 = vmatprep.subr.bf16.mxu0 0
      %501 = vmatpush1.bf16.msra.mxu0 0
      %502 = vmatprep.subr.bf16.mxu0 0
      %503 = vmatpush1.bf16.msra.mxu0 0
      %504 = vmatprep.subr.bf16.mxu0 0
      %505 = vmatpush1.bf16.msra.mxu0 0
      %506 = vmatprep.subr.bf16.mxu0 0
      %507 = vmatpush1.bf16.msra.mxu0 0
      %508 = vmatprep.subr.bf16.mxu0 0
      %509 = vmatpush1.bf16.msra.mxu0 0
      %510 = vmatprep.subr.bf16.mxu0 0
      %511 = vmatpush1.bf16.msra.mxu0 0
      %512 = vmatprep.subr.bf16.mxu0 0
      %513 = vmatpush1.bf16.msra.mxu0 0
      %514 = vmatprep.mubr.bf16.mxu0 0
      %515 = vmatmul.mubr.bf16.gmra.mrb[0].mxu0 %v476
      %v516 = vpop.f32.mrb[0].mxu0
      %v517 = vadd.f32 0.0, %v516
      %v518 = vpop.f32.mrb[0].mxu0
      %v519 = vpop.f32.mrb[0].mxu0
      %v520 = vpop.f32.mrb[0].mxu0
      %521 = vdwg.mxu0
      %v524 = vunpack.c.l.b16 %v452
      %v525 = vunpack.c.l.b16 %v453
      %v526 = vpack.c.b16 %v525, %v524
      %v528 = vsel %vm474, %v435, 0
      %v531 = vsel %vm478, %v526, 0
      %533 = vmatprep.subr.bf16.mxu0 0
      %534 = vmatpush1.bf16.msra.mxu0 %v531
      %535 = vmatprep.subr.bf16.mxu0 0
      %536 = vmatpush1.bf16.msra.mxu0 0
      %537 = vmatprep.subr.bf16.mxu0 0
      %538 = vmatpush1.bf16.msra.mxu0 0
      %539 = vmatprep.subr.bf16.mxu0 0
      %540 = vmatpush1.bf16.msra.mxu0 0
      %541 = vmatprep.subr.bf16.mxu0 0
      %542 = vmatpush1.bf16.msra.mxu0 0
      %543 = vmatprep.subr.bf16.mxu0 0
      %544 = vmatpush1.bf16.msra.mxu0 0
      %545 = vmatprep.subr.bf16.mxu0 0
      %546 = vmatpush1.bf16.msra.mxu0 0
      %547 = vmatprep.subr.bf16.mxu0 0
      %548 = vmatpush1.bf16.msra.mxu0 0
      %549 = vmatprep.subr.bf16.mxu0 0
      %550 = vmatpush1.bf16.msra.mxu0 0
      %551 = vmatprep.subr.bf16.mxu0 0
      %552 = vmatpush1.bf16.msra.mxu0 0
      %553 = vmatprep.subr.bf16.mxu0 0
      %554 = vmatpush1.bf16.msra.mxu0 0
      %555 = vmatprep.subr.bf16.mxu0 0
      %556 = vmatpush1.bf16.msra.mxu0 0
      %557 = vmatprep.subr.bf16.mxu0 0
      %558 = vmatpush1.bf16.msra.mxu0 0
      %559 = vmatprep.subr.bf16.mxu0 0
      %560 = vmatpush1.bf16.msra.mxu0 0
      %561 = vmatprep.subr.bf16.mxu0 0
      %562 = vmatpush1.bf16.msra.mxu0 0
      %563 = vmatprep.subr.bf16.mxu0 0
      %564 = vmatpush1.bf16.msra.mxu0 0
      %565 = vmatprep.mubr.bf16.mxu0 0
      %566 = vmatmul.mubr.bf16.gmra.mrb[0].mxu0 %v528
      %v567 = vpop.f32.mrb[0].mxu0
      %v568 = vadd.f32 0.0, %v567
      %v569 = vpop.f32.mrb[0].mxu0
      %v570 = vpop.f32.mrb[0].mxu0
      %v571 = vpop.f32.mrb[0].mxu0
      %572 = vdwg.mxu0
      %v575 = vunpack.c.l.b16 %v454
      %v576 = vunpack.c.l.b16 %v455
      %v577 = vpack.c.b16 %v576, %v575
      %v579 = vsel %vm474, %v436, 0
      %v582 = vsel %vm478, %v577, 0
      %584 = vmatprep.subr.bf16.mxu0 0
      %585 = vmatpush1.bf16.msra.mxu0 %v582
      %586 = vmatprep.subr.bf16.mxu0 0
      %587 = vmatpush1.bf16.msra.mxu0 0
      %588 = vmatprep.subr.bf16.mxu0 0
      %589 = vmatpush1.bf16.msra.mxu0 0
      %590 = vmatprep.subr.bf16.mxu0 0
      %591 = vmatpush1.bf16.msra.mxu0 0
      %592 = vmatprep.subr.bf16.mxu0 0
      %593 = vmatpush1.bf16.msra.mxu0 0
      %594 = vmatprep.subr.bf16.mxu0 0
      %595 = vmatpush1.bf16.msra.mxu0 0
      %596 = vmatprep.subr.bf16.mxu0 0
      %597 = vmatpush1.bf16.msra.mxu0 0
      %598 = vmatprep.subr.bf16.mxu0 0
      %599 = vmatpush1.bf16.msra.mxu0 0
      %600 = vmatprep.subr.bf16.mxu0 0
      %601 = vmatpush1.bf16.msra.mxu0 0
      %602 = vmatprep.subr.bf16.mxu0 0
      %603 = vmatpush1.bf16.msra.mxu0 0
      %604 = vmatprep.subr.bf16.mxu0 0
      %605 = vmatpush1.bf16.msra.mxu0 0
      %606 = vmatprep.subr.bf16.mxu0 0
      %607 = vmatpush1.bf16.msra.mxu0 0
      %608 = vmatprep.subr.bf16.mxu0 0
      %609 = vmatpush1.bf16.msra.mxu0 0
      %610 = vmatprep.subr.bf16.mxu0 0
      %611 = vmatpush1.bf16.msra.mxu0 0
      %612 = vmatprep.subr.bf16.mxu0 0
      %613 = vmatpush1.bf16.msra.mxu0 0
      %614 = vmatprep.subr.bf16.mxu0 0
      %615 = vmatpush1.bf16.msra.mxu0 0
      %616 = vmatprep.mubr.bf16.mxu0 0
      %617 = vmatmul.mubr.bf16.gmra.mrb[0].mxu0 %v579
      %v618 = vpop.f32.mrb[0].mxu0
      %v619 = vadd.f32 0.0, %v618
      %v620 = vpop.f32.mrb[0].mxu0
      %v621 = vpop.f32.mrb[0].mxu0
      %v622 = vpop.f32.mrb[0].mxu0
      %623 = vdwg.mxu0
      %v626 = vunpack.c.l.b16 %v456
      %v627 = vunpack.c.l.b16 %v457
      %v628 = vpack.c.b16 %v627, %v626
      %v630 = vsel %vm474, %v437, 0
      %v633 = vsel %vm478, %v628, 0
      %635 = vmatprep.subr.bf16.mxu0 0
      %636 = vmatpush1.bf16.msra.mxu0 %v633
      %637 = vmatprep.subr.bf16.mxu0 0
      %638 = vmatpush1.bf16.msra.mxu0 0
      %639 = vmatprep.subr.bf16.mxu0 0
      %640 = vmatpush1.bf16.msra.mxu0 0
      %641 = vmatprep.subr.bf16.mxu0 0
      %642 = vmatpush1.bf16.msra.mxu0 0
      %643 = vmatprep.subr.bf16.mxu0 0
      %644 = vmatpush1.bf16.msra.mxu0 0
      %645 = vmatprep.subr.bf16.mxu0 0
      %646 = vmatpush1.bf16.msra.mxu0 0
      %647 = vmatprep.subr.bf16.mxu0 0
      %648 = vmatpush1.bf16.msra.mxu0 0
      %649 = vmatprep.subr.bf16.mxu0 0
      %650 = vmatpush1.bf16.msra.mxu0 0
      %651 = vmatprep.subr.bf16.mxu0 0
      %652 = vmatpush1.bf16.msra.mxu0 0
      %653 = vmatprep.subr.bf16.mxu0 0
      %654 = vmatpush1.bf16.msra.mxu0 0
      %655 = vmatprep.subr.bf16.mxu0 0
      %656 = vmatpush1.bf16.msra.mxu0 0
      %657 = vmatprep.subr.bf16.mxu0 0
      %658 = vmatpush1.bf16.msra.mxu0 0
      %659 = vmatprep.subr.bf16.mxu0 0
      %660 = vmatpush1.bf16.msra.mxu0 0
      %661 = vmatprep.subr.bf16.mxu0 0
      %662 = vmatpush1.bf16.msra.mxu0 0
      %663 = vmatprep.subr.bf16.mxu0 0
      %664 = vmatpush1.bf16.msra.mxu0 0
      %665 = vmatprep.subr.bf16.mxu0 0
      %666 = vmatpush1.bf16.msra.mxu0 0
      %667 = vmatprep.mubr.bf16.mxu0 0
      %668 = vmatmul.mubr.bf16.gmra.mrb[0].mxu0 %v630
      %v669 = vpop.f32.mrb[0].mxu0
      %v670 = vadd.f32 0.0, %v669
      %v671 = vpop.f32.mrb[0].mxu0
      %v672 = vpop.f32.mrb[0].mxu0
      %v673 = vpop.f32.mrb[0].mxu0
      %674 = vdwg.mxu0
      %v677 = vunpack.c.l.b16 %v458
      %v678 = vunpack.c.l.b16 %v459
      %v679 = vpack.c.b16 %v678, %v677
      %v681 = vsel %vm474, %v438, 0
      %v684 = vsel %vm478, %v679, 0
      %686 = vmatprep.subr.bf16.mxu0 0
      %687 = vmatpush1.bf16.msra.mxu0 %v684
      %688 = vmatprep.subr.bf16.mxu0 0
      %689 = vmatpush1.bf16.msra.mxu0 0
      %690 = vmatprep.subr.bf16.mxu0 0
      %691 = vmatpush1.bf16.msra.mxu0 0
      %692 = vmatprep.subr.bf16.mxu0 0
      %693 = vmatpush1.bf16.msra.mxu0 0
      %694 = vmatprep.subr.bf16.mxu0 0
      %695 = vmatpush1.bf16.msra.mxu0 0
      %696 = vmatprep.subr.bf16.mxu0 0
      %697 = vmatpush1.bf16.msra.mxu0 0
      %698 = vmatprep.subr.bf16.mxu0 0
      %699 = vmatpush1.bf16.msra.mxu0 0
      %700 = vmatprep.subr.bf16.mxu0 0
      %701 = vmatpush1.bf16.msra.mxu0 0
      %702 = vmatprep.subr.bf16.mxu0 0
      %703 = vmatpush1.bf16.msra.mxu0 0
      %704 = vmatprep.subr.bf16.mxu0 0
      %705 = vmatpush1.bf16.msra.mxu0 0
      %706 = vmatprep.subr.bf16.mxu0 0
      %707 = vmatpush1.bf16.msra.mxu0 0
      %708 = vmatprep.subr.bf16.mxu0 0
      %709 = vmatpush1.bf16.msra.mxu0 0
      %710 = vmatprep.subr.bf16.mxu0 0
      %711 = vmatpush1.bf16.msra.mxu0 0
      %712 = vmatprep.subr.bf16.mxu0 0
      %713 = vmatpush1.bf16.msra.mxu0 0
      %714 = vmatprep.subr.bf16.mxu0 0
      %715 = vmatpush1.bf16.msra.mxu0 0
      %716 = vmatprep.subr.bf16.mxu0 0
      %717 = vmatpush1.bf16.msra.mxu0 0
      %718 = vmatprep.mubr.bf16.mxu0 0
      %719 = vmatmul.mubr.bf16.gmra.mrb[0].mxu0 %v681
      %v720 = vpop.f32.mrb[0].mxu0
      %v721 = vadd.f32 0.0, %v720
      %v722 = vpop.f32.mrb[0].mxu0
      %v723 = vpop.f32.mrb[0].mxu0
      %v724 = vpop.f32.mrb[0].mxu0
      %725 = vdwg.mxu0
      %v728 = vunpack.c.l.b16 %v460
      %v729 = vunpack.c.l.b16 %v461
      %v730 = vpack.c.b16 %v729, %v728
      %v732 = vsel %vm474, %v439, 0
      %v735 = vsel %vm478, %v730, 0
      %737 = vmatprep.subr.bf16.mxu0 0
      %738 = vmatpush1.bf16.msra.mxu0 %v735
      %739 = vmatprep.subr.bf16.mxu0 0
      %740 = vmatpush1.bf16.msra.mxu0 0
      %741 = vmatprep.subr.bf16.mxu0 0
      %742 = vmatpush1.bf16.msra.mxu0 0
      %743 = vmatprep.subr.bf16.mxu0 0
      %744 = vmatpush1.bf16.msra.mxu0 0
      %745 = vmatprep.subr.bf16.mxu0 0
      %746 = vmatpush1.bf16.msra.mxu0 0
      %747 = vmatprep.subr.bf16.mxu0 0
      %748 = vmatpush1.bf16.msra.mxu0 0
      %749 = vmatprep.subr.bf16.mxu0 0
      %750 = vmatpush1.bf16.msra.mxu0 0
      %751 = vmatprep.subr.bf16.mxu0 0
      %752 = vmatpush1.bf16.msra.mxu0 0
      %753 = vmatprep.subr.bf16.mxu0 0
      %754 = vmatpush1.bf16.msra.mxu0 0
      %755 = vmatprep.subr.bf16.mxu0 0
      %756 = vmatpush1.bf16.msra.mxu0 0
      %757 = vmatprep.subr.bf16.mxu0 0
      %758 = vmatpush1.bf16.msra.mxu0 0
      %759 = vmatprep.subr.bf16.mxu0 0
      %760 = vmatpush1.bf16.msra.mxu0 0
      %761 = vmatprep.subr.bf16.mxu0 0
      %762 = vmatpush1.bf16.msra.mxu0 0
      %763 = vmatprep.subr.bf16.mxu0 0
      %764 = vmatpush1.bf16.msra.mxu0 0
      %765 = vmatprep.subr.bf16.mxu0 0
      %766 = vmatpush1.bf16.msra.mxu0 0
      %767 = vmatprep.subr.bf16.mxu0 0
      %768 = vmatpush1.bf16.msra.mxu0 0
      %769 = vmatprep.mubr.bf16.mxu0 0
      %770 = vmatmul.mubr.bf16.gmra.mrb[0].mxu0 %v732
      %v771 = vpop.f32.mrb[0].mxu0
      %v772 = vadd.f32 0.0, %v771
      %v773 = vpop.f32.mrb[0].mxu0
      %v774 = vpop.f32.mrb[0].mxu0
      %v775 = vpop.f32.mrb[0].mxu0
      %776 = vdwg.mxu0
      %v779 = vunpack.c.l.b16 %v462
      %v780 = vunpack.c.l.b16 %v463
      %v781 = vpack.c.b16 %v780, %v779
      %v783 = vsel %vm474, %v440, 0
      %v786 = vsel %vm478, %v781, 0
      %788 = vmatprep.subr.bf16.mxu0 0
      %789 = vmatpush1.bf16.msra.mxu0 %v786
      %790 = vmatprep.subr.bf16.mxu0 0
      %791 = vmatpush1.bf16.msra.mxu0 0
      %792 = vmatprep.subr.bf16.mxu0 0
      %793 = vmatpush1.bf16.msra.mxu0 0
      %794 = vmatprep.subr.bf16.mxu0 0
      %795 = vmatpush1.bf16.msra.mxu0 0
      %796 = vmatprep.subr.bf16.mxu0 0
      %797 = vmatpush1.bf16.msra.mxu0 0
      %798 = vmatprep.subr.bf16.mxu0 0
      %799 = vmatpush1.bf16.msra.mxu0 0
      %800 = vmatprep.subr.bf16.mxu0 0
      %801 = vmatpush1.bf16.msra.mxu0 0
      %802 = vmatprep.subr.bf16.mxu0 0
      %803 = vmatpush1.bf16.msra.mxu0 0
      %804 = vmatprep.subr.bf16.mxu0 0
      %805 = vmatpush1.bf16.msra.mxu0 0
      %806 = vmatprep.subr.bf16.mxu0 0
      %807 = vmatpush1.bf16.msra.mxu0 0
      %808 = vmatprep.subr.bf16.mxu0 0
      %809 = vmatpush1.bf16.msra.mxu0 0
      %810 = vmatprep.subr.bf16.mxu0 0
      %811 = vmatpush1.bf16.msra.mxu0 0
      %812 = vmatprep.subr.bf16.mxu0 0
      %813 = vmatpush1.bf16.msra.mxu0 0
      %814 = vmatprep.subr.bf16.mxu0 0
      %815 = vmatpush1.bf16.msra.mxu0 0
      %816 = vmatprep.subr.bf16.mxu0 0
      %817 = vmatpush1.bf16.msra.mxu0 0
      %818 = vmatprep.subr.bf16.mxu0 0
      %819 = vmatpush1.bf16.msra.mxu0 0
      %820 = vmatprep.mubr.bf16.mxu0 0
      %821 = vmatmul.mubr.bf16.gmra.mrb[0].mxu0 %v783
      %v822 = vpop.f32.mrb[0].mxu0
      %v823 = vadd.f32 0.0, %v822
      %v824 = vpop.f32.mrb[0].mxu0
      %v825 = vpop.f32.mrb[0].mxu0
      %v826 = vpop.f32.mrb[0].mxu0
      %827 = vdwg.mxu0
      %v830 = vunpack.c.l.b16 %v464
      %v831 = vunpack.c.l.b16 %v465
      %v832 = vpack.c.b16 %v831, %v830
      %v834 = vsel %vm474, %v441, 0
      %v837 = vsel %vm478, %v832, 0
      %839 = vmatprep.subr.bf16.mxu0 0
      %840 = vmatpush1.bf16.msra.mxu0 %v837
      %841 = vmatprep.subr.bf16.mxu0 0
      %842 = vmatpush1.bf16.msra.mxu0 0
      %843 = vmatprep.subr.bf16.mxu0 0
      %844 = vmatpush1.bf16.msra.mxu0 0
      %845 = vmatprep.subr.bf16.mxu0 0
      %846 = vmatpush1.bf16.msra.mxu0 0
      %847 = vmatprep.subr.bf16.mxu0 0
      %848 = vmatpush1.bf16.msra.mxu0 0
      %849 = vmatprep.subr.bf16.mxu0 0
      %850 = vmatpush1.bf16.msra.mxu0 0
      %851 = vmatprep.subr.bf16.mxu0 0
      %852 = vmatpush1.bf16.msra.mxu0 0
      %853 = vmatprep.subr.bf16.mxu0 0
      %854 = vmatpush1.bf16.msra.mxu0 0
      %855 = vmatprep.subr.bf16.mxu0 0
      %856 = vmatpush1.bf16.msra.mxu0 0
      %857 = vmatprep.subr.bf16.mxu0 0
      %858 = vmatpush1.bf16.msra.mxu0 0
      %859 = vmatprep.subr.bf16.mxu0 0
      %860 = vmatpush1.bf16.msra.mxu0 0
      %861 = vmatprep.subr.bf16.mxu0 0
      %862 = vmatpush1.bf16.msra.mxu0 0
      %863 = vmatprep.subr.bf16.mxu0 0
      %864 = vmatpush1.bf16.msra.mxu0 0
      %865 = vmatprep.subr.bf16.mxu0 0
      %866 = vmatpush1.bf16.msra.mxu0 0
      %867 = vmatprep.subr.bf16.mxu0 0
      %868 = vmatpush1.bf16.msra.mxu0 0
      %869 = vmatprep.subr.bf16.mxu0 0
      %870 = vmatpush1.bf16.msra.mxu0 0
      %871 = vmatprep.mubr.bf16.mxu0 0
      %872 = vmatmul.mubr.bf16.gmra.mrb[0].mxu0 %v834
      %v873 = vpop.f32.mrb[0].mxu0
      %v874 = vadd.f32 0.0, %v873
      %v875 = vpop.f32.mrb[0].mxu0
      %v876 = vpop.f32.mrb[0].mxu0
      %v877 = vpop.f32.mrb[0].mxu0
      %878 = vdwg.mxu0
      %v880 = vsel %vm474, %v442, 0
      %882 = vmatprep.subr.bf16.mxu0 0
      %883 = vmatpush1.bf16.msra.mxu0 %v480
      %884 = vmatprep.subr.bf16.mxu0 0
      %885 = vmatpush1.bf16.msra.mxu0 0
      %886 = vmatprep.subr.bf16.mxu0 0
      %887 = vmatpush1.bf16.msra.mxu0 0
      %888 = vmatprep.subr.bf16.mxu0 0
      %889 = vmatpush1.bf16.msra.mxu0 0
      %890 = vmatprep.subr.bf16.mxu0 0
      %891 = vmatpush1.bf16.msra.mxu0 0
      %892 = vmatprep.subr.bf16.mxu0 0
      %893 = vmatpush1.bf16.msra.mxu0 0
      %894 = vmatprep.subr.bf16.mxu0 0
      %895 = vmatpush1.bf16.msra.mxu0 0
      %896 = vmatprep.subr.bf16.mxu0 0
      %897 = vmatpush1.bf16.msra.mxu0 0
      %898 = vmatprep.subr.bf16.mxu0 0
      %899 = vmatpush1.bf16.msra.mxu0 0
      %900 = vmatprep.subr.bf16.mxu0 0
      %901 = vmatpush1.bf16.msra.mxu0 0
      %902 = vmatprep.subr.bf16.mxu0 0
      %903 = vmatpush1.bf16.msra.mxu0 0
      %904 = vmatprep.subr.bf16.mxu0 0
      %905 = vmatpush1.bf16.msra.mxu0 0
      %906 = vmatprep.subr.bf16.mxu0 0
      %907 = vmatpush1.bf16.msra.mxu0 0
      %908 = vmatprep.subr.bf16.mxu0 0
      %909 = vmatpush1.bf16.msra.mxu0 0
      %910 = vmatprep.subr.bf16.mxu0 0
      %911 = vmatpush1.bf16.msra.mxu0 0
      %912 = vmatprep.subr.bf16.mxu0 0
      %913 = vmatpush1.bf16.msra.mxu0 0
      %914 = vmatprep.mubr.bf16.mxu0 0
      %915 = vmatmul.mubr.bf16.gmra.mrb[0].mxu0 %v880
      %v916 = vpop.f32.mrb[0].mxu0
      %v917 = vadd.f32 0.0, %v916
      %v918 = vpop.f32.mrb[0].mxu0
      %v919 = vpop.f32.mrb[0].mxu0
      %v920 = vpop.f32.mrb[0].mxu0
      %921 = vdwg.mxu0
      %v923 = vsel %vm474, %v443, 0
      %925 = vmatprep.subr.bf16.mxu0 0
      %926 = vmatpush1.bf16.msra.mxu0 %v531
      %927 = vmatprep.subr.bf16.mxu0 0
      %928 = vmatpush1.bf16.msra.mxu0 0
      %929 = vmatprep.subr.bf16.mxu0 0
      %930 = vmatpush1.bf16.msra.mxu0 0
      %931 = vmatprep.subr.bf16.mxu0 0
      %932 = vmatpush1.bf16.msra.mxu0 0
      %933 = vmatprep.subr.bf16.mxu0 0
      %934 = vmatpush1.bf16.msra.mxu0 0
      %935 = vmatprep.subr.bf16.mxu0 0
      %936 = vmatpush1.bf16.msra.mxu0 0
      %937 = vmatprep.subr.bf16.mxu0 0
      %938 = vmatpush1.bf16.msra.mxu0 0
      %939 = vmatprep.subr.bf16.mxu0 0
      %940 = vmatpush1.bf16.msra.mxu0 0
      %941 = vmatprep.subr.bf16.mxu0 0
      %942 = vmatpush1.bf16.msra.mxu0 0
      %943 = vmatprep.subr.bf16.mxu0 0
      %944 = vmatpush1.bf16.msra.mxu0 0
      %945 = vmatprep.subr.bf16.mxu0 0
      %946 = vmatpush1.bf16.msra.mxu0 0
      %947 = vmatprep.subr.bf16.mxu0 0
      %948 = vmatpush1.bf16.msra.mxu0 0
      %949 = vmatprep.subr.bf16.mxu0 0
      %950 = vmatpush1.bf16.msra.mxu0 0
      %951 = vmatprep.subr.bf16.mxu0 0
      %952 = vmatpush1.bf16.msra.mxu0 0
      %953 = vmatprep.subr.bf16.mxu0 0
      %954 = vmatpush1.bf16.msra.mxu0 0
      %955 = vmatprep.subr.bf16.mxu0 0
      %956 = vmatpush1.bf16.msra.mxu0 0
      %957 = vmatprep.mubr.bf16.mxu0 0
      %958 = vmatmul.mubr.bf16.gmra.mrb[0].mxu0 %v923
      %v959 = vpop.f32.mrb[0].mxu0
      %v960 = vadd.f32 0.0, %v959
      %v961 = vpop.f32.mrb[0].mxu0
      %v962 = vpop.f32.mrb[0].mxu0
      %v963 = vpop.f32.mrb[0].mxu0
      %964 = vdwg.mxu0
      %v966 = vsel %vm474, %v444, 0
      %968 = vmatprep.subr.bf16.mxu0 0
      %969 = vmatpush1.bf16.msra.mxu0 %v582
      %970 = vmatprep.subr.bf16.mxu0 0
      %971 = vmatpush1.bf16.msra.mxu0 0
      %972 = vmatprep.subr.bf16.mxu0 0
      %973 = vmatpush1.bf16.msra.mxu0 0
      %974 = vmatprep.subr.bf16.mxu0 0
      %975 = vmatpush1.bf16.msra.mxu0 0
      %976 = vmatprep.subr.bf16.mxu0 0
      %977 = vmatpush1.bf16.msra.mxu0 0
      %978 = vmatprep.subr.bf16.mxu0 0
      %979 = vmatpush1.bf16.msra.mxu0 0
      %980 = vmatprep.subr.bf16.mxu0 0
      %981 = vmatpush1.bf16.msra.mxu0 0
      %982 = vmatprep.subr.bf16.mxu0 0
      %983 = vmatpush1.bf16.msra.mxu0 0
      %984 = vmatprep.subr.bf16.mxu0 0
      %985 = vmatpush1.bf16.msra.mxu0 0
      %986 = vmatprep.subr.bf16.mxu0 0
      %987 = vmatpush1.bf16.msra.mxu0 0
      %988 = vmatprep.subr.bf16.mxu0 0
      %989 = vmatpush1.bf16.msra.mxu0 0
      %990 = vmatprep.subr.bf16.mxu0 0
      %991 = vmatpush1.bf16.msra.mxu0 0
      %992 = vmatprep.subr.bf16.mxu0 0
      %993 = vmatpush1.bf16.msra.mxu0 0
      %994 = vmatprep.subr.bf16.mxu0 0
      %995 = vmatpush1.bf16.msra.mxu0 0
      %996 = vmatprep.subr.bf16.mxu0 0
      %997 = vmatpush1.bf16.msra.mxu0 0
      %998 = vmatprep.subr.bf16.mxu0 0
      %999 = vmatpush1.bf16.msra.mxu0 0
      %1000 = vmatprep.mubr.bf16.mxu0 0
      %1001 = vmatmul.mubr.bf16.gmra.mrb[0].mxu0 %v966
      %v1002 = vpop.f32.mrb[0].mxu0
      %v1003 = vadd.f32 0.0, %v1002
      %v1004 = vpop.f32.mrb[0].mxu0
      %v1005 = vpop.f32.mrb[0].mxu0
      %v1006 = vpop.f32.mrb[0].mxu0
      %1007 = vdwg.mxu0
      %v1009 = vsel %vm474, %v445, 0
      %1011 = vmatprep.subr.bf16.mxu0 0
      %1012 = vmatpush1.bf16.msra.mxu0 %v633
      %1013 = vmatprep.subr.bf16.mxu0 0
      %1014 = vmatpush1.bf16.msra.mxu0 0
      %1015 = vmatprep.subr.bf16.mxu0 0
      %1016 = vmatpush1.bf16.msra.mxu0 0
      %1017 = vmatprep.subr.bf16.mxu0 0
      %1018 = vmatpush1.bf16.msra.mxu0 0
      %1019 = vmatprep.subr.bf16.mxu0 0
      %1020 = vmatpush1.bf16.msra.mxu0 0
      %1021 = vmatprep.subr.bf16.mxu0 0
      %1022 = vmatpush1.bf16.msra.mxu0 0
      %1023 = vmatprep.subr.bf16.mxu0 0
      %1024 = vmatpush1.bf16.msra.mxu0 0
      %1025 = vmatprep.subr.bf16.mxu0 0
      %1026 = vmatpush1.bf16.msra.mxu0 0
      %1027 = vmatprep.subr.bf16.mxu0 0
      %1028 = vmatpush1.bf16.msra.mxu0 0
      %1029 = vmatprep.subr.bf16.mxu0 0
      %1030 = vmatpush1.bf16.msra.mxu0 0
      %1031 = vmatprep.subr.bf16.mxu0 0
      %1032 = vmatpush1.bf16.msra.mxu0 0
      %1033 = vmatprep.subr.bf16.mxu0 0
      %1034 = vmatpush1.bf16.msra.mxu0 0
      %1035 = vmatprep.subr.bf16.mxu0 0
      %1036 = vmatpush1.bf16.msra.mxu0 0
      %1037 = vmatprep.subr.bf16.mxu0 0
      %1038 = vmatpush1.bf16.msra.mxu0 0
      %1039 = vmatprep.subr.bf16.mxu0 0
      %1040 = vmatpush1.bf16.msra.mxu0 0
      %1041 = vmatprep.subr.bf16.mxu0 0
      %1042 = vmatpush1.bf16.msra.mxu0 0
      %1043 = vmatprep.mubr.bf16.mxu0 0
      %1044 = vmatmul.mubr.bf16.gmra.mrb[0].mxu0 %v1009
      %v1045 = vpop.f32.mrb[0].mxu0
      %v1046 = vadd.f32 0.0, %v1045
      %v1047 = vpop.f32.mrb[0].mxu0
      %v1048 = vpop.f32.mrb[0].mxu0
      %v1049 = vpop.f32.mrb[0].mxu0
      %1050 = vdwg.mxu0
      %v1052 = vsel %vm474, %v446, 0
      %1054 = vmatprep.subr.bf16.mxu0 0
      %1055 = vmatpush1.bf16.msra.mxu0 %v684
      %1056 = vmatprep.subr.bf16.mxu0 0
      %1057 = vmatpush1.bf16.msra.mxu0 0
      %1058 = vmatprep.subr.bf16.mxu0 0
      %1059 = vmatpush1.bf16.msra.mxu0 0
      %1060 = vmatprep.subr.bf16.mxu0 0
      %1061 = vmatpush1.bf16.msra.mxu0 0
      %1062 = vmatprep.subr.bf16.mxu0 0
      %1063 = vmatpush1.bf16.msra.mxu0 0
      %1064 = vmatprep.subr.bf16.mxu0 0
      %1065 = vmatpush1.bf16.msra.mxu0 0
      %1066 = vmatprep.subr.bf16.mxu0 0
      %1067 = vmatpush1.bf16.msra.mxu0 0
      %1068 = vmatprep.subr.bf16.mxu0 0
      %1069 = vmatpush1.bf16.msra.mxu0 0
      %1070 = vmatprep.subr.bf16.mxu0 0
      %1071 = vmatpush1.bf16.msra.mxu0 0
      %1072 = vmatprep.subr.bf16.mxu0 0
      %1073 = vmatpush1.bf16.msra.mxu0 0
      %1074 = vmatprep.subr.bf16.mxu0 0
      %1075 = vmatpush1.bf16.msra.mxu0 0
      %1076 = vmatprep.subr.bf16.mxu0 0
      %1077 = vmatpush1.bf16.msra.mxu0 0
      %1078 = vmatprep.subr.bf16.mxu0 0
      %1079 = vmatpush1.bf16.msra.mxu0 0
      %1080 = vmatprep.subr.bf16.mxu0 0
      %1081 = vmatpush1.bf16.msra.mxu0 0
      %1082 = vmatprep.subr.bf16.mxu0 0
      %1083 = vmatpush1.bf16.msra.mxu0 0
      %1084 = vmatprep.subr.bf16.mxu0 0
      %1085 = vmatpush1.bf16.msra.mxu0 0
      %1086 = vmatprep.mubr.bf16.mxu0 0
      %1087 = vmatmul.mubr.bf16.gmra.mrb[0].mxu0 %v1052
      %v1088 = vpop.f32.mrb[0].mxu0
      %v1089 = vadd.f32 0.0, %v1088
      %v1090 = vpop.f32.mrb[0].mxu0
      %v1091 = vpop.f32.mrb[0].mxu0
      %v1092 = vpop.f32.mrb[0].mxu0
      %1093 = vdwg.mxu0
      %v1095 = vsel %vm474, %v447, 0
      %1097 = vmatprep.subr.bf16.mxu0 0
      %1098 = vmatpush1.bf16.msra.mxu0 %v735
      %1099 = vmatprep.subr.bf16.mxu0 0
      %1100 = vmatpush1.bf16.msra.mxu0 0
      %1101 = vmatprep.subr.bf16.mxu0 0
      %1102 = vmatpush1.bf16.msra.mxu0 0
      %1103 = vmatprep.subr.bf16.mxu0 0
      %1104 = vmatpush1.bf16.msra.mxu0 0
      %1105 = vmatprep.subr.bf16.mxu0 0
      %1106 = vmatpush1.bf16.msra.mxu0 0
      %1107 = vmatprep.subr.bf16.mxu0 0
      %1108 = vmatpush1.bf16.msra.mxu0 0
      %1109 = vmatprep.subr.bf16.mxu0 0
      %1110 = vmatpush1.bf16.msra.mxu0 0
      %1111 = vmatprep.subr.bf16.mxu0 0
      %1112 = vmatpush1.bf16.msra.mxu0 0
      %1113 = vmatprep.subr.bf16.mxu0 0
      %1114 = vmatpush1.bf16.msra.mxu0 0
      %1115 = vmatprep.subr.bf16.mxu0 0
      %1116 = vmatpush1.bf16.msra.mxu0 0
      %1117 = vmatprep.subr.bf16.mxu0 0
      %1118 = vmatpush1.bf16.msra.mxu0 0
      %1119 = vmatprep.subr.bf16.mxu0 0
      %1120 = vmatpush1.bf16.msra.mxu0 0
      %1121 = vmatprep.subr.bf16.mxu0 0
      %1122 = vmatpush1.bf16.msra.mxu0 0
      %1123 = vmatprep.subr.bf16.mxu0 0
      %1124 = vmatpush1.bf16.msra.mxu0 0
      %1125 = vmatprep.subr.bf16.mxu0 0
      %1126 = vmatpush1.bf16.msra.mxu0 0
      %1127 = vmatprep.subr.bf16.mxu0 0
      %1128 = vmatpush1.bf16.msra.mxu0 0
      %1129 = vmatprep.mubr.bf16.mxu0 0
      %1130 = vmatmul.mubr.bf16.gmra.mrb[0].mxu0 %v1095
      %v1131 = vpop.f32.mrb[0].mxu0
      %v1132 = vadd.f32 0.0, %v1131
      %v1133 = vpop.f32.mrb[0].mxu0
      %v1134 = vpop.f32.mrb[0].mxu0
      %v1135 = vpop.f32.mrb[0].mxu0
      %1136 = vdwg.mxu0
      %v1138 = vsel %vm474, %v448, 0
      %1140 = vmatprep.subr.bf16.mxu0 0
      %1141 = vmatpush1.bf16.msra.mxu0 %v786
      %1142 = vmatprep.subr.bf16.mxu0 0
      %1143 = vmatpush1.bf16.msra.mxu0 0
      %1144 = vmatprep.subr.bf16.mxu0 0
      %1145 = vmatpush1.bf16.msra.mxu0 0
      %1146 = vmatprep.subr.bf16.mxu0 0
      %1147 = vmatpush1.bf16.msra.mxu0 0
      %1148 = vmatprep.subr.bf16.mxu0 0
      %1149 = vmatpush1.bf16.msra.mxu0 0
      %1150 = vmatprep.subr.bf16.mxu0 0
      %1151 = vmatpush1.bf16.msra.mxu0 0
      %1152 = vmatprep.subr.bf16.mxu0 0
      %1153 = vmatpush1.bf16.msra.mxu0 0
      %1154 = vmatprep.subr.bf16.mxu0 0
      %1155 = vmatpush1.bf16.msra.mxu0 0
      %1156 = vmatprep.subr.bf16.mxu0 0
      %1157 = vmatpush1.bf16.msra.mxu0 0
      %1158 = vmatprep.subr.bf16.mxu0 0
      %1159 = vmatpush1.bf16.msra.mxu0 0
      %1160 = vmatprep.subr.bf16.mxu0 0
      %1161 = vmatpush1.bf16.msra.mxu0 0
      %1162 = vmatprep.subr.bf16.mxu0 0
      %1163 = vmatpush1.bf16.msra.mxu0 0
      %1164 = vmatprep.subr.bf16.mxu0 0
      %1165 = vmatpush1.bf16.msra.mxu0 0
      %1166 = vmatprep.subr.bf16.mxu0 0
      %1167 = vmatpush1.bf16.msra.mxu0 0
      %1168 = vmatprep.subr.bf16.mxu0 0
      %1169 = vmatpush1.bf16.msra.mxu0 0
      %1170 = vmatprep.subr.bf16.mxu0 0
      %1171 = vmatpush1.bf16.msra.mxu0 0
      %1172 = vmatprep.mubr.bf16.mxu0 0
      %1173 = vmatmul.mubr.bf16.gmra.mrb[0].mxu0 %v1138
      %v1174 = vpop.f32.mrb[0].mxu0
      %v1175 = vadd.f32 0.0, %v1174
      %v1176 = vpop.f32.mrb[0].mxu0
      %v1177 = vpop.f32.mrb[0].mxu0
      %v1178 = vpop.f32.mrb[0].mxu0
      %1179 = vdwg.mxu0
      %v1181 = vsel %vm474, %v449, 0
      %1183 = vmatprep.subr.bf16.mxu0 0
      %1184 = vmatpush1.bf16.msra.mxu0 %v837
      %1185 = vmatprep.subr.bf16.mxu0 0
      %1186 = vmatpush1.bf16.msra.mxu0 0
      %1187 = vmatprep.subr.bf16.mxu0 0
      %1188 = vmatpush1.bf16.msra.mxu0 0
      %1189 = vmatprep.subr.bf16.mxu0 0
      %1190 = vmatpush1.bf16.msra.mxu0 0
      %1191 = vmatprep.subr.bf16.mxu0 0
      %1192 = vmatpush1.bf16.msra.mxu0 0
      %1193 = vmatprep.subr.bf16.mxu0 0
      %1194 = vmatpush1.bf16.msra.mxu0 0
      %1195 = vmatprep.subr.bf16.mxu0 0
      %1196 = vmatpush1.bf16.msra.mxu0 0
      %1197 = vmatprep.subr.bf16.mxu0 0
      %1198 = vmatpush1.bf16.msra.mxu0 0
      %1199 = vmatprep.subr.bf16.mxu0 0
      %1200 = vmatpush1.bf16.msra.mxu0 0
      %1201 = vmatprep.subr.bf16.mxu0 0
      %1202 = vmatpush1.bf16.msra.mxu0 0
      %1203 = vmatprep.subr.bf16.mxu0 0
      %1204 = vmatpush1.bf16.msra.mxu0 0
      %1205 = vmatprep.subr.bf16.mxu0 0
      %1206 = vmatpush1.bf16.msra.mxu0 0
      %1207 = vmatprep.subr.bf16.mxu0 0
      %1208 = vmatpush1.bf16.msra.mxu0 0
      %1209 = vmatprep.subr.bf16.mxu0 0
      %1210 = vmatpush1.bf16.msra.mxu0 0
      %1211 = vmatprep.subr.bf16.mxu0 0
      %1212 = vmatpush1.bf16.msra.mxu0 0
      %1213 = vmatprep.subr.bf16.mxu0 0
      %1214 = vmatpush1.bf16.msra.mxu0 0
      %1215 = vmatprep.mubr.bf16.mxu0 0
      %1216 = vmatmul.mubr.bf16.gmra.mrb[0].mxu0 %v1181
      %v1217 = vpop.f32.mrb[0].mxu0
      %v1218 = vadd.f32 0.0, %v1217
      %v1219 = vpop.f32.mrb[0].mxu0
      %v1220 = vpop.f32.mrb[0].mxu0
      %v1221 = vpop.f32.mrb[0].mxu0
      %1222 = vdwg.mxu0
      %v1223 = vcombine.low %v517, %v619
      %v1225 = vunpack.c.l.s4 1983009808
      %v1226 = vunpack.c.0.s8 %v1225
      %v1227 = vlaneseq
      %v1228 = vshrl.u32 %v1227, 7
      %v1229 = vsub.s32 %v1226, %v1228
      %v1230 = vrot.slane %v1223, %v1229
      %v1231 = vcombine.low %v568, %v670
      %v1233 = vunpack.c.l.s4 1983009808
      %v1234 = vunpack.c.0.s8 %v1233
      %v1235 = vlaneseq
      %v1236 = vshrl.u32 %v1235, 7
      %v1237 = vsub.s32 %v1234, %v1236
      %v1238 = vrot.slane %v1231, %v1237
      %v1239 = vcombine.low %v721, %v823
      %v1241 = vunpack.c.l.s4 1983009808
      %v1242 = vunpack.c.0.s8 %v1241
      %v1243 = vlaneseq
      %v1244 = vshrl.u32 %v1243, 7
      %v1245 = vsub.s32 %v1242, %v1244
      %v1246 = vrot.slane %v1239, %v1245
      %v1247 = vcombine.low %v772, %v874
      %v1249 = vunpack.c.l.s4 1983009808
      %v1250 = vunpack.c.0.s8 %v1249
      %v1251 = vlaneseq
      %v1252 = vshrl.u32 %v1251, 7
      %v1253 = vsub.s32 %v1250, %v1252
      %v1254 = vrot.slane %v1247, %v1253
      %v1255 = vcombine.low %v1230, %v1238
      %v1256 = vcombine.high %v1230, %v1238
      %v1258 = vunpack.c.l.s4 1934713408
      %v1259 = vunpack.c.0.s8 %v1258
      %v1260 = vlaneseq
      %v1261 = vshrl.u32 %v1260, 7
      %v1262 = vsub.s32 %v1259, %v1261
      %v1263 = vrot.slane %v1255, %v1262
      %v1265 = vunpack.c.l.s4 1934713408
      %v1266 = vunpack.c.0.s8 %v1265
      %v1267 = vlaneseq
      %v1268 = vshrl.u32 %v1267, 7
      %v1269 = vsub.s32 %v1266, %v1268
      %v1270 = vrot.slane %v1256, %v1269
      %v1271 = vcombine.low %v1246, %v1254
      %v1272 = vcombine.high %v1246, %v1254
      %v1274 = vunpack.c.l.s4 1934713408
      %v1275 = vunpack.c.0.s8 %v1274
      %v1276 = vlaneseq
      %v1277 = vshrl.u32 %v1276, 7
      %v1278 = vsub.s32 %v1275, %v1277
      %v1279 = vrot.slane %v1271, %v1278
      %v1281 = vunpack.c.l.s4 1934713408
      %v1282 = vunpack.c.0.s8 %v1281
      %v1283 = vlaneseq
      %v1284 = vshrl.u32 %v1283, 7
      %v1285 = vsub.s32 %v1282, %v1284
      %v1286 = vrot.slane %v1272, %v1285
      %v1287 = vcombine.low %v1263, %v1279
      %v1288 = vcombine.high %v1263, %v1279
      %v1289 = vcombine.low %v1270, %v1286
      %v1290 = vcombine.high %v1270, %v1286
      %v1291 = vcombine.low %v917, %v1003
      %v1293 = vunpack.c.l.s4 1983009808
      %v1294 = vunpack.c.0.s8 %v1293
      %v1295 = vlaneseq
      %v1296 = vshrl.u32 %v1295, 7
      %v1297 = vsub.s32 %v1294, %v1296
      %v1298 = vrot.slane %v1291, %v1297
      %v1299 = vcombine.low %v960, %v1046
      %v1301 = vunpack.c.l.s4 1983009808
      %v1302 = vunpack.c.0.s8 %v1301
      %v1303 = vlaneseq
      %v1304 = vshrl.u32 %v1303, 7
      %v1305 = vsub.s32 %v1302, %v1304
      %v1306 = vrot.slane %v1299, %v1305
      %v1307 = vcombine.low %v1089, %v1175
      %v1309 = vunpack.c.l.s4 1983009808
      %v1310 = vunpack.c.0.s8 %v1309
      %v1311 = vlaneseq
      %v1312 = vshrl.u32 %v1311, 7
      %v1313 = vsub.s32 %v1310, %v1312
      %v1314 = vrot.slane %v1307, %v1313
      %v1315 = vcombine.low %v1132, %v1218
      %v1317 = vunpack.c.l.s4 1983009808
      %v1318 = vunpack.c.0.s8 %v1317
      %v1319 = vlaneseq
      %v1320 = vshrl.u32 %v1319, 7
      %v1321 = vsub.s32 %v1318, %v1320
      %v1322 = vrot.slane %v1315, %v1321
      %v1323 = vcombine.low %v1298, %v1306
      %v1324 = vcombine.high %v1298, %v1306
      %v1326 = vunpack.c.l.s4 1934713408
      %v1327 = vunpack.c.0.s8 %v1326
      %v1328 = vlaneseq
      %v1329 = vshrl.u32 %v1328, 7
      %v1330 = vsub.s32 %v1327, %v1329
      %v1331 = vrot.slane %v1323, %v1330
      %v1333 = vunpack.c.l.s4 1934713408
      %v1334 = vunpack.c.0.s8 %v1333
      %v1335 = vlaneseq
      %v1336 = vshrl.u32 %v1335, 7
      %v1337 = vsub.s32 %v1334, %v1336
      %v1338 = vrot.slane %v1324, %v1337
      %v1339 = vcombine.low %v1314, %v1322
      %v1340 = vcombine.high %v1314, %v1322
      %v1342 = vunpack.c.l.s4 1934713408
      %v1343 = vunpack.c.0.s8 %v1342
      %v1344 = vlaneseq
      %v1345 = vshrl.u32 %v1344, 7
      %v1346 = vsub.s32 %v1343, %v1345
      %v1347 = vrot.slane %v1339, %v1346
      %v1349 = vunpack.c.l.s4 1934713408
      %v1350 = vunpack.c.0.s8 %v1349
      %v1351 = vlaneseq
      %v1352 = vshrl.u32 %v1351, 7
      %v1353 = vsub.s32 %v1350, %v1352
      %v1354 = vrot.slane %v1340, %v1353
      %v1355 = vcombine.low %v1331, %v1347
      %v1356 = vcombine.high %v1331, %v1347
      %v1357 = vcombine.low %v1338, %v1354
      %v1358 = vcombine.high %v1338, %v1354
      %1359 = vxpose.xlu0.b32.start [1/16] %v1355, 128
      %1360 = vxpose.xlu0.b32.cont [2/16] 0.0, 128
      %1361 = vxpose.xlu0.b32.cont [3/16] 0.0, 128
      %1362 = vxpose.xlu0.b32.cont [4/16] 0.0, 128
      %1363 = vxpose.xlu0.b32.cont [5/16] 0.0, 128
      %1364 = vxpose.xlu0.b32.cont [6/16] 0.0, 128
      %1365 = vxpose.xlu0.b32.cont [7/16] 0.0, 128
      %1366 = vxpose.xlu0.b32.cont [8/16] 0.0, 128
      %1367 = vxpose.xlu0.b32.cont [9/16] 0.0, 128
      %1368 = vxpose.xlu0.b32.cont [10/16] 0.0, 128
      %1369 = vxpose.xlu0.b32.cont [11/16] 0.0, 128
      %1370 = vxpose.xlu0.b32.cont [12/16] 0.0, 128
      %1371 = vxpose.xlu0.b32.cont [13/16] 0.0, 128
      %1372 = vxpose.xlu0.b32.cont [14/16] 0.0, 128
      %1373 = vxpose.xlu0.b32.cont [15/16] 0.0, 128
      %1374 = vxpose.xlu0.b32.end [16/16] 0.0, 128
      %v1375 = vpop.trf.xlu0
      %v1376 = vpop.trf.xlu0
      %v1377 = vpop.trf.xlu0
      %v1378 = vpop.trf.xlu0
      %v1379 = vpop.trf.xlu0
      %v1380 = vpop.trf.xlu0
      %v1381 = vpop.trf.xlu0
      %v1382 = vpop.trf.xlu0
      %v1383 = vpop.trf.xlu0
      %v1384 = vpop.trf.xlu0
      %v1385 = vpop.trf.xlu0
      %v1386 = vpop.trf.xlu0
      %v1387 = vpop.trf.xlu0
      %v1388 = vpop.trf.xlu0
      %v1389 = vpop.trf.xlu0
      %v1390 = vpop.trf.xlu0
      %1391 = vxpose.xlu0.b32.start [1/16] %v1356, 128
      %1392 = vxpose.xlu0.b32.cont [2/16] 0.0, 128
      %1393 = vxpose.xlu0.b32.cont [3/16] 0.0, 128
      %1394 = vxpose.xlu0.b32.cont [4/16] 0.0, 128
      %1395 = vxpose.xlu0.b32.cont [5/16] 0.0, 128
      %1396 = vxpose.xlu0.b32.cont [6/16] 0.0, 128
      %1397 = vxpose.xlu0.b32.cont [7/16] 0.0, 128
      %1398 = vxpose.xlu0.b32.cont [8/16] 0.0, 128
      %1399 = vxpose.xlu0.b32.cont [9/16] 0.0, 128
      %1400 = vxpose.xlu0.b32.cont [10/16] 0.0, 128
      %1401 = vxpose.xlu0.b32.cont [11/16] 0.0, 128
      %1402 = vxpose.xlu0.b32.cont [12/16] 0.0, 128
      %1403 = vxpose.xlu0.b32.cont [13/16] 0.0, 128
      %1404 = vxpose.xlu0.b32.cont [14/16] 0.0, 128
      %1405 = vxpose.xlu0.b32.cont [15/16] 0.0, 128
      %1406 = vxpose.xlu0.b32.end [16/16] 0.0, 128
      %v1407 = vpop.trf.xlu0
      %v1408 = vpop.trf.xlu0
      %v1409 = vpop.trf.xlu0
      %v1410 = vpop.trf.xlu0
      %v1411 = vpop.trf.xlu0
      %v1412 = vpop.trf.xlu0
      %v1413 = vpop.trf.xlu0
      %v1414 = vpop.trf.xlu0
      %v1415 = vpop.trf.xlu0
      %v1416 = vpop.trf.xlu0
      %v1417 = vpop.trf.xlu0
      %v1418 = vpop.trf.xlu0
      %v1419 = vpop.trf.xlu0
      %v1420 = vpop.trf.xlu0
      %v1421 = vpop.trf.xlu0
      %v1422 = vpop.trf.xlu0
      %1423 = vxpose.xlu0.b32.start [1/16] %v1357, 128
      %1424 = vxpose.xlu0.b32.cont [2/16] 0.0, 128
      %1425 = vxpose.xlu0.b32.cont [3/16] 0.0, 128
      %1426 = vxpose.xlu0.b32.cont [4/16] 0.0, 128
      %1427 = vxpose.xlu0.b32.cont [5/16] 0.0, 128
      %1428 = vxpose.xlu0.b32.cont [6/16] 0.0, 128
      %1429 = vxpose.xlu0.b32.cont [7/16] 0.0, 128
      %1430 = vxpose.xlu0.b32.cont [8/16] 0.0, 128
      %1431 = vxpose.xlu0.b32.cont [9/16] 0.0, 128
      %1432 = vxpose.xlu0.b32.cont [10/16] 0.0, 128
      %1433 = vxpose.xlu0.b32.cont [11/16] 0.0, 128
      %1434 = vxpose.xlu0.b32.cont [12/16] 0.0, 128
      %1435 = vxpose.xlu0.b32.cont [13/16] 0.0, 128
      %1436 = vxpose.xlu0.b32.cont [14/16] 0.0, 128
      %1437 = vxpose.xlu0.b32.cont [15/16] 0.0, 128
      %1438 = vxpose.xlu0.b32.end [16/16] 0.0, 128
      %v1439 = vpop.trf.xlu0
      %v1440 = vpop.trf.xlu0
      %v1441 = vpop.trf.xlu0
      %v1442 = vpop.trf.xlu0
      %v1443 = vpop.trf.xlu0
      %v1444 = vpop.trf.xlu0
      %v1445 = vpop.trf.xlu0
      %v1446 = vpop.trf.xlu0
      %v1447 = vpop.trf.xlu0
      %v1448 = vpop.trf.xlu0
      %v1449 = vpop.trf.xlu0
      %v1450 = vpop.trf.xlu0
      %v1451 = vpop.trf.xlu0
      %v1452 = vpop.trf.xlu0
      %v1453 = vpop.trf.xlu0
      %v1454 = vpop.trf.xlu0
      %1455 = vxpose.xlu0.b32.start [1/16] %v1358, 128
      %1456 = vxpose.xlu0.b32.cont [2/16] 0.0, 128
      %1457 = vxpose.xlu0.b32.cont [3/16] 0.0, 128
      %1458 = vxpose.xlu0.b32.cont [4/16] 0.0, 128
      %1459 = vxpose.xlu0.b32.cont [5/16] 0.0, 128
      %1460 = vxpose.xlu0.b32.cont [6/16] 0.0, 128
      %1461 = vxpose.xlu0.b32.cont [7/16] 0.0, 128
      %1462 = vxpose.xlu0.b32.cont [8/16] 0.0, 128
      %1463 = vxpose.xlu0.b32.cont [9/16] 0.0, 128
      %1464 = vxpose.xlu0.b32.cont [10/16] 0.0, 128
      %1465 = vxpose.xlu0.b32.cont [11/16] 0.0, 128
      %1466 = vxpose.xlu0.b32.cont [12/16] 0.0, 128
      %1467 = vxpose.xlu0.b32.cont [13/16] 0.0, 128
      %1468 = vxpose.xlu0.b32.cont [14/16] 0.0, 128
      %1469 = vxpose.xlu0.b32.cont [15/16] 0.0, 128
      %1470 = vxpose.xlu0.b32.end [16/16] 0.0, 128
      %v1471 = vpop.trf.xlu0
      %v1472 = vpop.trf.xlu0
      %v1473 = vpop.trf.xlu0
      %v1474 = vpop.trf.xlu0
      %v1475 = vpop.trf.xlu0
      %v1476 = vpop.trf.xlu0
      %v1477 = vpop.trf.xlu0
      %v1478 = vpop.trf.xlu0
      %v1479 = vpop.trf.xlu0
      %v1480 = vpop.trf.xlu0
      %v1481 = vpop.trf.xlu0
      %v1482 = vpop.trf.xlu0
      %v1483 = vpop.trf.xlu0
      %v1484 = vpop.trf.xlu0
      %v1485 = vpop.trf.xlu0
      %v1486 = vpop.trf.xlu0
      %vm1487 = vcmask 64512
      %v1489 = vsel %vm1487, %v422, 0
      %v1492 = vsel %vm1487, %v426, 0
      %1494 = vmatprep.subr.bf16.mxu0 0
      %1495 = vmatpush1.bf16.xpose.msra.mxu0 %v1492
      %1496 = vmatprep.subr.bf16.mxu0 0
      %1497 = vmatpush1.bf16.xpose.msra.mxu0 0
      %1498 = vmatprep.subr.bf16.mxu0 0
      %1499 = vmatpush1.bf16.xpose.msra.mxu0 0
      %1500 = vmatprep.subr.bf16.mxu0 0
      %1501 = vmatpush1.bf16.xpose.msra.mxu0 0
      %1502 = vmatprep.subr.bf16.mxu0 0
      %1503 = vmatpush1.bf16.xpose.msra.mxu0 0
      %1504 = vmatprep.subr.bf16.mxu0 0
      %1505 = vmatpush1.bf16.xpose.msra.mxu0 0
      %1506 = vmatprep.subr.bf16.mxu0 0
      %1507 = vmatpush1.bf16.xpose.msra.mxu0 0
      %1508 = vmatprep.subr.bf16.mxu0 0
      %1509 = vmatpush1.bf16.xpose.msra.mxu0 0
      %1510 = vmatprep.subr.bf16.mxu0 0
      %1511 = vmatpush1.bf16.xpose.msra.mxu0 0
      %1512 = vmatprep.subr.bf16.mxu0 0
      %1513 = vmatpush1.bf16.xpose.msra.mxu0 0
      %1514 = vmatprep.subr.bf16.mxu0 0
      %1515 = vmatpush1.bf16.xpose.msra.mxu0 0
      %1516 = vmatprep.subr.bf16.mxu0 0
      %1517 = vmatpush1.bf16.xpose.msra.mxu0 0
      %1518 = vmatprep.subr.bf16.mxu0 0
      %1519 = vmatpush1.bf16.xpose.msra.mxu0 0
      %1520 = vmatprep.subr.bf16.mxu0 0
      %1521 = vmatpush1.bf16.xpose.msra.mxu0 0
      %1522 = vmatprep.subr.bf16.mxu0 0
      %1523 = vmatpush1.bf16.xpose.msra.mxu0 0
      %1524 = vmatprep.subr.bf16.mxu0 0
      %1525 = vmatpush1.bf16.xpose.msra.mxu0 0
      %1526 = vmatprep.mubr.bf16.mxu0 0
      %1527 = vmatmul.mubr.bf16.gmra.mrb[0].mxu0 %v1489
      %v1528 = vpop.f32.mrb[0].mxu0
      %v1529 = vadd.f32 %v1287, %v1528
      %v1530 = vpop.f32.mrb[0].mxu0
      %v1531 = vpop.f32.mrb[0].mxu0
      %v1532 = vpop.f32.mrb[0].mxu0
      %1533 = vdwg.mxu0
      %v1535 = vsel %vm1487, %v423, 0
      %v1538 = vsel %vm1487, %v427, 0
      %1540 = vmatprep.subr.bf16.mxu0 0
      %1541 = vmatpush1.bf16.xpose.msra.mxu0 %v1538
      %1542 = vmatprep.subr.bf16.mxu0 0
      %1543 = vmatpush1.bf16.xpose.msra.mxu0 0
      %1544 = vmatprep.subr.bf16.mxu0 0
      %1545 = vmatpush1.bf16.xpose.msra.mxu0 0
      %1546 = vmatprep.subr.bf16.mxu0 0
      %1547 = vmatpush1.bf16.xpose.msra.mxu0 0
      %1548 = vmatprep.subr.bf16.mxu0 0
      %1549 = vmatpush1.bf16.xpose.msra.mxu0 0
      %1550 = vmatprep.subr.bf16.mxu0 0
      %1551 = vmatpush1.bf16.xpose.msra.mxu0 0
      %1552 = vmatprep.subr.bf16.mxu0 0
      %1553 = vmatpush1.bf16.xpose.msra.mxu0 0
      %1554 = vmatprep.subr.bf16.mxu0 0
      %1555 = vmatpush1.bf16.xpose.msra.mxu0 0
      %1556 = vmatprep.subr.bf16.mxu0 0
      %1557 = vmatpush1.bf16.xpose.msra.mxu0 0
      %1558 = vmatprep.subr.bf16.mxu0 0
      %1559 = vmatpush1.bf16.xpose.msra.mxu0 0
      %1560 = vmatprep.subr.bf16.mxu0 0
      %1561 = vmatpush1.bf16.xpose.msra.mxu0 0
      %1562 = vmatprep.subr.bf16.mxu0 0
      %1563 = vmatpush1.bf16.xpose.msra.mxu0 0
      %1564 = vmatprep.subr.bf16.mxu0 0
      %1565 = vmatpush1.bf16.xpose.msra.mxu0 0
      %1566 = vmatprep.subr.bf16.mxu0 0
      %1567 = vmatpush1.bf16.xpose.msra.mxu0 0
      %1568 = vmatprep.subr.bf16.mxu0 0
      %1569 = vmatpush1.bf16.xpose.msra.mxu0 0
      %1570 = vmatprep.subr.bf16.mxu0 0
      %1571 = vmatpush1.bf16.xpose.msra.mxu0 0
      %1572 = vmatprep.mubr.bf16.mxu0 0
      %1573 = vmatmul.mubr.bf16.gmra.mrb[0].mxu0 %v1535
      %v1574 = vpop.f32.mrb[0].mxu0
      %v1575 = vadd.f32 %v1288, %v1574
      %v1576 = vpop.f32.mrb[0].mxu0
      %v1577 = vpop.f32.mrb[0].mxu0
      %v1578 = vpop.f32.mrb[0].mxu0
      %1579 = vdwg.mxu0
      %v1581 = vsel %vm1487, %v424, 0
      %v1584 = vsel %vm1487, %v428, 0
      %1586 = vmatprep.subr.bf16.mxu0 0
      %1587 = vmatpush1.bf16.xpose.msra.mxu0 %v1584
      %1588 = vmatprep.subr.bf16.mxu0 0
      %1589 = vmatpush1.bf16.xpose.msra.mxu0 0
      %1590 = vmatprep.subr.bf16.mxu0 0
      %1591 = vmatpush1.bf16.xpose.msra.mxu0 0
      %1592 = vmatprep.subr.bf16.mxu0 0
      %1593 = vmatpush1.bf16.xpose.msra.mxu0 0
      %1594 = vmatprep.subr.bf16.mxu0 0
      %1595 = vmatpush1.bf16.xpose.msra.mxu0 0
      %1596 = vmatprep.subr.bf16.mxu0 0
      %1597 = vmatpush1.bf16.xpose.msra.mxu0 0
      %1598 = vmatprep.subr.bf16.mxu0 0
      %1599 = vmatpush1.bf16.xpose.msra.mxu0 0
      %1600 = vmatprep.subr.bf16.mxu0 0
      %1601 = vmatpush1.bf16.xpose.msra.mxu0 0
      %1602 = vmatprep.subr.bf16.mxu0 0
      %1603 = vmatpush1.bf16.xpose.msra.mxu0 0
      %1604 = vmatprep.subr.bf16.mxu0 0
      %1605 = vmatpush1.bf16.xpose.msra.mxu0 0
      %1606 = vmatprep.subr.bf16.mxu0 0
      %1607 = vmatpush1.bf16.xpose.msra.mxu0 0
      %1608 = vmatprep.subr.bf16.mxu0 0
      %1609 = vmatpush1.bf16.xpose.msra.mxu0 0
      %1610 = vmatprep.subr.bf16.mxu0 0
      %1611 = vmatpush1.bf16.xpose.msra.mxu0 0
      %1612 = vmatprep.subr.bf16.mxu0 0
      %1613 = vmatpush1.bf16.xpose.msra.mxu0 0
      %1614 = vmatprep.subr.bf16.mxu0 0
      %1615 = vmatpush1.bf16.xpose.msra.mxu0 0
      %1616 = vmatprep.subr.bf16.mxu0 0
      %1617 = vmatpush1.bf16.xpose.msra.mxu0 0
      %1618 = vmatprep.mubr.bf16.mxu0 0
      %1619 = vmatmul.mubr.bf16.gmra.mrb[0].mxu0 %v1581
      %v1620 = vpop.f32.mrb[0].mxu0
      %v1621 = vadd.f32 %v1289, %v1620
      %v1622 = vpop.f32.mrb[0].mxu0
      %v1623 = vpop.f32.mrb[0].mxu0
      %v1624 = vpop.f32.mrb[0].mxu0
      %1625 = vdwg.mxu0
      %v1627 = vsel %vm1487, %v425, 0
      %v1630 = vsel %vm1487, %v429, 0
      %1632 = vmatprep.subr.bf16.mxu0 0
      %1633 = vmatpush1.bf16.xpose.msra.mxu0 %v1630
      %1634 = vmatprep.subr.bf16.mxu0 0
      %1635 = vmatpush1.bf16.xpose.msra.mxu0 0
      %1636 = vmatprep.subr.bf16.mxu0 0
      %1637 = vmatpush1.bf16.xpose.msra.mxu0 0
      %1638 = vmatprep.subr.bf16.mxu0 0
      %1639 = vmatpush1.bf16.xpose.msra.mxu0 0
      %1640 = vmatprep.subr.bf16.mxu0 0
      %1641 = vmatpush1.bf16.xpose.msra.mxu0 0
      %1642 = vmatprep.subr.bf16.mxu0 0
      %1643 = vmatpush1.bf16.xpose.msra.mxu0 0
      %1644 = vmatprep.subr.bf16.mxu0 0
      %1645 = vmatpush1.bf16.xpose.msra.mxu0 0
      %1646 = vmatprep.subr.bf16.mxu0 0
      %1647 = vmatpush1.bf16.xpose.msra.mxu0 0
      %1648 = vmatprep.subr.bf16.mxu0 0
      %1649 = vmatpush1.bf16.xpose.msra.mxu0 0
      %1650 = vmatprep.subr.bf16.mxu0 0
      %1651 = vmatpush1.bf16.xpose.msra.mxu0 0
      %1652 = vmatprep.subr.bf16.mxu0 0
      %1653 = vmatpush1.bf16.xpose.msra.mxu0 0
      %1654 = vmatprep.subr.bf16.mxu0 0
      %1655 = vmatpush1.bf16.xpose.msra.mxu0 0
      %1656 = vmatprep.subr.bf16.mxu0 0
      %1657 = vmatpush1.bf16.xpose.msra.mxu0 0
      %1658 = vmatprep.subr.bf16.mxu0 0
      %1659 = vmatpush1.bf16.xpose.msra.mxu0 0
      %1660 = vmatprep.subr.bf16.mxu0 0
      %1661 = vmatpush1.bf16.xpose.msra.mxu0 0
      %1662 = vmatprep.subr.bf16.mxu0 0
      %1663 = vmatpush1.bf16.xpose.msra.mxu0 0
      %1664 = vmatprep.mubr.bf16.mxu0 0
      %1665 = vmatmul.mubr.bf16.gmra.mrb[0].mxu0 %v1627
      %v1666 = vpop.f32.mrb[0].mxu0
      %v1667 = vadd.f32 %v1290, %v1666
      %v1668 = vpop.f32.mrb[0].mxu0
      %v1669 = vpop.f32.mrb[0].mxu0
      %v1670 = vpop.f32.mrb[0].mxu0
      %1671 = vdwg.mxu0
      %v1672 = vadd.f32 %v1529, %v1375
      %v1673 = vadd.f32 %v1575, %v1407
      %v1674 = vadd.f32 %v1621, %v1439
      %v1675 = vadd.f32 %v1667, %v1471
      %v1676 = vadd.f32 %v1672, %v466
      %v1677 = vadd.f32 %v1673, %v466
      %v1678 = vadd.f32 %v1674, %v466
      %v1679 = vadd.f32 %v1675, %v466
      %v1680 = vsel %vm1487, %v1676, -inf
      %1681 = vmax.xlane.f32.xlu0 %v1680
      %v1682 = vpop.xlane.xlu0 %1681
      %v1683 = vsel %vm1487, %v1677, -inf
      %1684 = vmax.xlane.f32.xlu0 %v1683
      %v1685 = vpop.xlane.xlu0 %1684
      %v1686 = vsel %vm1487, %v1678, -inf
      %1687 = vmax.xlane.f32.xlu0 %v1686
      %v1688 = vpop.xlane.xlu0 %1687
      %v1689 = vsel %vm1487, %v1679, -inf
      %1690 = vmax.xlane.f32.xlu0 %v1689
      %v1691 = vpop.xlane.xlu0 %1690
      %v1692 = vsub.f32 %v1676, %v1682
      %v1693 = vsub.f32 %v1677, %v1685
      %v1694 = vsub.f32 %v1678, %v1688
      %v1695 = vsub.f32 %v1679, %v1691
      %v1696 = vmul.f32 %v1692, 1.442695
      %v1697 = vpow.pop %v1696
      %v1698 = vmul.f32 %v1693, 1.442695
      %v1699 = vpow.pop %v1698
      %v1700 = vmul.f32 %v1694, 1.442695
      %v1701 = vpow.pop %v1700
      %v1702 = vmul.f32 %v1695, 1.442695
      %v1703 = vpow.pop %v1702
      %v1704 = vsel %vm1487, %v1697, 0.0
      %1705 = vadd.xlane.f32.xlu0 %v1704
      %v1706 = vpop.xlane.xlu0 %1705
      %v1707 = vsel %vm1487, %v1699, 0.0
      %1708 = vadd.xlane.f32.xlu0 %v1707
      %v1709 = vpop.xlane.xlu0 %1708
      %v1710 = vsel %vm1487, %v1701, 0.0
      %1711 = vadd.xlane.f32.xlu0 %v1710
      %v1712 = vpop.xlane.xlu0 %1711
      %v1713 = vsel %vm1487, %v1703, 0.0
      %1714 = vadd.xlane.f32.xlu0 %v1713
      %v1715 = vpop.xlane.xlu0 %1714
      %v1716 = vrcp.pop %v1706
      %v1717 = vrcp.pop %v1709
      %v1718 = vrcp.pop %v1712
      %v1719 = vrcp.pop %v1715
      %v1720 = vmul.f32 %v1697, %v1716
      %v1721 = vmul.f32 %v1699, %v1717
      %v1722 = vmul.f32 %v1701, %v1718
      %v1723 = vmul.f32 %v1703, %v1719
      %v1724 = vpack.c.bf16 %v1720, %v1720
      %v1725 = vpack.c.bf16 %v1721, %v1721
      %v1726 = vpack.c.bf16 %v1722, %v1722
      %v1727 = vpack.c.bf16 %v1723, %v1723
      %v1728 = vcombine.low %v1720, %v1722
      %v1729 = vcombine.high %v1720, %v1722
      %v1731 = vunpack.c.l.s4 1983009808
      %v1732 = vunpack.c.0.s8 %v1731
      %v1733 = vlaneseq
      %v1734 = vshrl.u32 %v1733, 7
      %v1735 = vsub.s32 %v1732, %v1734
      %v1736 = vrot.slane %v1728, %v1735
      %v1738 = vunpack.c.l.s4 1983009808
      %v1739 = vunpack.c.0.s8 %v1738
      %v1740 = vlaneseq
      %v1741 = vshrl.u32 %v1740, 7
      %v1742 = vsub.s32 %v1739, %v1741
      %v1743 = vrot.slane %v1729, %v1742
      %v1744 = vcombine.low %v1721, %v1723
      %v1745 = vcombine.high %v1721, %v1723
      %v1747 = vunpack.c.l.s4 1983009808
      %v1748 = vunpack.c.0.s8 %v1747
      %v1749 = vlaneseq
      %v1750 = vshrl.u32 %v1749, 7
      %v1751 = vsub.s32 %v1748, %v1750
      %v1752 = vrot.slane %v1744, %v1751
      %v1754 = vunpack.c.l.s4 1983009808
      %v1755 = vunpack.c.0.s8 %v1754
      %v1756 = vlaneseq
      %v1757 = vshrl.u32 %v1756, 7
      %v1758 = vsub.s32 %v1755, %v1757
      %v1759 = vrot.slane %v1745, %v1758
      %v1760 = vcombine.low %v1736, %v1752
      %v1761 = vcombine.high %v1736, %v1752
      %v1763 = vunpack.c.l.s4 1934713408
      %v1764 = vunpack.c.0.s8 %v1763
      %v1765 = vlaneseq
      %v1766 = vshrl.u32 %v1765, 7
      %v1767 = vsub.s32 %v1764, %v1766
      %v1768 = vrot.slane %v1760, %v1767
      %v1770 = vunpack.c.l.s4 1934713408
      %v1771 = vunpack.c.0.s8 %v1770
      %v1772 = vlaneseq
      %v1773 = vshrl.u32 %v1772, 7
      %v1774 = vsub.s32 %v1771, %v1773
      %v1775 = vrot.slane %v1761, %v1774
      %v1776 = vcombine.low %v1743, %v1759
      %v1777 = vcombine.high %v1743, %v1759
      %v1779 = vunpack.c.l.s4 1934713408
      %v1780 = vunpack.c.0.s8 %v1779
      %v1781 = vlaneseq
      %v1782 = vshrl.u32 %v1781, 7
      %v1783 = vsub.s32 %v1780, %v1782
      %v1784 = vrot.slane %v1776, %v1783
      %v1786 = vunpack.c.l.s4 1934713408
      %v1787 = vunpack.c.0.s8 %v1786
      %v1788 = vlaneseq
      %v1789 = vshrl.u32 %v1788, 7
      %v1790 = vsub.s32 %v1787, %v1789
      %v1791 = vrot.slane %v1777, %v1790
      %v1792 = vcombine.high %v1768, 0.0
      %v1793 = vcombine.high %v1775, 0.0
      %v1794 = vcombine.high %v1784, 0.0
      %v1795 = vcombine.high %v1791, 0.0
      %v1796 = vpack.c.bf16 %v1768, %v1768
      %v1797 = vpack.c.bf16 %v1792, %v1792
      %v1798 = vpack.c.bf16 %v1775, %v1775
      %v1799 = vpack.c.bf16 %v1793, %v1793
      %v1800 = vpack.c.bf16 %v1784, %v1784
      %v1801 = vpack.c.bf16 %v1794, %v1794
      %v1802 = vpack.c.bf16 %v1791, %v1791
      %v1803 = vpack.c.bf16 %v1795, %v1795
      %v1805 = vsel %vm1487, %v1724, 0
      %vm1807 = vcmask 1043456
      %v1809 = vsel %vm1807, %v430, 0
      %1811 = vmatprep.subr.bf16.mxu0 0
      %1812 = vmatpush1.bf16.msra.mxu0 %v1809
      %1813 = vmatprep.subr.bf16.mxu0 0
      %1814 = vmatpush1.bf16.msra.mxu0 0
      %1815 = vmatprep.subr.bf16.mxu0 0
      %1816 = vmatpush1.bf16.msra.mxu0 0
      %1817 = vmatprep.subr.bf16.mxu0 0
      %1818 = vmatpush1.bf16.msra.mxu0 0
      %1819 = vmatprep.subr.bf16.mxu0 0
      %1820 = vmatpush1.bf16.msra.mxu0 0
      %1821 = vmatprep.subr.bf16.mxu0 0
      %1822 = vmatpush1.bf16.msra.mxu0 0
      %1823 = vmatprep.subr.bf16.mxu0 0
      %1824 = vmatpush1.bf16.msra.mxu0 0
      %1825 = vmatprep.subr.bf16.mxu0 0
      %1826 = vmatpush1.bf16.msra.mxu0 0
      %1827 = vmatprep.subr.bf16.mxu0 0
      %1828 = vmatpush1.bf16.msra.mxu0 0
      %1829 = vmatprep.subr.bf16.mxu0 0
      %1830 = vmatpush1.bf16.msra.mxu0 0
      %1831 = vmatprep.subr.bf16.mxu0 0
      %1832 = vmatpush1.bf16.msra.mxu0 0
      %1833 = vmatprep.subr.bf16.mxu0 0
      %1834 = vmatpush1.bf16.msra.mxu0 0
      %1835 = vmatprep.subr.bf16.mxu0 0
      %1836 = vmatpush1.bf16.msra.mxu0 0
      %1837 = vmatprep.subr.bf16.mxu0 0
      %1838 = vmatpush1.bf16.msra.mxu0 0
      %1839 = vmatprep.subr.bf16.mxu0 0
      %1840 = vmatpush1.bf16.msra.mxu0 0
      %1841 = vmatprep.subr.bf16.mxu0 0
      %1842 = vmatpush1.bf16.msra.mxu0 0
      %1843 = vmatprep.mubr.bf16.mxu0 0
      %1844 = vmatmul.mubr.bf16.gmra.mrb[0].mxu0 %v1805
      %v1845 = vpop.f32.mrb[0].mxu0
      %v1846 = vadd.f32 0.0, %v1845
      %v1847 = vpop.f32.mrb[0].mxu0
      %v1848 = vpop.f32.mrb[0].mxu0
      %v1849 = vpop.f32.mrb[0].mxu0
      %1850 = vdwg.mxu0
      %v1852 = vsel %vm1487, %v1725, 0
      %v1855 = vsel %vm1807, %v431, 0
      %1857 = vmatprep.subr.bf16.mxu0 0
      %1858 = vmatpush1.bf16.msra.mxu0 %v1855
      %1859 = vmatprep.subr.bf16.mxu0 0
      %1860 = vmatpush1.bf16.msra.mxu0 0
      %1861 = vmatprep.subr.bf16.mxu0 0
      %1862 = vmatpush1.bf16.msra.mxu0 0
      %1863 = vmatprep.subr.bf16.mxu0 0
      %1864 = vmatpush1.bf16.msra.mxu0 0
      %1865 = vmatprep.subr.bf16.mxu0 0
      %1866 = vmatpush1.bf16.msra.mxu0 0
      %1867 = vmatprep.subr.bf16.mxu0 0
      %1868 = vmatpush1.bf16.msra.mxu0 0
      %1869 = vmatprep.subr.bf16.mxu0 0
      %1870 = vmatpush1.bf16.msra.mxu0 0
      %1871 = vmatprep.subr.bf16.mxu0 0
      %1872 = vmatpush1.bf16.msra.mxu0 0
      %1873 = vmatprep.subr.bf16.mxu0 0
      %1874 = vmatpush1.bf16.msra.mxu0 0
      %1875 = vmatprep.subr.bf16.mxu0 0
      %1876 = vmatpush1.bf16.msra.mxu0 0
      %1877 = vmatprep.subr.bf16.mxu0 0
      %1878 = vmatpush1.bf16.msra.mxu0 0
      %1879 = vmatprep.subr.bf16.mxu0 0
      %1880 = vmatpush1.bf16.msra.mxu0 0
      %1881 = vmatprep.subr.bf16.mxu0 0
      %1882 = vmatpush1.bf16.msra.mxu0 0
      %1883 = vmatprep.subr.bf16.mxu0 0
      %1884 = vmatpush1.bf16.msra.mxu0 0
      %1885 = vmatprep.subr.bf16.mxu0 0
      %1886 = vmatpush1.bf16.msra.mxu0 0
      %1887 = vmatprep.subr.bf16.mxu0 0
      %1888 = vmatpush1.bf16.msra.mxu0 0
      %1889 = vmatprep.mubr.bf16.mxu0 0
      %1890 = vmatmul.mubr.bf16.gmra.mrb[0].mxu0 %v1852
      %v1891 = vpop.f32.mrb[0].mxu0
      %v1892 = vadd.f32 0.0, %v1891
      %v1893 = vpop.f32.mrb[0].mxu0
      %v1894 = vpop.f32.mrb[0].mxu0
      %v1895 = vpop.f32.mrb[0].mxu0
      %1896 = vdwg.mxu0
      %v1898 = vsel %vm1487, %v1726, 0
      %v1901 = vsel %vm1807, %v432, 0
      %1903 = vmatprep.subr.bf16.mxu0 0
      %1904 = vmatpush1.bf16.msra.mxu0 %v1901
      %1905 = vmatprep.subr.bf16.mxu0 0
      %1906 = vmatpush1.bf16.msra.mxu0 0
      %1907 = vmatprep.subr.bf16.mxu0 0
      %1908 = vmatpush1.bf16.msra.mxu0 0
      %1909 = vmatprep.subr.bf16.mxu0 0
      %1910 = vmatpush1.bf16.msra.mxu0 0
      %1911 = vmatprep.subr.bf16.mxu0 0
      %1912 = vmatpush1.bf16.msra.mxu0 0
      %1913 = vmatprep.subr.bf16.mxu0 0
      %1914 = vmatpush1.bf16.msra.mxu0 0
      %1915 = vmatprep.subr.bf16.mxu0 0
      %1916 = vmatpush1.bf16.msra.mxu0 0
      %1917 = vmatprep.subr.bf16.mxu0 0
      %1918 = vmatpush1.bf16.msra.mxu0 0
      %1919 = vmatprep.subr.bf16.mxu0 0
      %1920 = vmatpush1.bf16.msra.mxu0 0
      %1921 = vmatprep.subr.bf16.mxu0 0
      %1922 = vmatpush1.bf16.msra.mxu0 0
      %1923 = vmatprep.subr.bf16.mxu0 0
      %1924 = vmatpush1.bf16.msra.mxu0 0
      %1925 = vmatprep.subr.bf16.mxu0 0
      %1926 = vmatpush1.bf16.msra.mxu0 0
      %1927 = vmatprep.subr.bf16.mxu0 0
      %1928 = vmatpush1.bf16.msra.mxu0 0
      %1929 = vmatprep.subr.bf16.mxu0 0
      %1930 = vmatpush1.bf16.msra.mxu0 0
      %1931 = vmatprep.subr.bf16.mxu0 0
      %1932 = vmatpush1.bf16.msra.mxu0 0
      %1933 = vmatprep.subr.bf16.mxu0 0
      %1934 = vmatpush1.bf16.msra.mxu0 0
      %1935 = vmatprep.mubr.bf16.mxu0 0
      %1936 = vmatmul.mubr.bf16.gmra.mrb[0].mxu0 %v1898
      %v1937 = vpop.f32.mrb[0].mxu0
      %v1938 = vadd.f32 0.0, %v1937
      %v1939 = vpop.f32.mrb[0].mxu0
      %v1940 = vpop.f32.mrb[0].mxu0
      %v1941 = vpop.f32.mrb[0].mxu0
      %1942 = vdwg.mxu0
      %v1944 = vsel %vm1487, %v1727, 0
      %v1947 = vsel %vm1807, %v433, 0
      %1949 = vmatprep.subr.bf16.mxu0 0
      %1950 = vmatpush1.bf16.msra.mxu0 %v1947
      %1951 = vmatprep.subr.bf16.mxu0 0
      %1952 = vmatpush1.bf16.msra.mxu0 0
      %1953 = vmatprep.subr.bf16.mxu0 0
      %1954 = vmatpush1.bf16.msra.mxu0 0
      %1955 = vmatprep.subr.bf16.mxu0 0
      %1956 = vmatpush1.bf16.msra.mxu0 0
      %1957 = vmatprep.subr.bf16.mxu0 0
      %1958 = vmatpush1.bf16.msra.mxu0 0
      %1959 = vmatprep.subr.bf16.mxu0 0
      %1960 = vmatpush1.bf16.msra.mxu0 0
      %1961 = vmatprep.subr.bf16.mxu0 0
      %1962 = vmatpush1.bf16.msra.mxu0 0
      %1963 = vmatprep.subr.bf16.mxu0 0
      %1964 = vmatpush1.bf16.msra.mxu0 0
      %1965 = vmatprep.subr.bf16.mxu0 0
      %1966 = vmatpush1.bf16.msra.mxu0 0
      %1967 = vmatprep.subr.bf16.mxu0 0
      %1968 = vmatpush1.bf16.msra.mxu0 0
      %1969 = vmatprep.subr.bf16.mxu0 0
      %1970 = vmatpush1.bf16.msra.mxu0 0
      %1971 = vmatprep.subr.bf16.mxu0 0
      %1972 = vmatpush1.bf16.msra.mxu0 0
      %1973 = vmatprep.subr.bf16.mxu0 0
      %1974 = vmatpush1.bf16.msra.mxu0 0
      %1975 = vmatprep.subr.bf16.mxu0 0
      %1976 = vmatpush1.bf16.msra.mxu0 0
      %1977 = vmatprep.subr.bf16.mxu0 0
      %1978 = vmatpush1.bf16.msra.mxu0 0
      %1979 = vmatprep.subr.bf16.mxu0 0
      %1980 = vmatpush1.bf16.msra.mxu0 0
      %1981 = vmatprep.mubr.bf16.mxu0 0
      %1982 = vmatmul.mubr.bf16.gmra.mrb[0].mxu0 %v1944
      %v1983 = vpop.f32.mrb[0].mxu0
      %v1984 = vadd.f32 0.0, %v1983
      %v1985 = vpop.f32.mrb[0].mxu0
      %v1986 = vpop.f32.mrb[0].mxu0
      %v1987 = vpop.f32.mrb[0].mxu0
      %1988 = vdwg.mxu0
      %v1990 = vsel %vm1487, %v1796, 0
      %v1992 = vsel %vm1487, %v473, 0
      %1994 = vmatprep.subr.bf16.mxu0 0
      %1995 = vmatpush1.bf16.xpose.msra.mxu0 %v1992
      %1996 = vmatprep.subr.bf16.mxu0 0
      %1997 = vmatpush1.bf16.xpose.msra.mxu0 0
      %1998 = vmatprep.subr.bf16.mxu0 0
      %1999 = vmatpush1.bf16.xpose.msra.mxu0 0
      %2000 = vmatprep.subr.bf16.mxu0 0
      %2001 = vmatpush1.bf16.xpose.msra.mxu0 0
      %2002 = vmatprep.subr.bf16.mxu0 0
      %2003 = vmatpush1.bf16.xpose.msra.mxu0 0
      %2004 = vmatprep.subr.bf16.mxu0 0
      %2005 = vmatpush1.bf16.xpose.msra.mxu0 0
      %2006 = vmatprep.subr.bf16.mxu0 0
      %2007 = vmatpush1.bf16.xpose.msra.mxu0 0
      %2008 = vmatprep.subr.bf16.mxu0 0
      %2009 = vmatpush1.bf16.xpose.msra.mxu0 0
      %2010 = vmatprep.subr.bf16.mxu0 0
      %2011 = vmatpush1.bf16.xpose.msra.mxu0 0
      %2012 = vmatprep.subr.bf16.mxu0 0
      %2013 = vmatpush1.bf16.xpose.msra.mxu0 0
      %2014 = vmatprep.subr.bf16.mxu0 0
      %2015 = vmatpush1.bf16.xpose.msra.mxu0 0
      %2016 = vmatprep.subr.bf16.mxu0 0
      %2017 = vmatpush1.bf16.xpose.msra.mxu0 0
      %2018 = vmatprep.subr.bf16.mxu0 0
      %2019 = vmatpush1.bf16.xpose.msra.mxu0 0
      %2020 = vmatprep.subr.bf16.mxu0 0
      %2021 = vmatpush1.bf16.xpose.msra.mxu0 0
      %2022 = vmatprep.subr.bf16.mxu0 0
      %2023 = vmatpush1.bf16.xpose.msra.mxu0 0
      %2024 = vmatprep.subr.bf16.mxu0 0
      %2025 = vmatpush1.bf16.xpose.msra.mxu0 0
      %2026 = vmatprep.mubr.bf16.mxu0 0
      %2027 = vmatmul.mubr.bf16.gmra.mrb[0].mxu0 %v1990
      %v2028 = vpop.f32.mrb[0].mxu0
      %v2029 = vadd.f32 0.0, %v2028
      %v2030 = vpop.f32.mrb[0].mxu0
      %v2031 = vpop.f32.mrb[0].mxu0
      %v2032 = vpop.f32.mrb[0].mxu0
      %2033 = vdwg.mxu0
      %v2035 = vsel %vm1487, %v1797, 0
      %v2037 = vsel %vm1487, %v526, 0
      %2039 = vmatprep.subr.bf16.mxu0 0
      %2040 = vmatpush1.bf16.xpose.msra.mxu0 %v2037
      %2041 = vmatprep.subr.bf16.mxu0 0
      %2042 = vmatpush1.bf16.xpose.msra.mxu0 0
      %2043 = vmatprep.subr.bf16.mxu0 0
      %2044 = vmatpush1.bf16.xpose.msra.mxu0 0
      %2045 = vmatprep.subr.bf16.mxu0 0
      %2046 = vmatpush1.bf16.xpose.msra.mxu0 0
      %2047 = vmatprep.subr.bf16.mxu0 0
      %2048 = vmatpush1.bf16.xpose.msra.mxu0 0
      %2049 = vmatprep.subr.bf16.mxu0 0
      %2050 = vmatpush1.bf16.xpose.msra.mxu0 0
      %2051 = vmatprep.subr.bf16.mxu0 0
      %2052 = vmatpush1.bf16.xpose.msra.mxu0 0
      %2053 = vmatprep.subr.bf16.mxu0 0
      %2054 = vmatpush1.bf16.xpose.msra.mxu0 0
      %2055 = vmatprep.subr.bf16.mxu0 0
      %2056 = vmatpush1.bf16.xpose.msra.mxu0 0
      %2057 = vmatprep.subr.bf16.mxu0 0
      %2058 = vmatpush1.bf16.xpose.msra.mxu0 0
      %2059 = vmatprep.subr.bf16.mxu0 0
      %2060 = vmatpush1.bf16.xpose.msra.mxu0 0
      %2061 = vmatprep.subr.bf16.mxu0 0
      %2062 = vmatpush1.bf16.xpose.msra.mxu0 0
      %2063 = vmatprep.subr.bf16.mxu0 0
      %2064 = vmatpush1.bf16.xpose.msra.mxu0 0
      %2065 = vmatprep.subr.bf16.mxu0 0
      %2066 = vmatpush1.bf16.xpose.msra.mxu0 0
      %2067 = vmatprep.subr.bf16.mxu0 0
      %2068 = vmatpush1.bf16.xpose.msra.mxu0 0
      %2069 = vmatprep.subr.bf16.mxu0 0
      %2070 = vmatpush1.bf16.xpose.msra.mxu0 0
      %2071 = vmatprep.mubr.bf16.mxu0 0
      %2072 = vmatmul.mubr.bf16.gmra.mrb[0].mxu0 %v2035
      %v2073 = vpop.f32.mrb[0].mxu0
      %v2074 = vadd.f32 0.0, %v2073
      %v2075 = vpop.f32.mrb[0].mxu0
      %v2076 = vpop.f32.mrb[0].mxu0
      %v2077 = vpop.f32.mrb[0].mxu0
      %2078 = vdwg.mxu0
      %v2080 = vsel %vm1487, %v1798, 0
      %v2082 = vsel %vm1487, %v577, 0
      %2084 = vmatprep.subr.bf16.mxu0 0
      %2085 = vmatpush1.bf16.xpose.msra.mxu0 %v2082
      %2086 = vmatprep.subr.bf16.mxu0 0
      %2087 = vmatpush1.bf16.xpose.msra.mxu0 0
      %2088 = vmatprep.subr.bf16.mxu0 0
      %2089 = vmatpush1.bf16.xpose.msra.mxu0 0
      %2090 = vmatprep.subr.bf16.mxu0 0
      %2091 = vmatpush1.bf16.xpose.msra.mxu0 0
      %2092 = vmatprep.subr.bf16.mxu0 0
      %2093 = vmatpush1.bf16.xpose.msra.mxu0 0
      %2094 = vmatprep.subr.bf16.mxu0 0
      %2095 = vmatpush1.bf16.xpose.msra.mxu0 0
      %2096 = vmatprep.subr.bf16.mxu0 0
      %2097 = vmatpush1.bf16.xpose.msra.mxu0 0
      %2098 = vmatprep.subr.bf16.mxu0 0
      %2099 = vmatpush1.bf16.xpose.msra.mxu0 0
      %2100 = vmatprep.subr.bf16.mxu0 0
      %2101 = vmatpush1.bf16.xpose.msra.mxu0 0
      %2102 = vmatprep.subr.bf16.mxu0 0
      %2103 = vmatpush1.bf16.xpose.msra.mxu0 0
      %2104 = vmatprep.subr.bf16.mxu0 0
      %2105 = vmatpush1.bf16.xpose.msra.mxu0 0
      %2106 = vmatprep.subr.bf16.mxu0 0
      %2107 = vmatpush1.bf16.xpose.msra.mxu0 0
      %2108 = vmatprep.subr.bf16.mxu0 0
      %2109 = vmatpush1.bf16.xpose.msra.mxu0 0
      %2110 = vmatprep.subr.bf16.mxu0 0
      %2111 = vmatpush1.bf16.xpose.msra.mxu0 0
      %2112 = vmatprep.subr.bf16.mxu0 0
      %2113 = vmatpush1.bf16.xpose.msra.mxu0 0
      %2114 = vmatprep.subr.bf16.mxu0 0
      %2115 = vmatpush1.bf16.xpose.msra.mxu0 0
      %2116 = vmatprep.mubr.bf16.mxu0 0
      %2117 = vmatmul.mubr.bf16.gmra.mrb[0].mxu0 %v2080
      %v2118 = vpop.f32.mrb[0].mxu0
      %v2119 = vadd.f32 0.0, %v2118
      %v2120 = vpop.f32.mrb[0].mxu0
      %v2121 = vpop.f32.mrb[0].mxu0
      %v2122 = vpop.f32.mrb[0].mxu0
      %2123 = vdwg.mxu0
      %v2125 = vsel %vm1487, %v1799, 0
      %v2127 = vsel %vm1487, %v628, 0
      %2129 = vmatprep.subr.bf16.mxu0 0
      %2130 = vmatpush1.bf16.xpose.msra.mxu0 %v2127
      %2131 = vmatprep.subr.bf16.mxu0 0
      %2132 = vmatpush1.bf16.xpose.msra.mxu0 0
      %2133 = vmatprep.subr.bf16.mxu0 0
      %2134 = vmatpush1.bf16.xpose.msra.mxu0 0
      %2135 = vmatprep.subr.bf16.mxu0 0
      %2136 = vmatpush1.bf16.xpose.msra.mxu0 0
      %2137 = vmatprep.subr.bf16.mxu0 0
      %2138 = vmatpush1.bf16.xpose.msra.mxu0 0
      %2139 = vmatprep.subr.bf16.mxu0 0
      %2140 = vmatpush1.bf16.xpose.msra.mxu0 0
      %2141 = vmatprep.subr.bf16.mxu0 0
      %2142 = vmatpush1.bf16.xpose.msra.mxu0 0
      %2143 = vmatprep.subr.bf16.mxu0 0
      %2144 = vmatpush1.bf16.xpose.msra.mxu0 0
      %2145 = vmatprep.subr.bf16.mxu0 0
      %2146 = vmatpush1.bf16.xpose.msra.mxu0 0
      %2147 = vmatprep.subr.bf16.mxu0 0
      %2148 = vmatpush1.bf16.xpose.msra.mxu0 0
      %2149 = vmatprep.subr.bf16.mxu0 0
      %2150 = vmatpush1.bf16.xpose.msra.mxu0 0
      %2151 = vmatprep.subr.bf16.mxu0 0
      %2152 = vmatpush1.bf16.xpose.msra.mxu0 0
      %2153 = vmatprep.subr.bf16.mxu0 0
      %2154 = vmatpush1.bf16.xpose.msra.mxu0 0
      %2155 = vmatprep.subr.bf16.mxu0 0
      %2156 = vmatpush1.bf16.xpose.msra.mxu0 0
      %2157 = vmatprep.subr.bf16.mxu0 0
      %2158 = vmatpush1.bf16.xpose.msra.mxu0 0
      %2159 = vmatprep.subr.bf16.mxu0 0
      %2160 = vmatpush1.bf16.xpose.msra.mxu0 0
      %2161 = vmatprep.mubr.bf16.mxu0 0
      %2162 = vmatmul.mubr.bf16.gmra.mrb[0].mxu0 %v2125
      %v2163 = vpop.f32.mrb[0].mxu0
      %v2164 = vadd.f32 0.0, %v2163
      %v2165 = vpop.f32.mrb[0].mxu0
      %v2166 = vpop.f32.mrb[0].mxu0
      %v2167 = vpop.f32.mrb[0].mxu0
      %2168 = vdwg.mxu0
      %v2170 = vsel %vm1487, %v1800, 0
      %v2172 = vsel %vm1487, %v679, 0
      %2174 = vmatprep.subr.bf16.mxu0 0
      %2175 = vmatpush1.bf16.xpose.msra.mxu0 %v2172
      %2176 = vmatprep.subr.bf16.mxu0 0
      %2177 = vmatpush1.bf16.xpose.msra.mxu0 0
      %2178 = vmatprep.subr.bf16.mxu0 0
      %2179 = vmatpush1.bf16.xpose.msra.mxu0 0
      %2180 = vmatprep.subr.bf16.mxu0 0
      %2181 = vmatpush1.bf16.xpose.msra.mxu0 0
      %2182 = vmatprep.subr.bf16.mxu0 0
      %2183 = vmatpush1.bf16.xpose.msra.mxu0 0
      %2184 = vmatprep.subr.bf16.mxu0 0
      %2185 = vmatpush1.bf16.xpose.msra.mxu0 0
      %2186 = vmatprep.subr.bf16.mxu0 0
      %2187 = vmatpush1.bf16.xpose.msra.mxu0 0
      %2188 = vmatprep.subr.bf16.mxu0 0
      %2189 = vmatpush1.bf16.xpose.msra.mxu0 0
      %2190 = vmatprep.subr.bf16.mxu0 0
      %2191 = vmatpush1.bf16.xpose.msra.mxu0 0
      %2192 = vmatprep.subr.bf16.mxu0 0
      %2193 = vmatpush1.bf16.xpose.msra.mxu0 0
      %2194 = vmatprep.subr.bf16.mxu0 0
      %2195 = vmatpush1.bf16.xpose.msra.mxu0 0
      %2196 = vmatprep.subr.bf16.mxu0 0
      %2197 = vmatpush1.bf16.xpose.msra.mxu0 0
      %2198 = vmatprep.subr.bf16.mxu0 0
      %2199 = vmatpush1.bf16.xpose.msra.mxu0 0
      %2200 = vmatprep.subr.bf16.mxu0 0
      %2201 = vmatpush1.bf16.xpose.msra.mxu0 0
      %2202 = vmatprep.subr.bf16.mxu0 0
      %2203 = vmatpush1.bf16.xpose.msra.mxu0 0
      %2204 = vmatprep.subr.bf16.mxu0 0
      %2205 = vmatpush1.bf16.xpose.msra.mxu0 0
      %2206 = vmatprep.mubr.bf16.mxu0 0
      %2207 = vmatmul.mubr.bf16.gmra.mrb[0].mxu0 %v2170
      %v2208 = vpop.f32.mrb[0].mxu0
      %v2209 = vadd.f32 0.0, %v2208
      %v2210 = vpop.f32.mrb[0].mxu0
      %v2211 = vpop.f32.mrb[0].mxu0
      %v2212 = vpop.f32.mrb[0].mxu0
      %2213 = vdwg.mxu0
      %v2215 = vsel %vm1487, %v1801, 0
      %v2217 = vsel %vm1487, %v730, 0
      %2219 = vmatprep.subr.bf16.mxu0 0
      %2220 = vmatpush1.bf16.xpose.msra.mxu0 %v2217
      %2221 = vmatprep.subr.bf16.mxu0 0
      %2222 = vmatpush1.bf16.xpose.msra.mxu0 0
      %2223 = vmatprep.subr.bf16.mxu0 0
      %2224 = vmatpush1.bf16.xpose.msra.mxu0 0
      %2225 = vmatprep.subr.bf16.mxu0 0
      %2226 = vmatpush1.bf16.xpose.msra.mxu0 0
      %2227 = vmatprep.subr.bf16.mxu0 0
      %2228 = vmatpush1.bf16.xpose.msra.mxu0 0
      %2229 = vmatprep.subr.bf16.mxu0 0
      %2230 = vmatpush1.bf16.xpose.msra.mxu0 0
      %2231 = vmatprep.subr.bf16.mxu0 0
      %2232 = vmatpush1.bf16.xpose.msra.mxu0 0
      %2233 = vmatprep.subr.bf16.mxu0 0
      %2234 = vmatpush1.bf16.xpose.msra.mxu0 0
      %2235 = vmatprep.subr.bf16.mxu0 0
      %2236 = vmatpush1.bf16.xpose.msra.mxu0 0
      %2237 = vmatprep.subr.bf16.mxu0 0
      %2238 = vmatpush1.bf16.xpose.msra.mxu0 0
      %2239 = vmatprep.subr.bf16.mxu0 0
      %2240 = vmatpush1.bf16.xpose.msra.mxu0 0
      %2241 = vmatprep.subr.bf16.mxu0 0
      %2242 = vmatpush1.bf16.xpose.msra.mxu0 0
      %2243 = vmatprep.subr.bf16.mxu0 0
      %2244 = vmatpush1.bf16.xpose.msra.mxu0 0
      %2245 = vmatprep.subr.bf16.mxu0 0
      %2246 = vmatpush1.bf16.xpose.msra.mxu0 0
      %2247 = vmatprep.subr.bf16.mxu0 0
      %2248 = vmatpush1.bf16.xpose.msra.mxu0 0
      %2249 = vmatprep.subr.bf16.mxu0 0
      %2250 = vmatpush1.bf16.xpose.msra.mxu0 0
      %2251 = vmatprep.mubr.bf16.mxu0 0
      %2252 = vmatmul.mubr.bf16.gmra.mrb[0].mxu0 %v2215
      %v2253 = vpop.f32.mrb[0].mxu0
      %v2254 = vadd.f32 0.0, %v2253
      %v2255 = vpop.f32.mrb[0].mxu0
      %v2256 = vpop.f32.mrb[0].mxu0
      %v2257 = vpop.f32.mrb[0].mxu0
      %2258 = vdwg.mxu0
      %v2260 = vsel %vm1487, %v1802, 0
      %v2262 = vsel %vm1487, %v781, 0
      %2264 = vmatprep.subr.bf16.mxu0 0
      %2265 = vmatpush1.bf16.xpose.msra.mxu0 %v2262
      %2266 = vmatprep.subr.bf16.mxu0 0
      %2267 = vmatpush1.bf16.xpose.msra.mxu0 0
      %2268 = vmatprep.subr.bf16.mxu0 0
      %2269 = vmatpush1.bf16.xpose.msra.mxu0 0
      %2270 = vmatprep.subr.bf16.mxu0 0
      %2271 = vmatpush1.bf16.xpose.msra.mxu0 0
      %2272 = vmatprep.subr.bf16.mxu0 0
      %2273 = vmatpush1.bf16.xpose.msra.mxu0 0
      %2274 = vmatprep.subr.bf16.mxu0 0
      %2275 = vmatpush1.bf16.xpose.msra.mxu0 0
      %2276 = vmatprep.subr.bf16.mxu0 0
      %2277 = vmatpush1.bf16.xpose.msra.mxu0 0
      %2278 = vmatprep.subr.bf16.mxu0 0
      %2279 = vmatpush1.bf16.xpose.msra.mxu0 0
      %2280 = vmatprep.subr.bf16.mxu0 0
      %2281 = vmatpush1.bf16.xpose.msra.mxu0 0
      %2282 = vmatprep.subr.bf16.mxu0 0
      %2283 = vmatpush1.bf16.xpose.msra.mxu0 0
      %2284 = vmatprep.subr.bf16.mxu0 0
      %2285 = vmatpush1.bf16.xpose.msra.mxu0 0
      %2286 = vmatprep.subr.bf16.mxu0 0
      %2287 = vmatpush1.bf16.xpose.msra.mxu0 0
      %2288 = vmatprep.subr.bf16.mxu0 0
      %2289 = vmatpush1.bf16.xpose.msra.mxu0 0
      %2290 = vmatprep.subr.bf16.mxu0 0
      %2291 = vmatpush1.bf16.xpose.msra.mxu0 0
      %2292 = vmatprep.subr.bf16.mxu0 0
      %2293 = vmatpush1.bf16.xpose.msra.mxu0 0
      %2294 = vmatprep.subr.bf16.mxu0 0
      %2295 = vmatpush1.bf16.xpose.msra.mxu0 0
      %2296 = vmatprep.mubr.bf16.mxu0 0
      %2297 = vmatmul.mubr.bf16.gmra.mrb[0].mxu0 %v2260
      %v2298 = vpop.f32.mrb[0].mxu0
      %v2299 = vadd.f32 0.0, %v2298
      %v2300 = vpop.f32.mrb[0].mxu0
      %v2301 = vpop.f32.mrb[0].mxu0
      %v2302 = vpop.f32.mrb[0].mxu0
      %2303 = vdwg.mxu0
      %v2305 = vsel %vm1487, %v1803, 0
      %v2307 = vsel %vm1487, %v832, 0
      %2309 = vmatprep.subr.bf16.mxu0 0
      %2310 = vmatpush1.bf16.xpose.msra.mxu0 %v2307
      %2311 = vmatprep.subr.bf16.mxu0 0
      %2312 = vmatpush1.bf16.xpose.msra.mxu0 0
      %2313 = vmatprep.subr.bf16.mxu0 0
      %2314 = vmatpush1.bf16.xpose.msra.mxu0 0
      %2315 = vmatprep.subr.bf16.mxu0 0
      %2316 = vmatpush1.bf16.xpose.msra.mxu0 0
      %2317 = vmatprep.subr.bf16.mxu0 0
      %2318 = vmatpush1.bf16.xpose.msra.mxu0 0
      %2319 = vmatprep.subr.bf16.mxu0 0
      %2320 = vmatpush1.bf16.xpose.msra.mxu0 0
      %2321 = vmatprep.subr.bf16.mxu0 0
      %2322 = vmatpush1.bf16.xpose.msra.mxu0 0
      %2323 = vmatprep.subr.bf16.mxu0 0
      %2324 = vmatpush1.bf16.xpose.msra.mxu0 0
      %2325 = vmatprep.subr.bf16.mxu0 0
      %2326 = vmatpush1.bf16.xpose.msra.mxu0 0
      %2327 = vmatprep.subr.bf16.mxu0 0
      %2328 = vmatpush1.bf16.xpose.msra.mxu0 0
      %2329 = vmatprep.subr.bf16.mxu0 0
      %2330 = vmatpush1.bf16.xpose.msra.mxu0 0
      %2331 = vmatprep.subr.bf16.mxu0 0
      %2332 = vmatpush1.bf16.xpose.msra.mxu0 0
      %2333 = vmatprep.subr.bf16.mxu0 0
      %2334 = vmatpush1.bf16.xpose.msra.mxu0 0
      %2335 = vmatprep.subr.bf16.mxu0 0
      %2336 = vmatpush1.bf16.xpose.msra.mxu0 0
      %2337 = vmatprep.subr.bf16.mxu0 0
      %2338 = vmatpush1.bf16.xpose.msra.mxu0 0
      %2339 = vmatprep.subr.bf16.mxu0 0
      %2340 = vmatpush1.bf16.xpose.msra.mxu0 0
      %2341 = vmatprep.mubr.bf16.mxu0 0
      %2342 = vmatmul.mubr.bf16.gmra.mrb[0].mxu0 %v2305
      %v2343 = vpop.f32.mrb[0].mxu0
      %v2344 = vadd.f32 0.0, %v2343
      %v2345 = vpop.f32.mrb[0].mxu0
      %v2346 = vpop.f32.mrb[0].mxu0
      %v2347 = vpop.f32.mrb[0].mxu0
      %2348 = vdwg.mxu0
      %v2349 = vpack.c.bf16 %v2029, %v2029
      %v2350 = vpack.c.bf16 %v2074, %v2074
      %v2351 = vpack.c.bf16 %v2119, %v2119
      %v2352 = vpack.c.bf16 %v2164, %v2164
      %v2353 = vpack.c.bf16 %v2209, %v2209
      %v2354 = vpack.c.bf16 %v2254, %v2254
      %v2355 = vpack.c.bf16 %v2299, %v2299
      %v2356 = vpack.c.bf16 %v2344, %v2344
      %v2365 = vunpack.c.l.b16 %v2349
      %v2366 = vunpack.c.l.b16 %v2350
      %v2367 = vunpack.c.l.b16 %v2351
      %v2368 = vunpack.c.l.b16 %v2352
      %v2369 = vunpack.c.l.b16 %v2353
      %v2370 = vunpack.c.l.b16 %v2354
      %v2371 = vunpack.c.l.b16 %v2355
      %v2372 = vunpack.c.l.b16 %v2356
      %v2373 = vrot.slane %v2366, 7
      %vm2374 = vcmask 1041409
      %v2375 = vsel %vm2374, %v2373, %v2365
      %v2376 = vrot.slane %v2367, 6
      %vm2377 = vcmask 1042434
      %v2378 = vsel %vm2377, %v2376, %v2375
      %v2379 = vrot.slane %v2368, 5
      %vm2380 = vcmask 1043459
      %v2381 = vsel %vm2380, %v2379, %v2378
      %v2382 = vrot.slane %v2369, 4
      %vm2383 = vcmask 1044484
      %v2384 = vsel %vm2383, %v2382, %v2381
      %v2385 = vrot.slane %v2370, 3
      %vm2386 = vcmask 1045509
      %v2387 = vsel %vm2386, %v2385, %v2384
      %v2388 = vrot.slane %v2371, 2
      %vm2389 = vcmask 1046534
      %v2390 = vsel %vm2389, %v2388, %v2387
      %v2391 = vrot.slane %v2372, 1
      %vm2392 = vcmask 1047559
      %v2393 = vsel %vm2392, %v2391, %v2390
      %v2394 = vpack.c.b16 %v2393, %v2393
      %v2397 = vunpack.c.l.b16 %v467
      %v2398 = vunpack.c.l.b16 %v468
      %v2399 = vpack.c.b16 %v2398, %v2397
      %v2401 = vsel %vm474, %v2394, 0
      %v2404 = vsel %vm478, %v2399, 0
      %2406 = vmatprep.subr.bf16.mxu0 0
      %2407 = vmatpush1.bf16.msra.mxu0 %v2404
      %2408 = vmatprep.subr.bf16.mxu0 0
      %2409 = vmatpush1.bf16.msra.mxu0 0
      %2410 = vmatprep.subr.bf16.mxu0 0
      %2411 = vmatpush1.bf16.msra.mxu0 0
      %2412 = vmatprep.subr.bf16.mxu0 0
      %2413 = vmatpush1.bf16.msra.mxu0 0
      %2414 = vmatprep.subr.bf16.mxu0 0
      %2415 = vmatpush1.bf16.msra.mxu0 0
      %2416 = vmatprep.subr.bf16.mxu0 0
      %2417 = vmatpush1.bf16.msra.mxu0 0
      %2418 = vmatprep.subr.bf16.mxu0 0
      %2419 = vmatpush1.bf16.msra.mxu0 0
      %2420 = vmatprep.subr.bf16.mxu0 0
      %2421 = vmatpush1.bf16.msra.mxu0 0
      %2422 = vmatprep.subr.bf16.mxu0 0
      %2423 = vmatpush1.bf16.msra.mxu0 0
      %2424 = vmatprep.subr.bf16.mxu0 0
      %2425 = vmatpush1.bf16.msra.mxu0 0
      %2426 = vmatprep.subr.bf16.mxu0 0
      %2427 = vmatpush1.bf16.msra.mxu0 0
      %2428 = vmatprep.subr.bf16.mxu0 0
      %2429 = vmatpush1.bf16.msra.mxu0 0
      %2430 = vmatprep.subr.bf16.mxu0 0
      %2431 = vmatpush1.bf16.msra.mxu0 0
      %2432 = vmatprep.subr.bf16.mxu0 0
      %2433 = vmatpush1.bf16.msra.mxu0 0
      %2434 = vmatprep.subr.bf16.mxu0 0
      %2435 = vmatpush1.bf16.msra.mxu0 0
      %2436 = vmatprep.subr.bf16.mxu0 0
      %2437 = vmatpush1.bf16.msra.mxu0 0
      %2438 = vmatprep.mubr.bf16.mxu0 0
      %2439 = vmatmul.mubr.bf16.gmra.mrb[0].mxu0 %v2401
      %v2440 = vpop.f32.mrb[0].mxu0
      %v2441 = vadd.f32 0.0, %v2440
      %v2442 = vpop.f32.mrb[0].mxu0
      %v2443 = vpop.f32.mrb[0].mxu0
      %v2444 = vpop.f32.mrb[0].mxu0
      %2445 = vdwg.mxu0
      %v2446 = vadd.f32 %v1846, %v2441
      %v2447 = vpack.c.bf16 %v2446, %v2446
      %vm2448 = vcmask 60416
      %2449 = vst.msk [vmem:[%s420] sm:$0xf] %vm2448, %v2447
      %v2450 = vrot.slane %v2365, 1
      %v2451 = vsel %vm2374, %v2366, %v2450
      %v2452 = vrot.slane %v2367, 7
      %v2453 = vsel %vm2377, %v2452, %v2451
      %v2454 = vrot.slane %v2368, 6
      %v2455 = vsel %vm2380, %v2454, %v2453
      %v2456 = vrot.slane %v2369, 5
      %v2457 = vsel %vm2383, %v2456, %v2455
      %v2458 = vrot.slane %v2370, 4
      %v2459 = vsel %vm2386, %v2458, %v2457
      %v2460 = vrot.slane %v2371, 3
      %v2461 = vsel %vm2389, %v2460, %v2459
      %v2462 = vrot.slane %v2372, 2
      %v2463 = vsel %vm2392, %v2462, %v2461
      %v2464 = vpack.c.b16 %v2463, %v2463
      %v2466 = vsel %vm474, %v2464, 0
      %2468 = vmatprep.subr.bf16.mxu0 0
      %2469 = vmatpush1.bf16.msra.mxu0 %v2404
      %2470 = vmatprep.subr.bf16.mxu0 0
      %2471 = vmatpush1.bf16.msra.mxu0 0
      %2472 = vmatprep.subr.bf16.mxu0 0
      %2473 = vmatpush1.bf16.msra.mxu0 0
      %2474 = vmatprep.subr.bf16.mxu0 0
      %2475 = vmatpush1.bf16.msra.mxu0 0
      %2476 = vmatprep.subr.bf16.mxu0 0
      %2477 = vmatpush1.bf16.msra.mxu0 0
      %2478 = vmatprep.subr.bf16.mxu0 0
      %2479 = vmatpush1.bf16.msra.mxu0 0
      %2480 = vmatprep.subr.bf16.mxu0 0
      %2481 = vmatpush1.bf16.msra.mxu0 0
      %2482 = vmatprep.subr.bf16.mxu0 0
      %2483 = vmatpush1.bf16.msra.mxu0 0
      %2484 = vmatprep.subr.bf16.mxu0 0
      %2485 = vmatpush1.bf16.msra.mxu0 0
      %2486 = vmatprep.subr.bf16.mxu0 0
      %2487 = vmatpush1.bf16.msra.mxu0 0
      %2488 = vmatprep.subr.bf16.mxu0 0
      %2489 = vmatpush1.bf16.msra.mxu0 0
      %2490 = vmatprep.subr.bf16.mxu0 0
      %2491 = vmatpush1.bf16.msra.mxu0 0
      %2492 = vmatprep.subr.bf16.mxu0 0
      %2493 = vmatpush1.bf16.msra.mxu0 0
      %2494 = vmatprep.subr.bf16.mxu0 0
      %2495 = vmatpush1.bf16.msra.mxu0 0
      %2496 = vmatprep.subr.bf16.mxu0 0
      %2497 = vmatpush1.bf16.msra.mxu0 0
      %2498 = vmatprep.subr.bf16.mxu0 0
      %2499 = vmatpush1.bf16.msra.mxu0 0
      %2500 = vmatprep.mubr.bf16.mxu0 0
      %2501 = vmatmul.mubr.bf16.gmra.mrb[0].mxu0 %v2466
      %v2502 = vpop.f32.mrb[0].mxu0
      %v2503 = vadd.f32 0.0, %v2502
      %v2504 = vpop.f32.mrb[0].mxu0
      %v2505 = vpop.f32.mrb[0].mxu0
      %v2506 = vpop.f32.mrb[0].mxu0
      %2507 = vdwg.mxu0
      %v2508 = vadd.f32 %v1892, %v2503
      %v2509 = vpack.c.bf16 %v2508, %v2508
      %v2511 = vunpack.c.l.b16 %v2509
      %v2512 = vpack.c.b16 %v2511, %v2511
      %2513 = vrot.lane.b32.xlu0 %v2512, 8
      %v2514 = vpop.permute.xlu0 %2513
      %vm2516 = vcmask 126016
      %2517 = vst.msk [vmem:[%s420] sm:$0xf] %vm2516, %v2514
      %v2518 = vrot.slane %v2365, 2
      %v2519 = vrot.slane %v2366, 1
      %v2520 = vsel %vm2374, %v2519, %v2518
      %v2521 = vsel %vm2377, %v2367, %v2520
      %v2522 = vrot.slane %v2368, 7
      %v2523 = vsel %vm2380, %v2522, %v2521
      %v2524 = vrot.slane %v2369, 6
      %v2525 = vsel %vm2383, %v2524, %v2523
      %v2526 = vrot.slane %v2370, 5
      %v2527 = vsel %vm2386, %v2526, %v2525
      %v2528 = vrot.slane %v2371, 4
      %v2529 = vsel %vm2389, %v2528, %v2527
      %v2530 = vrot.slane %v2372, 3
      %v2531 = vsel %vm2392, %v2530, %v2529
      %v2532 = vpack.c.b16 %v2531, %v2531
      %v2534 = vsel %vm474, %v2532, 0
      %2536 = vmatprep.subr.bf16.mxu0 0
      %2537 = vmatpush1.bf16.msra.mxu0 %v2404
      %2538 = vmatprep.subr.bf16.mxu0 0
      %2539 = vmatpush1.bf16.msra.mxu0 0
      %2540 = vmatprep.subr.bf16.mxu0 0
      %2541 = vmatpush1.bf16.msra.mxu0 0
      %2542 = vmatprep.subr.bf16.mxu0 0
      %2543 = vmatpush1.bf16.msra.mxu0 0
      %2544 = vmatprep.subr.bf16.mxu0 0
      %2545 = vmatpush1.bf16.msra.mxu0 0
      %2546 = vmatprep.subr.bf16.mxu0 0
      %2547 = vmatpush1.bf16.msra.mxu0 0
      %2548 = vmatprep.subr.bf16.mxu0 0
      %2549 = vmatpush1.bf16.msra.mxu0 0
      %2550 = vmatprep.subr.bf16.mxu0 0
      %2551 = vmatpush1.bf16.msra.mxu0 0
      %2552 = vmatprep.subr.bf16.mxu0 0
      %2553 = vmatpush1.bf16.msra.mxu0 0
      %2554 = vmatprep.subr.bf16.mxu0 0
      %2555 = vmatpush1.bf16.msra.mxu0 0
      %2556 = vmatprep.subr.bf16.mxu0 0
      %2557 = vmatpush1.bf16.msra.mxu0 0
      %2558 = vmatprep.subr.bf16.mxu0 0
      %2559 = vmatpush1.bf16.msra.mxu0 0
      %2560 = vmatprep.subr.bf16.mxu0 0
      %2561 = vmatpush1.bf16.msra.mxu0 0
      %2562 = vmatprep.subr.bf16.mxu0 0
      %2563 = vmatpush1.bf16.msra.mxu0 0
      %2564 = vmatprep.subr.bf16.mxu0 0
      %2565 = vmatpush1.bf16.msra.mxu0 0
      %2566 = vmatprep.subr.bf16.mxu0 0
      %2567 = vmatpush1.bf16.msra.mxu0 0
      %2568 = vmatprep.mubr.bf16.mxu0 0
      %2569 = vmatmul.mubr.bf16.gmra.mrb[0].mxu0 %v2534
      %v2570 = vpop.f32.mrb[0].mxu0
      %v2571 = vadd.f32 0.0, %v2570
      %v2572 = vpop.f32.mrb[0].mxu0
      %v2573 = vpop.f32.mrb[0].mxu0
      %v2574 = vpop.f32.mrb[0].mxu0
      %2575 = vdwg.mxu0
      %v2576 = vadd.f32 %v1938, %v2571
      %v2577 = vpack.c.bf16 %v2576, %v2576
      %v2579 = vunpack.c.l.b16 %v2577
      %v2580 = vpack.c.b16 %v2579, %v2579
      %2581 = vrot.lane.b32.xlu0 %v2580, 16
      %v2582 = vpop.permute.xlu0 %2581
      %vm2584 = vcmask 191616
      %2585 = vst.msk [vmem:[%s420] sm:$0xf] %vm2584, %v2582
      %v2586 = vrot.slane %v2365, 3
      %v2587 = vrot.slane %v2366, 2
      %v2588 = vsel %vm2374, %v2587, %v2586
      %v2589 = vrot.slane %v2367, 1
      %v2590 = vsel %vm2377, %v2589, %v2588
      %v2591 = vsel %vm2380, %v2368, %v2590
      %v2592 = vrot.slane %v2369, 7
      %v2593 = vsel %vm2383, %v2592, %v2591
      %v2594 = vrot.slane %v2370, 6
      %v2595 = vsel %vm2386, %v2594, %v2593
      %v2596 = vrot.slane %v2371, 5
      %v2597 = vsel %vm2389, %v2596, %v2595
      %v2598 = vrot.slane %v2372, 4
      %v2599 = vsel %vm2392, %v2598, %v2597
      %v2600 = vpack.c.b16 %v2599, %v2599
      %v2602 = vsel %vm474, %v2600, 0
      %2604 = vmatprep.subr.bf16.mxu0 0
      %2605 = vmatpush1.bf16.msra.mxu0 %v2404
      %2606 = vmatprep.subr.bf16.mxu0 0
      %2607 = vmatpush1.bf16.msra.mxu0 0
      %2608 = vmatprep.subr.bf16.mxu0 0
      %2609 = vmatpush1.bf16.msra.mxu0 0
      %2610 = vmatprep.subr.bf16.mxu0 0
      %2611 = vmatpush1.bf16.msra.mxu0 0
      %2612 = vmatprep.subr.bf16.mxu0 0
      %2613 = vmatpush1.bf16.msra.mxu0 0
      %2614 = vmatprep.subr.bf16.mxu0 0
      %2615 = vmatpush1.bf16.msra.mxu0 0
      %2616 = vmatprep.subr.bf16.mxu0 0
      %2617 = vmatpush1.bf16.msra.mxu0 0
      %2618 = vmatprep.subr.bf16.mxu0 0
      %2619 = vmatpush1.bf16.msra.mxu0 0
      %2620 = vmatprep.subr.bf16.mxu0 0
      %2621 = vmatpush1.bf16.msra.mxu0 0
      %2622 = vmatprep.subr.bf16.mxu0 0
      %2623 = vmatpush1.bf16.msra.mxu0 0
      %2624 = vmatprep.subr.bf16.mxu0 0
      %2625 = vmatpush1.bf16.msra.mxu0 0
      %2626 = vmatprep.subr.bf16.mxu0 0
      %2627 = vmatpush1.bf16.msra.mxu0 0
      %2628 = vmatprep.subr.bf16.mxu0 0
      %2629 = vmatpush1.bf16.msra.mxu0 0
      %2630 = vmatprep.subr.bf16.mxu0 0
      %2631 = vmatpush1.bf16.msra.mxu0 0
      %2632 = vmatprep.subr.bf16.mxu0 0
      %2633 = vmatpush1.bf16.msra.mxu0 0
      %2634 = vmatprep.subr.bf16.mxu0 0
      %2635 = vmatpush1.bf16.msra.mxu0 0
      %2636 = vmatprep.mubr.bf16.mxu0 0
      %2637 = vmatmul.mubr.bf16.gmra.mrb[0].mxu0 %v2602
      %v2638 = vpop.f32.mrb[0].mxu0
      %v2639 = vadd.f32 0.0, %v2638
      %v2640 = vpop.f32.mrb[0].mxu0
      %v2641 = vpop.f32.mrb[0].mxu0
      %v2642 = vpop.f32.mrb[0].mxu0
      %2643 = vdwg.mxu0
      %v2644 = vadd.f32 %v1984, %v2639
      %v2645 = vpack.c.bf16 %v2644, %v2644
      %v2647 = vunpack.c.l.b16 %v2645
      %v2648 = vpack.c.b16 %v2647, %v2647
      %2649 = vrot.lane.b32.xlu0 %v2648, 24
      %v2650 = vpop.permute.xlu0 %2649
      %vm2652 = vcmask 257216
      %2653 = vst.msk [vmem:[%s420] sm:$0xf] %vm2652, %v2650
      %p2654 = scmp.lt.s32.totalorder %s19, 1
      %s2655 = scalar_select %p2654, %s19, 1
      %s2656 = smul.addr %s2655, 4
      %s2657 = scalar_lea.vmem %s8, %s2656
      // Predicated region
      $region53: #{transformer_forward.13} parent=51 // pred_check
        %p2658 = pneg %p240
      $region54: #{transformer_forward.13} parent=51 // pred_check_branch
        %2660 = sbr.rel (%p2658) target = $region56
      $region55: #{transformer_forward.13} parent=51 // pred_region
        _
      $region56: #{transformer_forward.13} parent=51 // pred_fallthru
        _
    $region52: #{transformer_forward.13} parent=5 // pred_fallthru
      _
    %p2661 = scmp.le.s32.totalorder 2, %s14
    // Predicated region
    $region57: #{transformer_forward.13} parent=5 // pred_check
      %p2662 = pneg %p2661
    $region58: #{transformer_forward.13} parent=5 // pred_check_branch
      %2664 = sbr.rel (%p2662) target = $region60
    $region59: #{transformer_forward.13} parent=5 // pred_region
      %s2665 = ssub.s32 %s14, 2
      // Predicated region
      $region61: #{transformer_forward.13} parent=59 // pred_check
        %p2666 = pneg %p246
      $region62: #{transformer_forward.13} parent=59 // pred_check_branch
        %2668 = sbr.rel (%p2666) target = $region64
      $region63: #{transformer_forward.13} parent=59 // pred_region
        %p2669 = scmp.lt.s32.totalorder %s20, 1
        %s2670 = scalar_select %p2669, %s20, 1
        %s2671 = smul.addr %s2670, 4
        %s2672 = scalar_lea.vmem %s8, %s2671
      $region64: #{transformer_forward.13} parent=59 // pred_fallthru
        _
    $region60: #{transformer_forward.13} parent=5 // pred_fallthru
      _
  $region6: #{transformer_forward.13} parent=0 // loop_footer
    %s18 = sadd.s32 1, %s14
  $region7: #{transformer_forward.13} parent=0 // loop_footer_branch
    %13 = sbr.rel target = $region3
  $region8: #{transformer_forward.13} parent=0 // loop_exit
    _

</llo_original>
